<compile_context>
chip_gen: v6e
topology: v6e:2x2x1
jax: 0.10.0
libtpu: 0.0.40
codegen_flags: <defaults>
</compile_context>

<pallas_src>
import functools

import jax
import jax.numpy as jnp
import numpy as np
from jax import lax
from jax.experimental import pallas as pl
from jax.experimental.pallas import tpu as pltpu


_OUT_PAD = 128   # lane-dense width for the final MLP output

_VMEM = pl.BlockSpec(memory_space=pltpu.MemorySpace.VMEM)


# ----------------------------- Pallas kernel ------------------------------- #

def _fused_gat_kernel(*refs, num_layers, num_heads):
    """Fused forward: [GATConv + ReLU] x L -> mean-pool -> Linear/ReLU/Linear.

    refs layout (positional, as passed by pallas_call):
      [x, adj_int8, pool_bf16, block_sum, spread_d, blk_mask] +
      num_layers * [w_bf16, a_dst_expand_bf16, a_src_blk_bf16, bias] +
      [lin1_w_bf16, lin1_b, lin2_w_pad_bf16, lin2_b_pad] +
      [out]
    """
    x_ref, adj_ref, pool_ref, bsum_ref, spread_ref, blkmask_ref = refs[:6]
    layer_refs = refs[6:6 + 4 * num_layers]
    lw1_ref, lb1_ref, lw2_ref, lb2_ref = refs[6 + 4 * num_layers:
                                              10 + 4 * num_layers]
    out_ref = refs[10 + 4 * num_layers]

    H = num_heads

    # Head-stacked edge mask (N, H*N): column hd*N + j <- adj[i, j].
    # Built once from the int8 adjacency (where-based mask, no -1e30 additive).
    adj_f = adj_ref[...].astype(jnp.float32)                    # (N, N)
    edge_st = jnp.concatenate([adj_f] * H, axis=-1)             # (N, H*N)

    bsum = bsum_ref[...]        # (H*N, H)  per-head softmax-sum selector (f32)
    spread = spread_ref[...]    # (H, H*Fo) expands per-head scalars to lanes
    blkmask = blkmask_ref[...]  # (H*N, H*Fo) block-diagonal 0/1 mask

    x_cur = x_ref[...].astype(jnp.float32)
    for layer in range(num_layers):
        w_ref, adx_ref, asb_ref, b_ref = layer_refs[4 * layer:4 * layer + 4]

        # All-heads projection: (N, H*Fo). bf16 MXU operands, f32 accumulate.
        h = jnp.dot(x_cur.astype(jnp.bfloat16), w_ref[...],
                    preferred_element_type=jnp.float32)
        h_b = h.astype(jnp.bfloat16)

        # dst logits directly in the head-stacked (N, H*N) layout (one matmul):
        #   ld_st[i, hd*N + j] = a_dst[hd] . h_i  (independent of j)
        ld_st = jnp.dot(h_b, adx_ref[...], preferred_element_type=jnp.float32)
        # src logits for all heads: (H, N), ls[hd, j] = a_src[hd] . h_j
        ls = lax.dot_general(asb_ref[...], h_b, (((0,), (1,)), ((), ())),
                             preferred_element_type=jnp.float32)
        # flatten (H, N) -> (1, H*N) with static lane-axis concatenation
        ls_row = jnp.concatenate([ls[hd:hd + 1, :] for hd in range(H)], axis=-1)

        # Head-batched attention logits, LeakyReLU and masked softmax — issued
        # ONCE for all heads on lane-dense (N, H*N) f32 tensors.
        e = ld_st + ls_row                                      # (N, H*N)
        e = jnp.where(e > 0, e, 0.2 * e)                        # LeakyReLU(0.2)
        # row max over all heads: valid softmax stabilizer (softmax is shift-
        # invariant; every row has a self-loop so the sum below stays > 0).
        m = jnp.max(e, axis=-1, keepdims=True)                  # (N, 1)
        p = jnp.where(edge_st > 0.0, jnp.exp(e - m), 0.0)       # (N, H*N) f32

        # Per-head denominators via one tiny matmul: ssum[i, hd] = sum_j p.
        ssum = jnp.dot(p, bsum, preferred_element_type=jnp.float32)   # (N, H)
        inv = pl.reciprocal(ssum, approx=True)                         # EUP
        inv_d = jnp.dot(inv, spread, preferred_element_type=jnp.float32)  # (N, H*Fo)

        # Single block-structured aggregation matmul (K = H*N, bf16 operands):
        #   h_bd[hd*N + j, hd*Fo + f] = h[j, hd*Fo + f], zero off-block.
        h_bd = (jnp.concatenate([h] * H, axis=0) * blkmask).astype(jnp.bfloat16)
        agg = jnp.dot(p.astype(jnp.bfloat16), h_bd,
                      preferred_element_type=jnp.float32)       # (N, H*Fo)

        # normalize + bias + ReLU (F.relu(conv(x)) in the reference module)
        x_cur = jnp.maximum(agg * inv_d + b_ref[...], 0.0)

    # global_mean_pool -> Linear(., 128) -> ReLU -> Linear(128, 1) (lane-padded)
    pooled = jnp.dot(pool_ref[...], x_cur.astype(jnp.bfloat16),
                     preferred_element_type=jnp.float32)
    y = jnp.dot(pooled.astype(jnp.bfloat16), lw1_ref[...],
                preferred_element_type=jnp.float32)
    y = jnp.maximum(y + lb1_ref[...], 0.0)
    z = jnp.dot(y.astype(jnp.bfloat16), lw2_ref[...],
                preferred_element_type=jnp.float32)
    out_ref[...] = z + lb2_ref[...]          # (B, 128): only column 0 is valid


# ------------------------------ JAX wrapper --------------------------------- #

def _a_src_block(att_src, head_dim, num_heads):
    """(H, Fo) -> block-diagonal (H*Fo, H) so one matmul covers all heads."""
    out_dim = head_dim * num_heads
    blk = jnp.zeros((out_dim, num_heads), jnp.float32)
    for h in range(num_heads):
        blk = blk.at[h * head_dim:(h + 1) * head_dim, h].set(att_src[h])
    return blk


def _a_dst_expand(att_dst, head_dim, num_heads, n):
    """(H, Fo) -> (H*Fo, H*N): h @ this gives dst-logits in stacked layout."""
    out_dim = head_dim * num_heads
    m = jnp.zeros((out_dim, num_heads * n), jnp.float32)
    for h in range(num_heads):
        block = jnp.broadcast_to(att_dst[h][:, None], (head_dim, n))
        m = m.at[h * head_dim:(h + 1) * head_dim, h * n:(h + 1) * n].set(block)
    return m


def _head_constants(num_heads, head_dim, n):
    """Static 0/1 selector matrices shared by every layer."""
    hn, d = num_heads * n, num_heads * head_dim
    row_head = np.arange(hn)[:, None] // n                      # (H*N, 1)
    col_head_d = np.arange(d)[None, :] // head_dim               # (1, D)
    bsum = (row_head == np.arange(num_heads)[None, :]).astype(np.float32)
    spread = (np.arange(num_heads)[:, None] == col_head_d).astype(np.float32)
    blkmask = (row_head == col_head_d).astype(np.float32)
    return jnp.asarray(bsum), jnp.asarray(spread), jnp.asarray(blkmask)


def gat_classifier_forward(params, x, adj_int8, pool_mat, *, num_heads, head_dim):
    n = x.shape[0]
    b = pool_mat.shape[0]
    num_layers = len(params["convs"])

    bsum, spread, blkmask = _head_constants(num_heads, head_dim, n)

    # Pad the final (128, 1) linear layer to 128 lanes for a lane-dense store.
    w2p = jnp.zeros((128, _OUT_PAD), jnp.float32).at[:, 0:1].set(params["w2"])
    b2p = jnp.zeros((1, _OUT_PAD), jnp.float32).at[:, 0:1].set(params["b2"])

    bf = lambda a: a.astype(jnp.bfloat16)

    args = [x, adj_int8, bf(pool_mat), bsum, spread, blkmask]
    for layer in params["convs"]:
        args += [bf(layer["w"]),
                 bf(_a_dst_expand(layer["att_dst"], head_dim, num_heads, n)),
                 bf(_a_src_block(layer["att_src"], head_dim, num_heads)),
                 layer["bias"]]
    args += [bf(params["w1"]), params["b1"], bf(w2p), b2p]

    kernel = functools.partial(_fused_gat_kernel, num_layers=num_layers,
                               num_heads=num_heads)
    out_padded = pl.pallas_call(
        kernel,
        out_shape=jax.ShapeDtypeStruct((b, _OUT_PAD), jnp.float32),
        in_specs=[_VMEM] * len(args),
        out_specs=_VMEM,
        compiler_params=pltpu.CompilerParams(vmem_limit_bytes=32 * 1024 * 1024),
    )(*args)
    return out_padded[:, 0]                  # x.squeeze() -> (B,)


# --------------------------- pure-JAX reference ------------------------------ #

def _reference_forward(params, x, adj, pool_mat, *, num_heads, head_dim):
    xc = x
    for layer in params["convs"]:
        h = xc @ layer["w"]
        outs = []
        for hd in range(num_heads):
            hh = h[:, hd * head_dim:(hd + 1) * head_dim]
            a_dst = hh @ layer["att_dst"][hd]
            a_src = hh @ layer["att_src"][hd]
            e = a_dst[:, None] + a_src[None, :]
            e = jnp.where(e > 0, e, 0.2 * e)
            e = jnp.where(adj > 0, e, -jnp.inf)
            alpha = jax.nn.softmax(e, axis=-1)
            outs.append(alpha @ hh)
        xc = jnp.maximum(jnp.concatenate(outs, axis=1) + layer["bias"], 0.0)
    pooled = pool_mat @ xc
    y = jnp.maximum(pooled @ params["w1"] + params["b1"], 0.0)
    z = y @ params["w2"] + params["b2"]
    return z.squeeze()


# ------------------------------ parameter init ------------------------------ #

def init_params(key, in_channels, hidden_channels, num_heads, num_layers):
    params = {"convs": []}
    out_dim = hidden_channels * num_heads
    fan_in = in_channels
    for _ in range(num_layers):
        key, k1, k2, k3 = jax.random.split(key, 4)
        params["convs"].append({
            "w": 0.1 * jax.random.normal(k1, (fan_in, out_dim), jnp.float32),
            "att_src": 0.1 * jax.random.normal(k2, (num_heads, hidden_channels),
                                               jnp.float32),
            "att_dst": 0.1 * jax.random.normal(k3, (num_heads, hidden_channels),
                                               jnp.float32),
            "bias": jnp.zeros((1, out_dim), jnp.float32),
        })
        fan_in = out_dim
    key, k1, k2 = jax.random.split(key, 3)
    params["w1"] = 0.1 * jax.random.normal(k1, (out_dim, 128), jnp.float32)
    params["b1"] = jnp.zeros((1, 128), jnp.float32)
    params["w2"] = 0.1 * jax.random.normal(k2, (128, 1), jnp.float32)
    params["b2"] = jnp.zeros((1, 1), jnp.float32)
    return params


# ---------------------------------- main ------------------------------------ #

if __name__ == "__main__":
    # Model config (small): GATClassifier(in_channels=16, hidden_channels=8,
    #                                     num_heads=4, num_layers=2)
    in_channels, hidden_channels, num_heads, num_layers = 16, 8, 4, 2

    # Pack graphs so N is a multiple of 128 (full lane utilization):
    # 16 graphs x 8 nodes = 128 nodes, ring edges per graph.
    num_graphs, nodes_per_graph = 16, 8
    n_nodes = num_graphs * nodes_per_graph

    src_list, dst_list = [], []
    for g in range(num_graphs):
        base = g * nodes_per_graph
        for k in range(nodes_per_graph):
            a = base + k
            c = base + (k + 1) % nodes_per_graph
            src_list += [a, c]
            dst_list += [c, a]
    edge_index = np.stack([np.array(src_list), np.array(dst_list)])  # (2, E)

    # Dense adjacency with self-loops: adj[dst, src] = 1 (int8 for the kernel).
    adj_np = np.zeros((n_nodes, n_nodes), np.int8)
    adj_np[edge_index[1], edge_index[0]] = 1
    adj_np[np.arange(n_nodes), np.arange(n_nodes)] = 1
    adj_i8 = jnp.asarray(adj_np)
    adj_f32 = jnp.asarray(adj_np.astype(np.float32))

    # global_mean_pool as a dense pooling matrix (B, N)
    batch = np.repeat(np.arange(num_graphs), nodes_per_graph)
    pool_np = np.zeros((num_graphs, n_nodes), np.float32)
    pool_np[batch, np.arange(n_nodes)] = 1.0 / nodes_per_graph
    pool_mat = jnp.asarray(pool_np)

    key = jax.random.PRNGKey(0)
    key, kx = jax.random.split(key)
    x = jax.random.normal(kx, (n_nodes, in_channels), jnp.float32)

    params = init_params(key, in_channels, hidden_channels, num_heads, num_layers)

    fwd = jax.jit(functools.partial(gat_classifier_forward,
                                    num_heads=num_heads,
                                    head_dim=hidden_channels))
    out = fwd(params, x, adj_i8, pool_mat)
    out = jax.block_until_ready(out)

    assert out.shape == (num_graphs,)
    assert bool(jnp.all(jnp.isfinite(out)))

    # Loose correctness check vs. a pure-JAX f32 reference (kernel uses bf16
    # MXU operands + approx reciprocal, so exact f32 equality is not expected).
    ref = _reference_forward(params, x, adj_f32, pool_mat,
                             num_heads=num_heads, head_dim=hidden_channels)
    np.testing.assert_allclose(np.asarray(out), np.asarray(ref),
                               rtol=5e-2, atol=5e-2)

    print("KERNEL_OK")
</pallas_src>

<mosaic_0001>
module attributes {stable_mosaic.version = 11 : i64} {
  func.func @_fused_gat_kernel(%arg0: memref<128x16xf32, #tpu.memory_space<vmem>>, %arg1: memref<128x128xi8, #tpu.memory_space<vmem>>, %arg2: memref<16x128xbf16, #tpu.memory_space<vmem>>, %arg3: memref<512x4xf32, #tpu.memory_space<vmem>>, %arg4: memref<4x32xf32, #tpu.memory_space<vmem>>, %arg5: memref<512x32xf32, #tpu.memory_space<vmem>>, %arg6: memref<16x32xbf16, #tpu.memory_space<vmem>>, %arg7: memref<32x512xbf16, #tpu.memory_space<vmem>>, %arg8: memref<32x4xbf16, #tpu.memory_space<vmem>>, %arg9: memref<1x32xf32, #tpu.memory_space<vmem>>, %arg10: memref<32x32xbf16, #tpu.memory_space<vmem>>, %arg11: memref<32x512xbf16, #tpu.memory_space<vmem>>, %arg12: memref<32x4xbf16, #tpu.memory_space<vmem>>, %arg13: memref<1x32xf32, #tpu.memory_space<vmem>>, %arg14: memref<32x128xbf16, #tpu.memory_space<vmem>>, %arg15: memref<1x128xf32, #tpu.memory_space<vmem>>, %arg16: memref<128x128xbf16, #tpu.memory_space<vmem>>, %arg17: memref<1x128xf32, #tpu.memory_space<vmem>>, %arg18: memref<16x128xf32, #tpu.memory_space<vmem>>) attributes {dimension_semantics = [], scalar_prefetch = 0 : i64, scratch_operands = 0 : i64, tpu.core_type = #tpu.core_type<tc>} {
    %c0 = arith.constant 0 : index
    %c0_0 = arith.constant 0 : index
    %0 = vector.load %arg1[%c0, %c0_0] : memref<128x128xi8, #tpu.memory_space<vmem>>, vector<128x128xi8>
    %1 = arith.sitofp %0 : vector<128x128xi8> to vector<128x128xf32>
    %2 = tpu.concatenate %1, %1, %1, %1 in 1 : vector<128x128xf32>, vector<128x128xf32>, vector<128x128xf32>, vector<128x128xf32> -> vector<128x512xf32>
    %c0_1 = arith.constant 0 : index
    %c0_2 = arith.constant 0 : index
    %3 = vector.load %arg3[%c0_1, %c0_2] : memref<512x4xf32, #tpu.memory_space<vmem>>, vector<512x4xf32>
    %c0_3 = arith.constant 0 : index
    %c0_4 = arith.constant 0 : index
    %4 = vector.load %arg4[%c0_3, %c0_4] : memref<4x32xf32, #tpu.memory_space<vmem>>, vector<4x32xf32>
    %c0_5 = arith.constant 0 : index
    %c0_6 = arith.constant 0 : index
    %5 = vector.load %arg5[%c0_5, %c0_6] : memref<512x32xf32, #tpu.memory_space<vmem>>, vector<512x32xf32>
    %c0_7 = arith.constant 0 : index
    %c0_8 = arith.constant 0 : index
    %6 = vector.load %arg0[%c0_7, %c0_8] : memref<128x16xf32, #tpu.memory_space<vmem>>, vector<128x16xf32>
    %7 = arith.truncf %6 : vector<128x16xf32> to vector<128x16xbf16>
    %c0_9 = arith.constant 0 : index
    %c0_10 = arith.constant 0 : index
    %8 = vector.load %arg6[%c0_9, %c0_10] : memref<16x32xbf16, #tpu.memory_space<vmem>>, vector<16x32xbf16>
    %cst = arith.constant dense<0.000000e+00> : vector<128x32xf32>
    %9 = tpu.matmul %7, %8, %cst {dimension_numbers = #tpu.dot_dimension_numbers<[1], [0], [0], [1], [0, 0, 1, 1], [], []>} : vector<128x16xbf16>, vector<16x32xbf16>, vector<128x32xf32> -> vector<128x32xf32>
    %10 = arith.truncf %9 : vector<128x32xf32> to vector<128x32xbf16>
    %c0_11 = arith.constant 0 : index
    %c0_12 = arith.constant 0 : index
    %11 = vector.load %arg7[%c0_11, %c0_12] : memref<32x512xbf16, #tpu.memory_space<vmem>>, vector<32x512xbf16>
    %cst_13 = arith.constant dense<0.000000e+00> : vector<128x512xf32>
    %12 = tpu.matmul %10, %11, %cst_13 {dimension_numbers = #tpu.dot_dimension_numbers<[1], [0], [0], [1], [0, 0, 1, 1], [], []>} : vector<128x32xbf16>, vector<32x512xbf16>, vector<128x512xf32> -> vector<128x512xf32>
    %c0_14 = arith.constant 0 : index
    %c0_15 = arith.constant 0 : index
    %13 = vector.load %arg8[%c0_14, %c0_15] : memref<32x4xbf16, #tpu.memory_space<vmem>>, vector<32x4xbf16>
    %cst_16 = arith.constant dense<0.000000e+00> : vector<4x128xf32>
    %14 = tpu.matmul %13, %10, %cst_16 {dimension_numbers = #tpu.dot_dimension_numbers<[0], [1], [1], [0], [0, 1, 1, 0], [], []>} : vector<32x4xbf16>, vector<128x32xbf16>, vector<4x128xf32> -> vector<4x128xf32>
    %15 = vector.extract_strided_slice %14 {offsets = [0, 0], sizes = [1, 128], strides = [1, 1]} : vector<4x128xf32> to vector<1x128xf32>
    %16 = vector.extract_strided_slice %14 {offsets = [1, 0], sizes = [1, 128], strides = [1, 1]} : vector<4x128xf32> to vector<1x128xf32>
    %17 = vector.extract_strided_slice %14 {offsets = [2, 0], sizes = [1, 128], strides = [1, 1]} : vector<4x128xf32> to vector<1x128xf32>
    %18 = vector.extract_strided_slice %14 {offsets = [3, 0], sizes = [1, 128], strides = [1, 1]} : vector<4x128xf32> to vector<1x128xf32>
    %19 = tpu.concatenate %15, %16, %17, %18 in 1 : vector<1x128xf32>, vector<1x128xf32>, vector<1x128xf32>, vector<1x128xf32> -> vector<1x512xf32>
    %20 = vector.broadcast %19 : vector<1x512xf32> to vector<128x512xf32>
    %21 = arith.addf %12, %20 : vector<128x512xf32>
    %cst_17 = arith.constant 0.000000e+00 : f32
    %22 = vector.broadcast %cst_17 : f32 to vector<128x512xf32>
    %23 = arith.cmpf ogt, %21, %22 : vector<128x512xf32>
    %cst_18 = arith.constant 2.000000e-01 : f32
    %24 = vector.broadcast %cst_18 : f32 to vector<128x512xf32>
    %25 = arith.mulf %24, %21 : vector<128x512xf32>
    %26 = arith.select %23, %21, %25 : vector<128x512xi1>, vector<128x512xf32>
    %cst_19 = arith.constant dense<0xFF800000> : vector<128xf32>
    %27 = vector.multi_reduction <maximumf>, %26, %cst_19 [1] : vector<128x512xf32> to vector<128xf32>
    %28 = vector.shape_cast %27 : vector<128xf32> to vector<128x1xf32>
    %cst_20 = arith.constant 0.000000e+00 : f32
    %29 = vector.broadcast %cst_20 : f32 to vector<128x512xf32>
    %30 = arith.cmpf ogt, %2, %29 : vector<128x512xf32>
    %31 = vector.broadcast %28 : vector<128x1xf32> to vector<128x512xf32>
    %32 = arith.subf %26, %31 : vector<128x512xf32>
    %33 = math.exp %32 : vector<128x512xf32>
    %cst_21 = arith.constant 0.000000e+00 : f32
    %34 = vector.broadcast %cst_21 : f32 to vector<128x512xf32>
    %35 = arith.select %30, %33, %34 : vector<128x512xi1>, vector<128x512xf32>
    %cst_22 = arith.constant dense<0.000000e+00> : vector<128x4xf32>
    %36 = tpu.matmul %35, %3, %cst_22 {dimension_numbers = #tpu.dot_dimension_numbers<[1], [0], [0], [1], [0, 0, 1, 1], [], []>} : vector<128x512xf32>, vector<512x4xf32>, vector<128x4xf32> -> vector<128x4xf32>
    %37 = tpu.reciprocal %36 {approx = true} : vector<128x4xf32> -> vector<128x4xf32>
    %cst_23 = arith.constant dense<0.000000e+00> : vector<128x32xf32>
    %38 = tpu.matmul %37, %4, %cst_23 {dimension_numbers = #tpu.dot_dimension_numbers<[1], [0], [0], [1], [0, 0, 1, 1], [], []>} : vector<128x4xf32>, vector<4x32xf32>, vector<128x32xf32> -> vector<128x32xf32>
    %39 = tpu.concatenate %9, %9, %9, %9 in 0 : vector<128x32xf32>, vector<128x32xf32>, vector<128x32xf32>, vector<128x32xf32> -> vector<512x32xf32>
    %40 = arith.mulf %39, %5 : vector<512x32xf32>
    %41 = arith.truncf %40 : vector<512x32xf32> to vector<512x32xbf16>
    %42 = arith.truncf %35 : vector<128x512xf32> to vector<128x512xbf16>
    %cst_24 = arith.constant dense<0.000000e+00> : vector<128x32xf32>
    %43 = tpu.matmul %42, %41, %cst_24 {dimension_numbers = #tpu.dot_dimension_numbers<[1], [0], [0], [1], [0, 0, 1, 1], [], []>} : vector<128x512xbf16>, vector<512x32xbf16>, vector<128x32xf32> -> vector<128x32xf32>
    %44 = arith.mulf %43, %38 : vector<128x32xf32>
    %c0_25 = arith.constant 0 : index
    %c0_26 = arith.constant 0 : index
    %45 = vector.load %arg9[%c0_25, %c0_26] : memref<1x32xf32, #tpu.memory_space<vmem>>, vector<1x32xf32>
    %46 = vector.broadcast %45 : vector<1x32xf32> to vector<128x32xf32>
    %47 = arith.addf %44, %46 : vector<128x32xf32>
    %cst_27 = arith.constant 0.000000e+00 : f32
    %48 = vector.broadcast %cst_27 : f32 to vector<128x32xf32>
    %49 = arith.maximumf %47, %48 : vector<128x32xf32>
    %50 = arith.truncf %49 : vector<128x32xf32> to vector<128x32xbf16>
    %c0_28 = arith.constant 0 : index
    %c0_29 = arith.constant 0 : index
    %51 = vector.load %arg10[%c0_28, %c0_29] : memref<32x32xbf16, #tpu.memory_space<vmem>>, vector<32x32xbf16>
    %cst_30 = arith.constant dense<0.000000e+00> : vector<128x32xf32>
    %52 = tpu.matmul %50, %51, %cst_30 {dimension_numbers = #tpu.dot_dimension_numbers<[1], [0], [0], [1], [0, 0, 1, 1], [], []>} : vector<128x32xbf16>, vector<32x32xbf16>, vector<128x32xf32> -> vector<128x32xf32>
    %53 = arith.truncf %52 : vector<128x32xf32> to vector<128x32xbf16>
    %c0_31 = arith.constant 0 : index
    %c0_32 = arith.constant 0 : index
    %54 = vector.load %arg11[%c0_31, %c0_32] : memref<32x512xbf16, #tpu.memory_space<vmem>>, vector<32x512xbf16>
    %cst_33 = arith.constant dense<0.000000e+00> : vector<128x512xf32>
    %55 = tpu.matmul %53, %54, %cst_33 {dimension_numbers = #tpu.dot_dimension_numbers<[1], [0], [0], [1], [0, 0, 1, 1], [], []>} : vector<128x32xbf16>, vector<32x512xbf16>, vector<128x512xf32> -> vector<128x512xf32>
    %c0_34 = arith.constant 0 : index
    %c0_35 = arith.constant 0 : index
    %56 = vector.load %arg12[%c0_34, %c0_35] : memref<32x4xbf16, #tpu.memory_space<vmem>>, vector<32x4xbf16>
    %cst_36 = arith.constant dense<0.000000e+00> : vector<4x128xf32>
    %57 = tpu.matmul %56, %53, %cst_36 {dimension_numbers = #tpu.dot_dimension_numbers<[0], [1], [1], [0], [0, 1, 1, 0], [], []>} : vector<32x4xbf16>, vector<128x32xbf16>, vector<4x128xf32> -> vector<4x128xf32>
    %58 = vector.extract_strided_slice %57 {offsets = [0, 0], sizes = [1, 128], strides = [1, 1]} : vector<4x128xf32> to vector<1x128xf32>
    %59 = vector.extract_strided_slice %57 {offsets = [1, 0], sizes = [1, 128], strides = [1, 1]} : vector<4x128xf32> to vector<1x128xf32>
    %60 = vector.extract_strided_slice %57 {offsets = [2, 0], sizes = [1, 128], strides = [1, 1]} : vector<4x128xf32> to vector<1x128xf32>
    %61 = vector.extract_strided_slice %57 {offsets = [3, 0], sizes = [1, 128], strides = [1, 1]} : vector<4x128xf32> to vector<1x128xf32>
    %62 = tpu.concatenate %58, %59, %60, %61 in 1 : vector<1x128xf32>, vector<1x128xf32>, vector<1x128xf32>, vector<1x128xf32> -> vector<1x512xf32>
    %63 = vector.broadcast %62 : vector<1x512xf32> to vector<128x512xf32>
    %64 = arith.addf %55, %63 : vector<128x512xf32>
    %cst_37 = arith.constant 0.000000e+00 : f32
    %65 = vector.broadcast %cst_37 : f32 to vector<128x512xf32>
    %66 = arith.cmpf ogt, %64, %65 : vector<128x512xf32>
    %cst_38 = arith.constant 2.000000e-01 : f32
    %67 = vector.broadcast %cst_38 : f32 to vector<128x512xf32>
    %68 = arith.mulf %67, %64 : vector<128x512xf32>
    %69 = arith.select %66, %64, %68 : vector<128x512xi1>, vector<128x512xf32>
    %cst_39 = arith.constant dense<0xFF800000> : vector<128xf32>
    %70 = vector.multi_reduction <maximumf>, %69, %cst_39 [1] : vector<128x512xf32> to vector<128xf32>
    %71 = vector.shape_cast %70 : vector<128xf32> to vector<128x1xf32>
    %cst_40 = arith.constant 0.000000e+00 : f32
    %72 = vector.broadcast %cst_40 : f32 to vector<128x512xf32>
    %73 = arith.cmpf ogt, %2, %72 : vector<128x512xf32>
    %74 = vector.broadcast %71 : vector<128x1xf32> to vector<128x512xf32>
    %75 = arith.subf %69, %74 : vector<128x512xf32>
    %76 = math.exp %75 : vector<128x512xf32>
    %cst_41 = arith.constant 0.000000e+00 : f32
    %77 = vector.broadcast %cst_41 : f32 to vector<128x512xf32>
    %78 = arith.select %73, %76, %77 : vector<128x512xi1>, vector<128x512xf32>
    %cst_42 = arith.constant dense<0.000000e+00> : vector<128x4xf32>
    %79 = tpu.matmul %78, %3, %cst_42 {dimension_numbers = #tpu.dot_dimension_numbers<[1], [0], [0], [1], [0, 0, 1, 1], [], []>} : vector<128x512xf32>, vector<512x4xf32>, vector<128x4xf32> -> vector<128x4xf32>
    %80 = tpu.reciprocal %79 {approx = true} : vector<128x4xf32> -> vector<128x4xf32>
    %cst_43 = arith.constant dense<0.000000e+00> : vector<128x32xf32>
    %81 = tpu.matmul %80, %4, %cst_43 {dimension_numbers = #tpu.dot_dimension_numbers<[1], [0], [0], [1], [0, 0, 1, 1], [], []>} : vector<128x4xf32>, vector<4x32xf32>, vector<128x32xf32> -> vector<128x32xf32>
    %82 = tpu.concatenate %52, %52, %52, %52 in 0 : vector<128x32xf32>, vector<128x32xf32>, vector<128x32xf32>, vector<128x32xf32> -> vector<512x32xf32>
    %83 = arith.mulf %82, %5 : vector<512x32xf32>
    %84 = arith.truncf %83 : vector<512x32xf32> to vector<512x32xbf16>
    %85 = arith.truncf %78 : vector<128x512xf32> to vector<128x512xbf16>
    %cst_44 = arith.constant dense<0.000000e+00> : vector<128x32xf32>
    %86 = tpu.matmul %85, %84, %cst_44 {dimension_numbers = #tpu.dot_dimension_numbers<[1], [0], [0], [1], [0, 0, 1, 1], [], []>} : vector<128x512xbf16>, vector<512x32xbf16>, vector<128x32xf32> -> vector<128x32xf32>
    %87 = arith.mulf %86, %81 : vector<128x32xf32>
    %c0_45 = arith.constant 0 : index
    %c0_46 = arith.constant 0 : index
    %88 = vector.load %arg13[%c0_45, %c0_46] : memref<1x32xf32, #tpu.memory_space<vmem>>, vector<1x32xf32>
    %89 = vector.broadcast %88 : vector<1x32xf32> to vector<128x32xf32>
    %90 = arith.addf %87, %89 : vector<128x32xf32>
    %cst_47 = arith.constant 0.000000e+00 : f32
    %91 = vector.broadcast %cst_47 : f32 to vector<128x32xf32>
    %92 = arith.maximumf %90, %91 : vector<128x32xf32>
    %c0_48 = arith.constant 0 : index
    %c0_49 = arith.constant 0 : index
    %93 = vector.load %arg2[%c0_48, %c0_49] : memref<16x128xbf16, #tpu.memory_space<vmem>>, vector<16x128xbf16>
    %94 = arith.truncf %92 : vector<128x32xf32> to vector<128x32xbf16>
    %cst_50 = arith.constant dense<0.000000e+00> : vector<16x32xf32>
    %95 = tpu.matmul %93, %94, %cst_50 {dimension_numbers = #tpu.dot_dimension_numbers<[1], [0], [0], [1], [0, 0, 1, 1], [], []>} : vector<16x128xbf16>, vector<128x32xbf16>, vector<16x32xf32> -> vector<16x32xf32>
    %96 = arith.truncf %95 : vector<16x32xf32> to vector<16x32xbf16>
    %c0_51 = arith.constant 0 : index
    %c0_52 = arith.constant 0 : index
    %97 = vector.load %arg14[%c0_51, %c0_52] : memref<32x128xbf16, #tpu.memory_space<vmem>>, vector<32x128xbf16>
    %cst_53 = arith.constant dense<0.000000e+00> : vector<16x128xf32>
    %98 = tpu.matmul %96, %97, %cst_53 {dimension_numbers = #tpu.dot_dimension_numbers<[1], [0], [0], [1], [0, 0, 1, 1], [], []>} : vector<16x32xbf16>, vector<32x128xbf16>, vector<16x128xf32> -> vector<16x128xf32>
    %c0_54 = arith.constant 0 : index
    %c0_55 = arith.constant 0 : index
    %99 = vector.load %arg15[%c0_54, %c0_55] : memref<1x128xf32, #tpu.memory_space<vmem>>, vector<1x128xf32>
    %100 = vector.broadcast %99 : vector<1x128xf32> to vector<16x128xf32>
    %101 = arith.addf %98, %100 : vector<16x128xf32>
    %cst_56 = arith.constant 0.000000e+00 : f32
    %102 = vector.broadcast %cst_56 : f32 to vector<16x128xf32>
    %103 = arith.maximumf %101, %102 : vector<16x128xf32>
    %104 = arith.truncf %103 : vector<16x128xf32> to vector<16x128xbf16>
    %c0_57 = arith.constant 0 : index
    %c0_58 = arith.constant 0 : index
    %105 = vector.load %arg16[%c0_57, %c0_58] : memref<128x128xbf16, #tpu.memory_space<vmem>>, vector<128x128xbf16>
    %cst_59 = arith.constant dense<0.000000e+00> : vector<16x128xf32>
    %106 = tpu.matmul %104, %105, %cst_59 {dimension_numbers = #tpu.dot_dimension_numbers<[1], [0], [0], [1], [0, 0, 1, 1], [], []>} : vector<16x128xbf16>, vector<128x128xbf16>, vector<16x128xf32> -> vector<16x128xf32>
    %c0_60 = arith.constant 0 : index
    %c0_61 = arith.constant 0 : index
    %107 = vector.load %arg17[%c0_60, %c0_61] : memref<1x128xf32, #tpu.memory_space<vmem>>, vector<1x128xf32>
    %108 = vector.broadcast %107 : vector<1x128xf32> to vector<16x128xf32>
    %109 = arith.addf %106, %108 : vector<16x128xf32>
    %c0_62 = arith.constant 0 : index
    %c0_63 = arith.constant 0 : index
    %110 = vector.load %arg18[%c0_62, %c0_63] : memref<16x128xf32, #tpu.memory_space<vmem>>, vector<16x128xf32>
    tpu.vector_store %arg18[%c0_62, %c0_63], %109 {strides = array<i32>} : memref<16x128xf32, #tpu.memory_space<vmem>>, vector<16x128xf32>,
    return
  }
}

</mosaic_0001>

<llo_original>
// kernel: gat_classifier_forward.1
$region0: #{gat_classifier_forward.1}
  #allocation0 [shape = 'u32[]', space=smem, size = 0x4, offset = 0x4, fixed_abs, tag = 'smem constant byte address 0x4 - core index']
  #allocation1 [shape = 'u32[144,128]{1,0:T(1,128)}', space=vmem, size = 0x12000, scoped, tag = 'internal scratch']
  %s0 = inlined_call_operand.vmem [shape: f32[128,16], index: 0, kind: input, shape index: {}]
  %s1 = inlined_call_operand.vmem [shape: s8[128,128], index: 1, kind: input, shape index: {}]
  %s2 = inlined_call_operand.vmem [shape: bf16[16,128], index: 2, kind: input, shape index: {}]
  %s3 = inlined_call_operand.hbm [shape: f32[512,4], index: 3, kind: input, shape index: {}]
  %s4 = inlined_call_operand.vmem [shape: f32[4,32], index: 4, kind: input, shape index: {}]
  %s5 = inlined_call_operand.vmem [shape: f32[512,32], index: 5, kind: input, shape index: {}]
  %s6 = inlined_call_operand.vmem [shape: bf16[16,32], index: 6, kind: input, shape index: {}]
  %s7 = inlined_call_operand.vmem [shape: bf16[32,512], index: 7, kind: input, shape index: {}]
  %s8 = inlined_call_operand.vmem [shape: bf16[32,4], index: 8, kind: input, shape index: {}]
  %s9 = inlined_call_operand.vmem [shape: f32[1,32], index: 9, kind: input, shape index: {}]
  %s10 = inlined_call_operand.vmem [shape: bf16[32,32], index: 10, kind: input, shape index: {}]
  %s11 = inlined_call_operand.vmem [shape: bf16[32,512], index: 11, kind: input, shape index: {}]
  %s12 = inlined_call_operand.vmem [shape: bf16[32,4], index: 12, kind: input, shape index: {}]
  %s13 = inlined_call_operand.vmem [shape: f32[1,32], index: 13, kind: input, shape index: {}]
  %s14 = inlined_call_operand.vmem [shape: bf16[32,128], index: 14, kind: input, shape index: {}]
  %s15 = inlined_call_operand.vmem [shape: f32[1,128], index: 15, kind: input, shape index: {}]
  %s16 = inlined_call_operand.vmem [shape: bf16[128,128], index: 16, kind: input, shape index: {}]
  %s17 = inlined_call_operand.vmem [shape: f32[1,128], index: 17, kind: input, shape index: {}]
  %s18 = inlined_call_operand.vmem [shape: f32[16,128], index: 18, kind: output, shape index: {}]
  %s19 = sld [smem:[#allocation0]]
  $region86: #{gat_classifier_forward.1} parent=0
    _
  %s21 = ssub.s32 1, %s19
  %s22 = scalar_select 0, %s21, %s19
  $region1: #{gat_classifier_forward.1} parent=0
    #allocation2 [shape = 'u8[262144]{0}', space=vmem, size = 0x40000, scoped, tag = 'input window, operand 3, single buffered']
    #allocation3 [shape = 's32[1]{0}', space=sflag, size = 0x4, scoped, tag = 'scoped memory for gat_classifier_forward.1']
    %23 = vsyncpa [#allocation3], 0
    // Predicated region
    $region2: #{gat_classifier_forward.1} parent=1 // pred_check
      _
    $region3: #{gat_classifier_forward.1} parent=1 // pred_check_branch
      %25 = sbr.rel (0) target = $region5
    $region4: #{gat_classifier_forward.1} parent=1 // pred_region
      _
    $region5: #{gat_classifier_forward.1} parent=1 // pred_fallthru
      _
    // Predicated region
    $region6: #{gat_classifier_forward.1} parent=1 // pred_check
      _
    $region7: #{gat_classifier_forward.1} parent=1 // pred_check_branch
      %27 = sbr.rel (0) target = $region9
    $region8: #{gat_classifier_forward.1} parent=1 // pred_region
      _
    $region9: #{gat_classifier_forward.1} parent=1 // pred_fallthru
      _
    // Predicated region
    $region10: #{gat_classifier_forward.1} parent=1 // pred_check
      _
    $region11: #{gat_classifier_forward.1} parent=1 // pred_check_branch
      %29 = sbr.rel (0) target = $region13
    $region12: #{gat_classifier_forward.1} parent=1 // pred_region
      _
    $region13: #{gat_classifier_forward.1} parent=1 // pred_fallthru
      _
    // Predicated region
    $region14: #{gat_classifier_forward.1} parent=1 // pred_check
      _
    $region15: #{gat_classifier_forward.1} parent=1 // pred_check_branch
      %31 = sbr.rel (0) target = $region17
    $region16: #{gat_classifier_forward.1} parent=1 // pred_region
      %s33 = ssub.s32 8192, 8192
      %34 = vsyncadd [#allocation3], %s33
      %s35 = sshll.u32 [#allocation2], 4
      %s36 = int_to_ptr.vmem [resolvable:$true] %s35
      %41 = dma.hbm_to_vmem [thread:$0]  %s3, 8192, %s36, [#allocation3], 128, 128, 8
    $region17: #{gat_classifier_forward.1} parent=1 // pred_fallthru
      _
    // Predicated region
    $region18: #{gat_classifier_forward.1} parent=1 // pred_check
      _
    $region19: #{gat_classifier_forward.1} parent=1 // pred_check_branch
      %43 = sbr.rel (0) target = $region21
    $region20: #{gat_classifier_forward.1} parent=1 // pred_region
      _
    $region21: #{gat_classifier_forward.1} parent=1 // pred_fallthru
      _
    // Predicated region
    $region22: #{gat_classifier_forward.1} parent=1 // pred_check
      _
    $region23: #{gat_classifier_forward.1} parent=1 // pred_check_branch
      %45 = sbr.rel (0) target = $region25
    $region24: #{gat_classifier_forward.1} parent=1 // pred_region
      _
    $region25: #{gat_classifier_forward.1} parent=1 // pred_fallthru
      _
    // Predicated region
    $region26: #{gat_classifier_forward.1} parent=1 // pred_check
      _
    $region27: #{gat_classifier_forward.1} parent=1 // pred_check_branch
      %47 = sbr.rel (0) target = $region29
    $region28: #{gat_classifier_forward.1} parent=1 // pred_region
      _
    $region29: #{gat_classifier_forward.1} parent=1 // pred_fallthru
      _
    // Predicated region
    $region30: #{gat_classifier_forward.1} parent=1 // pred_check
      _
    $region31: #{gat_classifier_forward.1} parent=1 // pred_check_branch
      %49 = sbr.rel (0) target = $region33
    $region32: #{gat_classifier_forward.1} parent=1 // pred_region
      _
    $region33: #{gat_classifier_forward.1} parent=1 // pred_fallthru
      _
    // Predicated region
    $region34: #{gat_classifier_forward.1} parent=1 // pred_check
      _
    $region35: #{gat_classifier_forward.1} parent=1 // pred_check_branch
      %51 = sbr.rel (0) target = $region37
    $region36: #{gat_classifier_forward.1} parent=1 // pred_region
      _
    $region37: #{gat_classifier_forward.1} parent=1 // pred_fallthru
      _
    // Predicated region
    $region38: #{gat_classifier_forward.1} parent=1 // pred_check
      _
    $region39: #{gat_classifier_forward.1} parent=1 // pred_check_branch
      %53 = sbr.rel (0) target = $region41
    $region40: #{gat_classifier_forward.1} parent=1 // pred_region
      _
    $region41: #{gat_classifier_forward.1} parent=1 // pred_fallthru
      _
    // Predicated region
    $region42: #{gat_classifier_forward.1} parent=1 // pred_check
      _
    $region43: #{gat_classifier_forward.1} parent=1 // pred_check_branch
      %55 = sbr.rel (0) target = $region45
    $region44: #{gat_classifier_forward.1} parent=1 // pred_region
      _
    $region45: #{gat_classifier_forward.1} parent=1 // pred_fallthru
      _
    // Predicated region
    $region46: #{gat_classifier_forward.1} parent=1 // pred_check
      _
    $region47: #{gat_classifier_forward.1} parent=1 // pred_check_branch
      %57 = sbr.rel (0) target = $region49
    $region48: #{gat_classifier_forward.1} parent=1 // pred_region
      _
    $region49: #{gat_classifier_forward.1} parent=1 // pred_fallthru
      _
    // Predicated region
    $region50: #{gat_classifier_forward.1} parent=1 // pred_check
      _
    $region51: #{gat_classifier_forward.1} parent=1 // pred_check_branch
      %59 = sbr.rel (0) target = $region53
    $region52: #{gat_classifier_forward.1} parent=1 // pred_region
      _
    $region53: #{gat_classifier_forward.1} parent=1 // pred_fallthru
      _
    // Predicated region
    $region54: #{gat_classifier_forward.1} parent=1 // pred_check
      _
    $region55: #{gat_classifier_forward.1} parent=1 // pred_check_branch
      %61 = sbr.rel (0) target = $region57
    $region56: #{gat_classifier_forward.1} parent=1 // pred_region
      _
    $region57: #{gat_classifier_forward.1} parent=1 // pred_fallthru
      _
    // Predicated region
    $region58: #{gat_classifier_forward.1} parent=1 // pred_check
      _
    $region59: #{gat_classifier_forward.1} parent=1 // pred_check_branch
      %63 = sbr.rel (0) target = $region61
    $region60: #{gat_classifier_forward.1} parent=1 // pred_region
      _
    $region61: #{gat_classifier_forward.1} parent=1 // pred_fallthru
      _
    // Predicated region
    $region62: #{gat_classifier_forward.1} parent=1 // pred_check
      _
    $region63: #{gat_classifier_forward.1} parent=1 // pred_check_branch
      %65 = sbr.rel (0) target = $region65
    $region64: #{gat_classifier_forward.1} parent=1 // pred_region
      _
    $region65: #{gat_classifier_forward.1} parent=1 // pred_fallthru
      _
    // Predicated region
    $region66: #{gat_classifier_forward.1} parent=1 // pred_check
      _
    $region67: #{gat_classifier_forward.1} parent=1 // pred_check_branch
      %67 = sbr.rel (0) target = $region69
    $region68: #{gat_classifier_forward.1} parent=1 // pred_region
      _
    $region69: #{gat_classifier_forward.1} parent=1 // pred_fallthru
      _
    // Predicated region
    $region70: #{gat_classifier_forward.1} parent=1 // pred_check
      _
    $region71: #{gat_classifier_forward.1} parent=1 // pred_check_branch
      %69 = sbr.rel (0) target = $region73
    $region72: #{gat_classifier_forward.1} parent=1 // pred_region
      _
    $region73: #{gat_classifier_forward.1} parent=1 // pred_fallthru
      _
    // Predicated region
    $region74: #{gat_classifier_forward.1} parent=1 // pred_check
      _
    $region75: #{gat_classifier_forward.1} parent=1 // pred_check_branch
      %71 = sbr.rel (0) target = $region77
    $region76: #{gat_classifier_forward.1} parent=1 // pred_region
      %72 = dma.done [#allocation3], 8192
    $region77: #{gat_classifier_forward.1} parent=1 // pred_fallthru
      _
    %v74 = vld [vmem:[%s1] sm:$0xff]
    %v75 = vld [vmem:[%s1 + $0x8] sm:$0xff]
    %v76 = vld [vmem:[%s1 + $0x10] sm:$0xff]
    %v77 = vld [vmem:[%s1 + $0x18] sm:$0xff]
    %v78 = vunpack.c.0.s8 %v74
    %v79 = vunpack.c.1.s8 %v74
    %v80 = vunpack.c.2.s8 %v74
    %v81 = vunpack.c.3.s8 %v74
    %v82 = vunpack.c.0.s8 %v75
    %v83 = vunpack.c.1.s8 %v75
    %v84 = vunpack.c.2.s8 %v75
    %v85 = vunpack.c.3.s8 %v75
    %v86 = vunpack.c.0.s8 %v76
    %v87 = vunpack.c.1.s8 %v76
    %v88 = vunpack.c.2.s8 %v76
    %v89 = vunpack.c.3.s8 %v76
    %v90 = vunpack.c.0.s8 %v77
    %v91 = vunpack.c.1.s8 %v77
    %v92 = vunpack.c.2.s8 %v77
    %v93 = vunpack.c.3.s8 %v77
    %v94 = vcvt.s32.f32 %v78
    %v95 = vcvt.s32.f32 %v79
    %v96 = vcvt.s32.f32 %v80
    %v97 = vcvt.s32.f32 %v81
    %v98 = vcvt.s32.f32 %v82
    %v99 = vcvt.s32.f32 %v83
    %v100 = vcvt.s32.f32 %v84
    %v101 = vcvt.s32.f32 %v85
    %v102 = vcvt.s32.f32 %v86
    %v103 = vcvt.s32.f32 %v87
    %v104 = vcvt.s32.f32 %v88
    %v105 = vcvt.s32.f32 %v89
    %v106 = vcvt.s32.f32 %v90
    %v107 = vcvt.s32.f32 %v91
    %v108 = vcvt.s32.f32 %v92
    %v109 = vcvt.s32.f32 %v93
    %v110 = vld [vmem:[#allocation2] sm:$0xff]
    %v111 = vld [vmem:[#allocation2 + $0x8] sm:$0xff]
    %v112 = vld [vmem:[#allocation2 + $0x10] sm:$0xff]
    %v113 = vld [vmem:[#allocation2 + $0x18] sm:$0xff]
    %v114 = vld [vmem:[#allocation2 + $0x20] sm:$0xff]
    %v115 = vld [vmem:[#allocation2 + $0x28] sm:$0xff]
    %v116 = vld [vmem:[#allocation2 + $0x30] sm:$0xff]
    %v117 = vld [vmem:[#allocation2 + $0x38] sm:$0xff]
    %v118 = vld [vmem:[#allocation2 + $0x40] sm:$0xff]
    %v119 = vld [vmem:[#allocation2 + $0x48] sm:$0xff]
    %v120 = vld [vmem:[#allocation2 + $0x50] sm:$0xff]
    %v121 = vld [vmem:[#allocation2 + $0x58] sm:$0xff]
    %v122 = vld [vmem:[#allocation2 + $0x60] sm:$0xff]
    %v123 = vld [vmem:[#allocation2 + $0x68] sm:$0xff]
    %v124 = vld [vmem:[#allocation2 + $0x70] sm:$0xff]
    %v125 = vld [vmem:[#allocation2 + $0x78] sm:$0xff]
    %v126 = vld [vmem:[#allocation2 + $0x80] sm:$0xff]
    %v127 = vld [vmem:[#allocation2 + $0x88] sm:$0xff]
    %v128 = vld [vmem:[#allocation2 + $0x90] sm:$0xff]
    %v129 = vld [vmem:[#allocation2 + $0x98] sm:$0xff]
    %v130 = vld [vmem:[#allocation2 + $0xa0] sm:$0xff]
    %v131 = vld [vmem:[#allocation2 + $0xa8] sm:$0xff]
    %v132 = vld [vmem:[#allocation2 + $0xb0] sm:$0xff]
    %v133 = vld [vmem:[#allocation2 + $0xb8] sm:$0xff]
    %v134 = vld [vmem:[#allocation2 + $0xc0] sm:$0xff]
    %v135 = vld [vmem:[#allocation2 + $0xc8] sm:$0xff]
    %v136 = vld [vmem:[#allocation2 + $0xd0] sm:$0xff]
    %v137 = vld [vmem:[#allocation2 + $0xd8] sm:$0xff]
    %v138 = vld [vmem:[#allocation2 + $0xe0] sm:$0xff]
    %v139 = vld [vmem:[#allocation2 + $0xe8] sm:$0xff]
    %v140 = vld [vmem:[#allocation2 + $0xf0] sm:$0xff]
    %v141 = vld [vmem:[#allocation2 + $0xf8] sm:$0xff]
    %v142 = vld [vmem:[#allocation2 + $0x100] sm:$0xff]
    %v143 = vld [vmem:[#allocation2 + $0x108] sm:$0xff]
    %v144 = vld [vmem:[#allocation2 + $0x110] sm:$0xff]
    %v145 = vld [vmem:[#allocation2 + $0x118] sm:$0xff]
    %v146 = vld [vmem:[#allocation2 + $0x120] sm:$0xff]
    %v147 = vld [vmem:[#allocation2 + $0x128] sm:$0xff]
    %v148 = vld [vmem:[#allocation2 + $0x130] sm:$0xff]
    %v149 = vld [vmem:[#allocation2 + $0x138] sm:$0xff]
    %v150 = vld [vmem:[#allocation2 + $0x140] sm:$0xff]
    %v151 = vld [vmem:[#allocation2 + $0x148] sm:$0xff]
    %v152 = vld [vmem:[#allocation2 + $0x150] sm:$0xff]
    %v153 = vld [vmem:[#allocation2 + $0x158] sm:$0xff]
    %v154 = vld [vmem:[#allocation2 + $0x160] sm:$0xff]
    %v155 = vld [vmem:[#allocation2 + $0x168] sm:$0xff]
    %v156 = vld [vmem:[#allocation2 + $0x170] sm:$0xff]
    %v157 = vld [vmem:[#allocation2 + $0x178] sm:$0xff]
    %v158 = vld [vmem:[#allocation2 + $0x180] sm:$0xff]
    %v159 = vld [vmem:[#allocation2 + $0x188] sm:$0xff]
    %v160 = vld [vmem:[#allocation2 + $0x190] sm:$0xff]
    %v161 = vld [vmem:[#allocation2 + $0x198] sm:$0xff]
    %v162 = vld [vmem:[#allocation2 + $0x1a0] sm:$0xff]
    %v163 = vld [vmem:[#allocation2 + $0x1a8] sm:$0xff]
    %v164 = vld [vmem:[#allocation2 + $0x1b0] sm:$0xff]
    %v165 = vld [vmem:[#allocation2 + $0x1b8] sm:$0xff]
    %v166 = vld [vmem:[#allocation2 + $0x1c0] sm:$0xff]
    %v167 = vld [vmem:[#allocation2 + $0x1c8] sm:$0xff]
    %v168 = vld [vmem:[#allocation2 + $0x1d0] sm:$0xff]
    %v169 = vld [vmem:[#allocation2 + $0x1d8] sm:$0xff]
    %v170 = vld [vmem:[#allocation2 + $0x1e0] sm:$0xff]
    %v171 = vld [vmem:[#allocation2 + $0x1e8] sm:$0xff]
    %v172 = vld [vmem:[#allocation2 + $0x1f0] sm:$0xff]
    %v173 = vld [vmem:[#allocation2 + $0x1f8] sm:$0xff]
    %v174 = vld [vmem:[%s4] sm:$0xf]
    %v175 = vld [vmem:[%s5] sm:$0xff]
    %v176 = vld [vmem:[%s5 + $0x8] sm:$0xff]
    %v177 = vld [vmem:[%s5 + $0x10] sm:$0xff]
    %v178 = vld [vmem:[%s5 + $0x18] sm:$0xff]
    %v179 = vld [vmem:[%s5 + $0x20] sm:$0xff]
    %v180 = vld [vmem:[%s5 + $0x28] sm:$0xff]
    %v181 = vld [vmem:[%s5 + $0x30] sm:$0xff]
    %v182 = vld [vmem:[%s5 + $0x38] sm:$0xff]
    %v183 = vld [vmem:[%s5 + $0x40] sm:$0xff]
    %v184 = vld [vmem:[%s5 + $0x48] sm:$0xff]
    %v185 = vld [vmem:[%s5 + $0x50] sm:$0xff]
    %v186 = vld [vmem:[%s5 + $0x58] sm:$0xff]
    %v187 = vld [vmem:[%s5 + $0x60] sm:$0xff]
    %v188 = vld [vmem:[%s5 + $0x68] sm:$0xff]
    %v189 = vld [vmem:[%s5 + $0x70] sm:$0xff]
    %v190 = vld [vmem:[%s5 + $0x78] sm:$0xff]
    %v191 = vld [vmem:[%s5 + $0x80] sm:$0xff]
    %v192 = vld [vmem:[%s5 + $0x88] sm:$0xff]
    %v193 = vld [vmem:[%s5 + $0x90] sm:$0xff]
    %v194 = vld [vmem:[%s5 + $0x98] sm:$0xff]
    %v195 = vld [vmem:[%s5 + $0xa0] sm:$0xff]
    %v196 = vld [vmem:[%s5 + $0xa8] sm:$0xff]
    %v197 = vld [vmem:[%s5 + $0xb0] sm:$0xff]
    %v198 = vld [vmem:[%s5 + $0xb8] sm:$0xff]
    %v199 = vld [vmem:[%s5 + $0xc0] sm:$0xff]
    %v200 = vld [vmem:[%s5 + $0xc8] sm:$0xff]
    %v201 = vld [vmem:[%s5 + $0xd0] sm:$0xff]
    %v202 = vld [vmem:[%s5 + $0xd8] sm:$0xff]
    %v203 = vld [vmem:[%s5 + $0xe0] sm:$0xff]
    %v204 = vld [vmem:[%s5 + $0xe8] sm:$0xff]
    %v205 = vld [vmem:[%s5 + $0xf0] sm:$0xff]
    %v206 = vld [vmem:[%s5 + $0xf8] sm:$0xff]
    %v207 = vld [vmem:[%s5 + $0x100] sm:$0xff]
    %v208 = vld [vmem:[%s5 + $0x108] sm:$0xff]
    %v209 = vld [vmem:[%s5 + $0x110] sm:$0xff]
    %v210 = vld [vmem:[%s5 + $0x118] sm:$0xff]
    %v211 = vld [vmem:[%s5 + $0x120] sm:$0xff]
    %v212 = vld [vmem:[%s5 + $0x128] sm:$0xff]
    %v213 = vld [vmem:[%s5 + $0x130] sm:$0xff]
    %v214 = vld [vmem:[%s5 + $0x138] sm:$0xff]
    %v215 = vld [vmem:[%s5 + $0x140] sm:$0xff]
    %v216 = vld [vmem:[%s5 + $0x148] sm:$0xff]
    %v217 = vld [vmem:[%s5 + $0x150] sm:$0xff]
    %v218 = vld [vmem:[%s5 + $0x158] sm:$0xff]
    %v219 = vld [vmem:[%s5 + $0x160] sm:$0xff]
    %v220 = vld [vmem:[%s5 + $0x168] sm:$0xff]
    %v221 = vld [vmem:[%s5 + $0x170] sm:$0xff]
    %v222 = vld [vmem:[%s5 + $0x178] sm:$0xff]
    %v223 = vld [vmem:[%s5 + $0x180] sm:$0xff]
    %v224 = vld [vmem:[%s5 + $0x188] sm:$0xff]
    %v225 = vld [vmem:[%s5 + $0x190] sm:$0xff]
    %v226 = vld [vmem:[%s5 + $0x198] sm:$0xff]
    %v227 = vld [vmem:[%s5 + $0x1a0] sm:$0xff]
    %v228 = vld [vmem:[%s5 + $0x1a8] sm:$0xff]
    %v229 = vld [vmem:[%s5 + $0x1b0] sm:$0xff]
    %v230 = vld [vmem:[%s5 + $0x1b8] sm:$0xff]
    %v231 = vld [vmem:[%s5 + $0x1c0] sm:$0xff]
    %v232 = vld [vmem:[%s5 + $0x1c8] sm:$0xff]
    %v233 = vld [vmem:[%s5 + $0x1d0] sm:$0xff]
    %v234 = vld [vmem:[%s5 + $0x1d8] sm:$0xff]
    %v235 = vld [vmem:[%s5 + $0x1e0] sm:$0xff]
    %v236 = vld [vmem:[%s5 + $0x1e8] sm:$0xff]
    %v237 = vld [vmem:[%s5 + $0x1f0] sm:$0xff]
    %v238 = vld [vmem:[%s5 + $0x1f8] sm:$0xff]
    %v239 = vld [vmem:[%s0] sm:$0xff]
    %v240 = vld [vmem:[%s0 + $0x8] sm:$0xff]
    %v241 = vld [vmem:[%s0 + $0x10] sm:$0xff]
    %v242 = vld [vmem:[%s0 + $0x18] sm:$0xff]
    %v243 = vld [vmem:[%s0 + $0x20] sm:$0xff]
    %v244 = vld [vmem:[%s0 + $0x28] sm:$0xff]
    %v245 = vld [vmem:[%s0 + $0x30] sm:$0xff]
    %v246 = vld [vmem:[%s0 + $0x38] sm:$0xff]
    %v247 = vld [vmem:[%s0 + $0x40] sm:$0xff]
    %v248 = vld [vmem:[%s0 + $0x48] sm:$0xff]
    %v249 = vld [vmem:[%s0 + $0x50] sm:$0xff]
    %v250 = vld [vmem:[%s0 + $0x58] sm:$0xff]
    %v251 = vld [vmem:[%s0 + $0x60] sm:$0xff]
    %v252 = vld [vmem:[%s0 + $0x68] sm:$0xff]
    %v253 = vld [vmem:[%s0 + $0x70] sm:$0xff]
    %v254 = vld [vmem:[%s0 + $0x78] sm:$0xff]
    %v255 = vpack.c.bf16 %v240, %v239
    %v256 = vpack.c.bf16 %v242, %v241
    %v257 = vpack.c.bf16 %v244, %v243
    %v258 = vpack.c.bf16 %v246, %v245
    %v259 = vpack.c.bf16 %v248, %v247
    %v260 = vpack.c.bf16 %v250, %v249
    %v261 = vpack.c.bf16 %v252, %v251
    %v262 = vpack.c.bf16 %v254, %v253
    %v263 = vld [vmem:[%s6] sm:$0xf]
    %v264 = vld [vmem:[%s6 + $0x4] sm:$0xf]
    %v267 = vunpack.c.l.b16 %v263
    %v268 = vunpack.c.l.b16 %v264
    %v269 = vpack.c.b16 %v268, %v267
    %vm271 = vcmask 130048
    %v273 = vsel %vm271, %v255, 0
    %v276 = vsel %vm271, %v256, 0
    %v279 = vsel %vm271, %v257, 0
    %v282 = vsel %vm271, %v258, 0
    %v285 = vsel %vm271, %v259, 0
    %v288 = vsel %vm271, %v260, 0
    %v291 = vsel %vm271, %v261, 0
    %v294 = vsel %vm271, %v262, 0
    %296 = vmatprep.subr.bf16.mxu0 0
    %297 = vmatpush1.bf16.msra.mxu0 0
    %298 = vmatprep.subr.bf16.mxu0 0
    %299 = vmatpush1.bf16.msra.mxu0 0
    %300 = vmatprep.subr.bf16.mxu0 0
    %301 = vmatpush1.bf16.msra.mxu0 0
    %302 = vmatprep.subr.bf16.mxu0 0
    %303 = vmatpush1.bf16.msra.mxu0 0
    %304 = vmatprep.subr.bf16.mxu0 0
    %305 = vmatpush1.bf16.msra.mxu0 0
    %306 = vmatprep.subr.bf16.mxu0 0
    %307 = vmatpush1.bf16.msra.mxu0 0
    %308 = vmatprep.subr.bf16.mxu0 0
    %309 = vmatpush1.bf16.msra.mxu0 0
    %310 = vmatprep.subr.bf16.mxu0 0
    %311 = vmatpush1.bf16.msra.mxu0 %v269
    %312 = vmatprep.subr.bf16.mxu0 0
    %313 = vmatpush2.bf16.msra.mxu0 0
    %314 = vmatprep.subr.bf16.mxu0 0
    %315 = vmatpush2.bf16.msra.mxu0 0
    %316 = vmatprep.subr.bf16.mxu0 0
    %317 = vmatpush2.bf16.msra.mxu0 0
    %318 = vmatprep.subr.bf16.mxu0 0
    %319 = vmatpush2.bf16.msra.mxu0 0
    %320 = vmatprep.subr.bf16.mxu0 0
    %321 = vmatpush2.bf16.msra.mxu0 0
    %322 = vmatprep.subr.bf16.mxu0 0
    %323 = vmatpush2.bf16.msra.mxu0 0
    %324 = vmatprep.subr.bf16.mxu0 0
    %325 = vmatpush2.bf16.msra.mxu0 0
    %326 = vmatprep.subr.bf16.mxu0 0
    %327 = vmatpush2.bf16.msra.mxu0 0
    %328 = vmatprep.mubr.bf16.mxu0 0
    %329 = vmatmul.mubr.bf16.gmra.mxu0 %v273
    %v330 = vpop.f32.mrf.mxu0
    %v331 = vadd.f32 0.0, %v330
    %v332 = vpop.f32.mrf.mxu0
    %v333 = vpop.f32.mrf.mxu0
    %v334 = vadd.f32 0.0, %v333
    %v335 = vpop.f32.mrf.mxu0
    %336 = vmatprep.mubr.bf16.mxu0 0
    %337 = vmatmul.mubr.bf16.gmra.mxu0 %v276
    %v338 = vpop.f32.mrf.mxu0
    %v339 = vadd.f32 0.0, %v338
    %v340 = vpop.f32.mrf.mxu0
    %v341 = vpop.f32.mrf.mxu0
    %v342 = vadd.f32 0.0, %v341
    %v343 = vpop.f32.mrf.mxu0
    %344 = vmatprep.mubr.bf16.mxu0 0
    %345 = vmatmul.mubr.bf16.gmra.mxu0 %v279
    %v346 = vpop.f32.mrf.mxu0
    %v347 = vadd.f32 0.0, %v346
    %v348 = vpop.f32.mrf.mxu0
    %v349 = vpop.f32.mrf.mxu0
    %v350 = vadd.f32 0.0, %v349
    %v351 = vpop.f32.mrf.mxu0
    %352 = vmatprep.mubr.bf16.mxu0 0
    %353 = vmatmul.mubr.bf16.gmra.mxu0 %v282
    %v354 = vpop.f32.mrf.mxu0
    %v355 = vadd.f32 0.0, %v354
    %v356 = vpop.f32.mrf.mxu0
    %v357 = vpop.f32.mrf.mxu0
    %v358 = vadd.f32 0.0, %v357
    %v359 = vpop.f32.mrf.mxu0
    %360 = vmatprep.mubr.bf16.mxu0 0
    %361 = vmatmul.mubr.bf16.gmra.mxu0 %v285
    %v362 = vpop.f32.mrf.mxu0
    %v363 = vadd.f32 0.0, %v362
    %v364 = vpop.f32.mrf.mxu0
    %v365 = vpop.f32.mrf.mxu0
    %v366 = vadd.f32 0.0, %v365
    %v367 = vpop.f32.mrf.mxu0
    %368 = vmatprep.mubr.bf16.mxu0 0
    %369 = vmatmul.mubr.bf16.gmra.mxu0 %v288
    %v370 = vpop.f32.mrf.mxu0
    %v371 = vadd.f32 0.0, %v370
    %v372 = vpop.f32.mrf.mxu0
    %v373 = vpop.f32.mrf.mxu0
    %v374 = vadd.f32 0.0, %v373
    %v375 = vpop.f32.mrf.mxu0
    %376 = vmatprep.mubr.bf16.mxu0 0
    %377 = vmatmul.mubr.bf16.gmra.mxu0 %v291
    %v378 = vpop.f32.mrf.mxu0
    %v379 = vadd.f32 0.0, %v378
    %v380 = vpop.f32.mrf.mxu0
    %v381 = vpop.f32.mrf.mxu0
    %v382 = vadd.f32 0.0, %v381
    %v383 = vpop.f32.mrf.mxu0
    %384 = vmatprep.mubr.bf16.mxu0 0
    %385 = vmatmul.mubr.bf16.gmra.mxu0 %v294
    %v386 = vpop.f32.mrf.mxu0
    %v387 = vadd.f32 0.0, %v386
    %v388 = vpop.f32.mrf.mxu0
    %v389 = vpop.f32.mrf.mxu0
    %v390 = vadd.f32 0.0, %v389
    %v391 = vpop.f32.mrf.mxu0
    %392 = vdwg.mxu0
    %v393 = vpack.c.bf16 %v334, %v331
    %v394 = vpack.c.bf16 %v342, %v339
    %v395 = vpack.c.bf16 %v350, %v347
    %v396 = vpack.c.bf16 %v358, %v355
    %v397 = vpack.c.bf16 %v366, %v363
    %v398 = vpack.c.bf16 %v374, %v371
    %v399 = vpack.c.bf16 %v382, %v379
    %v400 = vpack.c.bf16 %v390, %v387
    %v401 = vld [vmem:[%s7] sm:$0xff]
    %v402 = vld [vmem:[%s7 + $0x8] sm:$0xff]
    %v403 = vld [vmem:[%s7 + $0x10] sm:$0xff]
    %v404 = vld [vmem:[%s7 + $0x18] sm:$0xff]
    %v405 = vld [vmem:[%s7 + $0x20] sm:$0xff]
    %v406 = vld [vmem:[%s7 + $0x28] sm:$0xff]
    %v407 = vld [vmem:[%s7 + $0x30] sm:$0xff]
    %v408 = vld [vmem:[%s7 + $0x38] sm:$0xff]
    %v409 = vld [vmem:[%s8] sm:$0xf]
    %v410 = vld [vmem:[%s8 + $0x4] sm:$0xf]
    %v411 = vld [vmem:[%s8 + $0x8] sm:$0xf]
    %v412 = vld [vmem:[%s8 + $0xc] sm:$0xf]
    %v417 = vunpack.c.l.b16 %v409
    %v418 = vunpack.c.l.b16 %v410
    %v419 = vunpack.c.l.b16 %v411
    %v420 = vunpack.c.l.b16 %v412
    %v421 = vpack.c.b16 %v418, %v417
    %v422 = vpack.c.b16 %v420, %v419
    %425 = vxpose.xlu0.c.b16.start [1/8] %v421, 128
    %426 = vxpose.xlu0.c.b16.cont [2/8] %v422, 128
    %427 = vxpose.xlu0.c.b16.cont [3/8] 0, 128
    %428 = vxpose.xlu0.c.b16.cont [4/8] 0, 128
    %429 = vxpose.xlu0.c.b16.cont [5/8] 0, 128
    %430 = vxpose.xlu0.c.b16.cont [6/8] 0, 128
    %431 = vxpose.xlu0.c.b16.cont [7/8] 0, 128
    %432 = vxpose.xlu0.c.b16.end [8/8] 0, 128
    %v433 = vpop.trf.xlu0
    %v434 = vpop.trf.xlu0
    %v435 = vpop.trf.xlu0
    %v436 = vpop.trf.xlu0
    %v437 = vpop.trf.xlu0
    %v438 = vpop.trf.xlu0
    %v439 = vpop.trf.xlu0
    %v440 = vpop.trf.xlu0
    %vm441 = vcmask 261120
    %v443 = vsel %vm441, %v433, 0
    %v446 = vsel %vm441, %v393, 0
    %v449 = vsel %vm441, %v394, 0
    %v452 = vsel %vm441, %v395, 0
    %v455 = vsel %vm441, %v396, 0
    %v458 = vsel %vm441, %v397, 0
    %v461 = vsel %vm441, %v398, 0
    %v464 = vsel %vm441, %v399, 0
    %v467 = vsel %vm441, %v400, 0
    %469 = vmatprep.subr.bf16.mxu0 0
    %470 = vmatpush1.bf16.xpose.msra.mxu0 %v467
    %471 = vmatprep.subr.bf16.mxu0 0
    %472 = vmatpush1.bf16.xpose.msra.mxu0 %v464
    %473 = vmatprep.subr.bf16.mxu0 0
    %474 = vmatpush1.bf16.xpose.msra.mxu0 %v461
    %475 = vmatprep.subr.bf16.mxu0 0
    %476 = vmatpush1.bf16.xpose.msra.mxu0 %v458
    %477 = vmatprep.subr.bf16.mxu0 0
    %478 = vmatpush1.bf16.xpose.msra.mxu0 %v455
    %479 = vmatprep.subr.bf16.mxu0 0
    %480 = vmatpush1.bf16.xpose.msra.mxu0 %v452
    %481 = vmatprep.subr.bf16.mxu0 0
    %482 = vmatpush1.bf16.xpose.msra.mxu0 %v449
    %483 = vmatprep.subr.bf16.mxu0 0
    %484 = vmatpush1.bf16.xpose.msra.mxu0 %v446
    %485 = vmatprep.subr.bf16.mxu0 0
    %486 = vmatpush2.bf16.xpose.msra.mxu0 0
    %487 = vmatprep.subr.bf16.mxu0 0
    %488 = vmatpush2.bf16.xpose.msra.mxu0 0
    %489 = vmatprep.subr.bf16.mxu0 0
    %490 = vmatpush2.bf16.xpose.msra.mxu0 0
    %491 = vmatprep.subr.bf16.mxu0 0
    %492 = vmatpush2.bf16.xpose.msra.mxu0 0
    %493 = vmatprep.subr.bf16.mxu0 0
    %494 = vmatpush2.bf16.xpose.msra.mxu0 0
    %495 = vmatprep.subr.bf16.mxu0 0
    %496 = vmatpush2.bf16.xpose.msra.mxu0 0
    %497 = vmatprep.subr.bf16.mxu0 0
    %498 = vmatpush2.bf16.xpose.msra.mxu0 0
    %499 = vmatprep.subr.bf16.mxu0 0
    %500 = vmatpush2.bf16.xpose.msra.mxu0 0
    %501 = vmatprep.mubr.bf16.mxu0 0
    %502 = vmatmul.mubr.bf16.gmra.mxu0 %v443
    %v503 = vpop.f32.mrf.mxu0
    %v504 = vadd.f32 0.0, %v503
    %v505 = vpop.f32.mrf.mxu0
    %v506 = vpop.f32.mrf.mxu0
    %v507 = vpop.f32.mrf.mxu0
    %508 = vdwg.mxu0
    %v510 = vrot.slane %v504, 1
    %v512 = vrot.slane %v504, 2
    %v514 = vrot.slane %v504, 3
    %v516 = vlaneseq
    %v517 = vshrl.u32 %v516, 7
    %v518 = vsub.s32 0, %v517
    %v519 = vrot.slane %v504, %v518
    %v520 = vlaneseq
    %v521 = vshrl.u32 %v520, 7
    %v522 = vsub.s32 0, %v521
    %v523 = vrot.slane %v510, %v522
    %v524 = vlaneseq
    %v525 = vshrl.u32 %v524, 7
    %v526 = vsub.s32 0, %v525
    %v527 = vrot.slane %v512, %v526
    %v528 = vlaneseq
    %v529 = vshrl.u32 %v528, 7
    %v530 = vsub.s32 0, %v529
    %v531 = vrot.slane %v514, %v530
    %v540 = vunpack.c.l.b16 %v401
    %v541 = vunpack.c.h.b16 %v401
    %v542 = vunpack.c.l.b16 %v402
    %v543 = vunpack.c.h.b16 %v402
    %v544 = vunpack.c.l.b16 %v403
    %v545 = vunpack.c.h.b16 %v403
    %v546 = vunpack.c.l.b16 %v404
    %v547 = vunpack.c.h.b16 %v404
    %v548 = vunpack.c.l.b16 %v405
    %v549 = vunpack.c.h.b16 %v405
    %v550 = vunpack.c.l.b16 %v406
    %v551 = vunpack.c.h.b16 %v406
    %v552 = vunpack.c.l.b16 %v407
    %v553 = vunpack.c.h.b16 %v407
    %v554 = vunpack.c.l.b16 %v408
    %v555 = vunpack.c.h.b16 %v408
    %v556 = vpack.c.b16 %v544, %v540
    %v557 = vpack.c.b16 %v545, %v541
    %v558 = vpack.c.b16 %v546, %v542
    %v559 = vpack.c.b16 %v547, %v543
    %v560 = vpack.c.b16 %v552, %v548
    %v561 = vpack.c.b16 %v553, %v549
    %v562 = vpack.c.b16 %v554, %v550
    %v563 = vpack.c.b16 %v555, %v551
    %572 = vmatprep.subr.bf16.mxu0 0
    %573 = vmatpush1.bf16.msra.mxu0 0
    %574 = vmatprep.subr.bf16.mxu0 0
    %575 = vmatpush1.bf16.msra.mxu0 0
    %576 = vmatprep.subr.bf16.mxu0 0
    %577 = vmatpush1.bf16.msra.mxu0 0
    %578 = vmatprep.subr.bf16.mxu0 0
    %579 = vmatpush1.bf16.msra.mxu0 0
    %580 = vmatprep.subr.bf16.mxu0 0
    %581 = vmatpush1.bf16.msra.mxu0 0
    %582 = vmatprep.subr.bf16.mxu0 0
    %583 = vmatpush1.bf16.msra.mxu0 0
    %584 = vmatprep.subr.bf16.mxu0 %v561
    %585 = vmatpush1.bf16.msra.mxu0 %v560
    %586 = vmatprep.subr.bf16.mxu0 %v557
    %587 = vmatpush1.bf16.msra.mxu0 %v556
    %588 = vmatprep.subr.bf16.mxu0 0
    %589 = vmatpush2.bf16.msra.mxu0 0
    %590 = vmatprep.subr.bf16.mxu0 0
    %591 = vmatpush2.bf16.msra.mxu0 0
    %592 = vmatprep.subr.bf16.mxu0 0
    %593 = vmatpush2.bf16.msra.mxu0 0
    %594 = vmatprep.subr.bf16.mxu0 0
    %595 = vmatpush2.bf16.msra.mxu0 0
    %596 = vmatprep.subr.bf16.mxu0 0
    %597 = vmatpush2.bf16.msra.mxu0 0
    %598 = vmatprep.subr.bf16.mxu0 0
    %599 = vmatpush2.bf16.msra.mxu0 0
    %600 = vmatprep.subr.bf16.mxu0 0
    %601 = vmatpush2.bf16.msra.mxu0 0
    %602 = vmatprep.subr.bf16.mxu0 0
    %603 = vmatpush2.bf16.msra.mxu0 0
    %604 = vmatprep.mubr.bf16.mxu0 0
    %605 = vmatmul.mubr.bf16.gmra.mxu0 %v446
    %v606 = vpop.f32.mrf.mxu0
    %v607 = vadd.f32 %v519, %v606
    %v608 = vpop.f32.mrf.mxu0
    %v609 = vadd.f32 %v523, %v608
    %v610 = vpop.f32.mrf.mxu0
    %v611 = vadd.f32 %v519, %v610
    %v612 = vpop.f32.mrf.mxu0
    %v613 = vadd.f32 %v523, %v612
    %614 = vmatprep.mubr.bf16.mxu0 0
    %615 = vmatmul.mubr.bf16.gmra.mxu0 %v449
    %v616 = vpop.f32.mrf.mxu0
    %v617 = vadd.f32 %v519, %v616
    %v618 = vpop.f32.mrf.mxu0
    %v619 = vadd.f32 %v523, %v618
    %v620 = vpop.f32.mrf.mxu0
    %v621 = vadd.f32 %v519, %v620
    %v622 = vpop.f32.mrf.mxu0
    %v623 = vadd.f32 %v523, %v622
    %624 = vmatprep.mubr.bf16.mxu0 0
    %625 = vmatmul.mubr.bf16.gmra.mxu0 %v452
    %v626 = vpop.f32.mrf.mxu0
    %v627 = vadd.f32 %v519, %v626
    %v628 = vpop.f32.mrf.mxu0
    %v629 = vadd.f32 %v523, %v628
    %v630 = vpop.f32.mrf.mxu0
    %v631 = vadd.f32 %v519, %v630
    %v632 = vpop.f32.mrf.mxu0
    %v633 = vadd.f32 %v523, %v632
    %634 = vmatprep.mubr.bf16.mxu0 0
    %635 = vmatmul.mubr.bf16.gmra.mxu0 %v455
    %v636 = vpop.f32.mrf.mxu0
    %v637 = vadd.f32 %v519, %v636
    %v638 = vpop.f32.mrf.mxu0
    %v639 = vadd.f32 %v523, %v638
    %v640 = vpop.f32.mrf.mxu0
    %v641 = vadd.f32 %v519, %v640
    %v642 = vpop.f32.mrf.mxu0
    %v643 = vadd.f32 %v523, %v642
    %644 = vmatprep.mubr.bf16.mxu0 0
    %645 = vmatmul.mubr.bf16.gmra.mxu0 %v458
    %v646 = vpop.f32.mrf.mxu0
    %v647 = vadd.f32 %v519, %v646
    %v648 = vpop.f32.mrf.mxu0
    %v649 = vadd.f32 %v523, %v648
    %v650 = vpop.f32.mrf.mxu0
    %v651 = vadd.f32 %v519, %v650
    %v652 = vpop.f32.mrf.mxu0
    %v653 = vadd.f32 %v523, %v652
    %654 = vmatprep.mubr.bf16.mxu0 0
    %655 = vmatmul.mubr.bf16.gmra.mxu0 %v461
    %v656 = vpop.f32.mrf.mxu0
    %v657 = vadd.f32 %v519, %v656
    %v658 = vpop.f32.mrf.mxu0
    %v659 = vadd.f32 %v523, %v658
    %v660 = vpop.f32.mrf.mxu0
    %v661 = vadd.f32 %v519, %v660
    %v662 = vpop.f32.mrf.mxu0
    %v663 = vadd.f32 %v523, %v662
    %664 = vmatprep.mubr.bf16.mxu0 0
    %665 = vmatmul.mubr.bf16.gmra.mxu0 %v464
    %v666 = vpop.f32.mrf.mxu0
    %v667 = vadd.f32 %v519, %v666
    %v668 = vpop.f32.mrf.mxu0
    %v669 = vadd.f32 %v523, %v668
    %v670 = vpop.f32.mrf.mxu0
    %v671 = vadd.f32 %v519, %v670
    %v672 = vpop.f32.mrf.mxu0
    %v673 = vadd.f32 %v523, %v672
    %674 = vmatprep.mubr.bf16.mxu0 0
    %675 = vmatmul.mubr.bf16.gmra.mxu0 %v467
    %v676 = vpop.f32.mrf.mxu0
    %v677 = vadd.f32 %v519, %v676
    %v678 = vpop.f32.mrf.mxu0
    %v679 = vadd.f32 %v523, %v678
    %v680 = vpop.f32.mrf.mxu0
    %v681 = vadd.f32 %v519, %v680
    %v682 = vpop.f32.mrf.mxu0
    %v683 = vadd.f32 %v523, %v682
    %684 = vdwg.mxu0
    %685 = vmatprep.subr.bf16.mxu0 0
    %686 = vmatpush1.bf16.msra.mxu0 0
    %687 = vmatprep.subr.bf16.mxu0 0
    %688 = vmatpush1.bf16.msra.mxu0 0
    %689 = vmatprep.subr.bf16.mxu0 0
    %690 = vmatpush1.bf16.msra.mxu0 0
    %691 = vmatprep.subr.bf16.mxu0 0
    %692 = vmatpush1.bf16.msra.mxu0 0
    %693 = vmatprep.subr.bf16.mxu0 0
    %694 = vmatpush1.bf16.msra.mxu0 0
    %695 = vmatprep.subr.bf16.mxu0 0
    %696 = vmatpush1.bf16.msra.mxu0 0
    %697 = vmatprep.subr.bf16.mxu0 %v563
    %698 = vmatpush1.bf16.msra.mxu0 %v562
    %699 = vmatprep.subr.bf16.mxu0 %v559
    %700 = vmatpush1.bf16.msra.mxu0 %v558
    %701 = vmatprep.subr.bf16.mxu0 0
    %702 = vmatpush2.bf16.msra.mxu0 0
    %703 = vmatprep.subr.bf16.mxu0 0
    %704 = vmatpush2.bf16.msra.mxu0 0
    %705 = vmatprep.subr.bf16.mxu0 0
    %706 = vmatpush2.bf16.msra.mxu0 0
    %707 = vmatprep.subr.bf16.mxu0 0
    %708 = vmatpush2.bf16.msra.mxu0 0
    %709 = vmatprep.subr.bf16.mxu0 0
    %710 = vmatpush2.bf16.msra.mxu0 0
    %711 = vmatprep.subr.bf16.mxu0 0
    %712 = vmatpush2.bf16.msra.mxu0 0
    %713 = vmatprep.subr.bf16.mxu0 0
    %714 = vmatpush2.bf16.msra.mxu0 0
    %715 = vmatprep.subr.bf16.mxu0 0
    %716 = vmatpush2.bf16.msra.mxu0 0
    %717 = vmatprep.mubr.bf16.mxu0 0
    %718 = vmatmul.mubr.bf16.gmra.mxu0 %v446
    %v719 = vpop.f32.mrf.mxu0
    %v720 = vadd.f32 %v527, %v719
    %v721 = vpop.f32.mrf.mxu0
    %v722 = vadd.f32 %v531, %v721
    %v723 = vpop.f32.mrf.mxu0
    %v724 = vadd.f32 %v527, %v723
    %v725 = vpop.f32.mrf.mxu0
    %v726 = vadd.f32 %v531, %v725
    %727 = vmatprep.mubr.bf16.mxu0 0
    %728 = vmatmul.mubr.bf16.gmra.mxu0 %v449
    %v729 = vpop.f32.mrf.mxu0
    %v730 = vadd.f32 %v527, %v729
    %v731 = vpop.f32.mrf.mxu0
    %v732 = vadd.f32 %v531, %v731
    %v733 = vpop.f32.mrf.mxu0
    %v734 = vadd.f32 %v527, %v733
    %v735 = vpop.f32.mrf.mxu0
    %v736 = vadd.f32 %v531, %v735
    %737 = vmatprep.mubr.bf16.mxu0 0
    %738 = vmatmul.mubr.bf16.gmra.mxu0 %v452
    %v739 = vpop.f32.mrf.mxu0
    %v740 = vadd.f32 %v527, %v739
    %v741 = vpop.f32.mrf.mxu0
    %v742 = vadd.f32 %v531, %v741
    %v743 = vpop.f32.mrf.mxu0
    %v744 = vadd.f32 %v527, %v743
    %v745 = vpop.f32.mrf.mxu0
    %v746 = vadd.f32 %v531, %v745
    %747 = vmatprep.mubr.bf16.mxu0 0
    %748 = vmatmul.mubr.bf16.gmra.mxu0 %v455
    %v749 = vpop.f32.mrf.mxu0
    %v750 = vadd.f32 %v527, %v749
    %v751 = vpop.f32.mrf.mxu0
    %v752 = vadd.f32 %v531, %v751
    %v753 = vpop.f32.mrf.mxu0
    %v754 = vadd.f32 %v527, %v753
    %v755 = vpop.f32.mrf.mxu0
    %v756 = vadd.f32 %v531, %v755
    %757 = vmatprep.mubr.bf16.mxu0 0
    %758 = vmatmul.mubr.bf16.gmra.mxu0 %v458
    %v759 = vpop.f32.mrf.mxu0
    %v760 = vadd.f32 %v527, %v759
    %v761 = vpop.f32.mrf.mxu0
    %v762 = vadd.f32 %v531, %v761
    %v763 = vpop.f32.mrf.mxu0
    %v764 = vadd.f32 %v527, %v763
    %v765 = vpop.f32.mrf.mxu0
    %v766 = vadd.f32 %v531, %v765
    %767 = vmatprep.mubr.bf16.mxu0 0
    %768 = vmatmul.mubr.bf16.gmra.mxu0 %v461
    %v769 = vpop.f32.mrf.mxu0
    %v770 = vadd.f32 %v527, %v769
    %v771 = vpop.f32.mrf.mxu0
    %v772 = vadd.f32 %v531, %v771
    %v773 = vpop.f32.mrf.mxu0
    %v774 = vadd.f32 %v527, %v773
    %v775 = vpop.f32.mrf.mxu0
    %v776 = vadd.f32 %v531, %v775
    %777 = vmatprep.mubr.bf16.mxu0 0
    %778 = vmatmul.mubr.bf16.gmra.mxu0 %v464
    %v779 = vpop.f32.mrf.mxu0
    %v780 = vadd.f32 %v527, %v779
    %v781 = vpop.f32.mrf.mxu0
    %v782 = vadd.f32 %v531, %v781
    %v783 = vpop.f32.mrf.mxu0
    %v784 = vadd.f32 %v527, %v783
    %v785 = vpop.f32.mrf.mxu0
    %v786 = vadd.f32 %v531, %v785
    %787 = vmatprep.mubr.bf16.mxu0 0
    %788 = vmatmul.mubr.bf16.gmra.mxu0 %v467
    %v789 = vpop.f32.mrf.mxu0
    %v790 = vadd.f32 %v527, %v789
    %v791 = vpop.f32.mrf.mxu0
    %v792 = vadd.f32 %v531, %v791
    %v793 = vpop.f32.mrf.mxu0
    %v794 = vadd.f32 %v527, %v793
    %v795 = vpop.f32.mrf.mxu0
    %v796 = vadd.f32 %v531, %v795
    %797 = vdwg.mxu0
    %vm798 = vcmp.gt.f32.partialorder %v607, 0.0
    %vm799 = vcmp.gt.f32.partialorder %v609, 0.0
    %vm800 = vcmp.gt.f32.partialorder %v720, 0.0
    %vm801 = vcmp.gt.f32.partialorder %v722, 0.0
    %vm802 = vcmp.gt.f32.partialorder %v611, 0.0
    %vm803 = vcmp.gt.f32.partialorder %v613, 0.0
    %vm804 = vcmp.gt.f32.partialorder %v724, 0.0
    %vm805 = vcmp.gt.f32.partialorder %v726, 0.0
    %vm806 = vcmp.gt.f32.partialorder %v617, 0.0
    %vm807 = vcmp.gt.f32.partialorder %v619, 0.0
    %vm808 = vcmp.gt.f32.partialorder %v730, 0.0
    %vm809 = vcmp.gt.f32.partialorder %v732, 0.0
    %vm810 = vcmp.gt.f32.partialorder %v621, 0.0
    %vm811 = vcmp.gt.f32.partialorder %v623, 0.0
    %vm812 = vcmp.gt.f32.partialorder %v734, 0.0
    %vm813 = vcmp.gt.f32.partialorder %v736, 0.0
    %vm814 = vcmp.gt.f32.partialorder %v627, 0.0
    %vm815 = vcmp.gt.f32.partialorder %v629, 0.0
    %vm816 = vcmp.gt.f32.partialorder %v740, 0.0
    %vm817 = vcmp.gt.f32.partialorder %v742, 0.0
    %vm818 = vcmp.gt.f32.partialorder %v631, 0.0
    %vm819 = vcmp.gt.f32.partialorder %v633, 0.0
    %vm820 = vcmp.gt.f32.partialorder %v744, 0.0
    %vm821 = vcmp.gt.f32.partialorder %v746, 0.0
    %vm822 = vcmp.gt.f32.partialorder %v637, 0.0
    %vm823 = vcmp.gt.f32.partialorder %v639, 0.0
    %vm824 = vcmp.gt.f32.partialorder %v750, 0.0
    %vm825 = vcmp.gt.f32.partialorder %v752, 0.0
    %vm826 = vcmp.gt.f32.partialorder %v641, 0.0
    %vm827 = vcmp.gt.f32.partialorder %v643, 0.0
    %vm828 = vcmp.gt.f32.partialorder %v754, 0.0
    %vm829 = vcmp.gt.f32.partialorder %v756, 0.0
    %vm830 = vcmp.gt.f32.partialorder %v647, 0.0
    %vm831 = vcmp.gt.f32.partialorder %v649, 0.0
    %vm832 = vcmp.gt.f32.partialorder %v760, 0.0
    %vm833 = vcmp.gt.f32.partialorder %v762, 0.0
    %vm834 = vcmp.gt.f32.partialorder %v651, 0.0
    %vm835 = vcmp.gt.f32.partialorder %v653, 0.0
    %vm836 = vcmp.gt.f32.partialorder %v764, 0.0
    %vm837 = vcmp.gt.f32.partialorder %v766, 0.0
    %vm838 = vcmp.gt.f32.partialorder %v657, 0.0
    %vm839 = vcmp.gt.f32.partialorder %v659, 0.0
    %vm840 = vcmp.gt.f32.partialorder %v770, 0.0
    %vm841 = vcmp.gt.f32.partialorder %v772, 0.0
    %vm842 = vcmp.gt.f32.partialorder %v661, 0.0
    %vm843 = vcmp.gt.f32.partialorder %v663, 0.0
    %vm844 = vcmp.gt.f32.partialorder %v774, 0.0
    %vm845 = vcmp.gt.f32.partialorder %v776, 0.0
    %vm846 = vcmp.gt.f32.partialorder %v667, 0.0
    %vm847 = vcmp.gt.f32.partialorder %v669, 0.0
    %vm848 = vcmp.gt.f32.partialorder %v780, 0.0
    %vm849 = vcmp.gt.f32.partialorder %v782, 0.0
    %vm850 = vcmp.gt.f32.partialorder %v671, 0.0
    %vm851 = vcmp.gt.f32.partialorder %v673, 0.0
    %vm852 = vcmp.gt.f32.partialorder %v784, 0.0
    %vm853 = vcmp.gt.f32.partialorder %v786, 0.0
    %vm854 = vcmp.gt.f32.partialorder %v677, 0.0
    %vm855 = vcmp.gt.f32.partialorder %v679, 0.0
    %vm856 = vcmp.gt.f32.partialorder %v790, 0.0
    %vm857 = vcmp.gt.f32.partialorder %v792, 0.0
    %vm858 = vcmp.gt.f32.partialorder %v681, 0.0
    %vm859 = vcmp.gt.f32.partialorder %v683, 0.0
    %vm860 = vcmp.gt.f32.partialorder %v794, 0.0
    %vm861 = vcmp.gt.f32.partialorder %v796, 0.0
    %v862 = vmul.f32 %v607, 0.2
    %v863 = vmul.f32 %v609, 0.2
    %v864 = vmul.f32 %v720, 0.2
    %v865 = vmul.f32 %v722, 0.2
    %v866 = vmul.f32 %v611, 0.2
    %v867 = vmul.f32 %v613, 0.2
    %v868 = vmul.f32 %v724, 0.2
    %v869 = vmul.f32 %v726, 0.2
    %v870 = vmul.f32 %v617, 0.2
    %v871 = vmul.f32 %v619, 0.2
    %v872 = vmul.f32 %v730, 0.2
    %v873 = vmul.f32 %v732, 0.2
    %v874 = vmul.f32 %v621, 0.2
    %v875 = vmul.f32 %v623, 0.2
    %v876 = vmul.f32 %v734, 0.2
    %v877 = vmul.f32 %v736, 0.2
    %v878 = vmul.f32 %v627, 0.2
    %v879 = vmul.f32 %v629, 0.2
    %v880 = vmul.f32 %v740, 0.2
    %v881 = vmul.f32 %v742, 0.2
    %v882 = vmul.f32 %v631, 0.2
    %v883 = vmul.f32 %v633, 0.2
    %v884 = vmul.f32 %v744, 0.2
    %v885 = vmul.f32 %v746, 0.2
    %v886 = vmul.f32 %v637, 0.2
    %v887 = vmul.f32 %v639, 0.2
    %v888 = vmul.f32 %v750, 0.2
    %v889 = vmul.f32 %v752, 0.2
    %v890 = vmul.f32 %v641, 0.2
    %v891 = vmul.f32 %v643, 0.2
    %v892 = vmul.f32 %v754, 0.2
    %v893 = vmul.f32 %v756, 0.2
    %v894 = vmul.f32 %v647, 0.2
    %v895 = vmul.f32 %v649, 0.2
    %v896 = vmul.f32 %v760, 0.2
    %v897 = vmul.f32 %v762, 0.2
    %v898 = vmul.f32 %v651, 0.2
    %v899 = vmul.f32 %v653, 0.2
    %v900 = vmul.f32 %v764, 0.2
    %v901 = vmul.f32 %v766, 0.2
    %v902 = vmul.f32 %v657, 0.2
    %v903 = vmul.f32 %v659, 0.2
    %v904 = vmul.f32 %v770, 0.2
    %v905 = vmul.f32 %v772, 0.2
    %v906 = vmul.f32 %v661, 0.2
    %v907 = vmul.f32 %v663, 0.2
    %v908 = vmul.f32 %v774, 0.2
    %v909 = vmul.f32 %v776, 0.2
    %v910 = vmul.f32 %v667, 0.2
    %v911 = vmul.f32 %v669, 0.2
    %v912 = vmul.f32 %v780, 0.2
    %v913 = vmul.f32 %v782, 0.2
    %v914 = vmul.f32 %v671, 0.2
    %v915 = vmul.f32 %v673, 0.2
    %v916 = vmul.f32 %v784, 0.2
    %v917 = vmul.f32 %v786, 0.2
    %v918 = vmul.f32 %v677, 0.2
    %v919 = vmul.f32 %v679, 0.2
    %v920 = vmul.f32 %v790, 0.2
    %v921 = vmul.f32 %v792, 0.2
    %v922 = vmul.f32 %v681, 0.2
    %v923 = vmul.f32 %v683, 0.2
    %v924 = vmul.f32 %v794, 0.2
    %v925 = vmul.f32 %v796, 0.2
    %v926 = vsel %vm798, %v607, %v862
    %v927 = vsel %vm799, %v609, %v863
    %v928 = vsel %vm800, %v720, %v864
    %v929 = vsel %vm801, %v722, %v865
    %v930 = vsel %vm802, %v611, %v866
    %v931 = vsel %vm803, %v613, %v867
    %v932 = vsel %vm804, %v724, %v868
    %v933 = vsel %vm805, %v726, %v869
    %v934 = vsel %vm806, %v617, %v870
    %v935 = vsel %vm807, %v619, %v871
    %v936 = vsel %vm808, %v730, %v872
    %v937 = vsel %vm809, %v732, %v873
    %v938 = vsel %vm810, %v621, %v874
    %v939 = vsel %vm811, %v623, %v875
    %v940 = vsel %vm812, %v734, %v876
    %v941 = vsel %vm813, %v736, %v877
    %v942 = vsel %vm814, %v627, %v878
    %v943 = vsel %vm815, %v629, %v879
    %v944 = vsel %vm816, %v740, %v880
    %v945 = vsel %vm817, %v742, %v881
    %v946 = vsel %vm818, %v631, %v882
    %v947 = vsel %vm819, %v633, %v883
    %v948 = vsel %vm820, %v744, %v884
    %v949 = vsel %vm821, %v746, %v885
    %v950 = vsel %vm822, %v637, %v886
    %v951 = vsel %vm823, %v639, %v887
    %v952 = vsel %vm824, %v750, %v888
    %v953 = vsel %vm825, %v752, %v889
    %v954 = vsel %vm826, %v641, %v890
    %v955 = vsel %vm827, %v643, %v891
    %v956 = vsel %vm828, %v754, %v892
    %v957 = vsel %vm829, %v756, %v893
    %v958 = vsel %vm830, %v647, %v894
    %v959 = vsel %vm831, %v649, %v895
    %v960 = vsel %vm832, %v760, %v896
    %v961 = vsel %vm833, %v762, %v897
    %v962 = vsel %vm834, %v651, %v898
    %v963 = vsel %vm835, %v653, %v899
    %v964 = vsel %vm836, %v764, %v900
    %v965 = vsel %vm837, %v766, %v901
    %v966 = vsel %vm838, %v657, %v902
    %v967 = vsel %vm839, %v659, %v903
    %v968 = vsel %vm840, %v770, %v904
    %v969 = vsel %vm841, %v772, %v905
    %v970 = vsel %vm842, %v661, %v906
    %v971 = vsel %vm843, %v663, %v907
    %v972 = vsel %vm844, %v774, %v908
    %v973 = vsel %vm845, %v776, %v909
    %v974 = vsel %vm846, %v667, %v910
    %v975 = vsel %vm847, %v669, %v911
    %v976 = vsel %vm848, %v780, %v912
    %v977 = vsel %vm849, %v782, %v913
    %v978 = vsel %vm850, %v671, %v914
    %v979 = vsel %vm851, %v673, %v915
    %v980 = vsel %vm852, %v784, %v916
    %v981 = vsel %vm853, %v786, %v917
    %v982 = vsel %vm854, %v677, %v918
    %v983 = vsel %vm855, %v679, %v919
    %v984 = vsel %vm856, %v790, %v920
    %v985 = vsel %vm857, %v792, %v921
    %v986 = vsel %vm858, %v681, %v922
    %v987 = vsel %vm859, %v683, %v923
    %v988 = vsel %vm860, %v794, %v924
    %v989 = vsel %vm861, %v796, %v925
    %v990 = vmax.f32 %v926, %v927
    %v991 = vmax.f32 %v990, %v928
    %v992 = vmax.f32 %v991, %v929
    %993 = vmax.xlane.f32.xlu0 %v992
    %v994 = vpop.xlane.xlu0 %993
    %v995 = vmax.f32 %v930, %v931
    %v996 = vmax.f32 %v995, %v932
    %v997 = vmax.f32 %v996, %v933
    %998 = vmax.xlane.f32.xlu0 %v997
    %v999 = vpop.xlane.xlu0 %998
    %v1000 = vmax.f32 %v934, %v935
    %v1001 = vmax.f32 %v1000, %v936
    %v1002 = vmax.f32 %v1001, %v937
    %1003 = vmax.xlane.f32.xlu0 %v1002
    %v1004 = vpop.xlane.xlu0 %1003
    %v1005 = vmax.f32 %v938, %v939
    %v1006 = vmax.f32 %v1005, %v940
    %v1007 = vmax.f32 %v1006, %v941
    %1008 = vmax.xlane.f32.xlu0 %v1007
    %v1009 = vpop.xlane.xlu0 %1008
    %v1010 = vmax.f32 %v942, %v943
    %v1011 = vmax.f32 %v1010, %v944
    %v1012 = vmax.f32 %v1011, %v945
    %1013 = vmax.xlane.f32.xlu0 %v1012
    %v1014 = vpop.xlane.xlu0 %1013
    %v1015 = vmax.f32 %v946, %v947
    %v1016 = vmax.f32 %v1015, %v948
    %v1017 = vmax.f32 %v1016, %v949
    %1018 = vmax.xlane.f32.xlu0 %v1017
    %v1019 = vpop.xlane.xlu0 %1018
    %v1020 = vmax.f32 %v950, %v951
    %v1021 = vmax.f32 %v1020, %v952
    %v1022 = vmax.f32 %v1021, %v953
    %1023 = vmax.xlane.f32.xlu0 %v1022
    %v1024 = vpop.xlane.xlu0 %1023
    %v1025 = vmax.f32 %v954, %v955
    %v1026 = vmax.f32 %v1025, %v956
    %v1027 = vmax.f32 %v1026, %v957
    %1028 = vmax.xlane.f32.xlu0 %v1027
    %v1029 = vpop.xlane.xlu0 %1028
    %v1030 = vmax.f32 %v958, %v959
    %v1031 = vmax.f32 %v1030, %v960
    %v1032 = vmax.f32 %v1031, %v961
    %1033 = vmax.xlane.f32.xlu0 %v1032
    %v1034 = vpop.xlane.xlu0 %1033
    %v1035 = vmax.f32 %v962, %v963
    %v1036 = vmax.f32 %v1035, %v964
    %v1037 = vmax.f32 %v1036, %v965
    %1038 = vmax.xlane.f32.xlu0 %v1037
    %v1039 = vpop.xlane.xlu0 %1038
    %v1040 = vmax.f32 %v966, %v967
    %v1041 = vmax.f32 %v1040, %v968
    %v1042 = vmax.f32 %v1041, %v969
    %1043 = vmax.xlane.f32.xlu0 %v1042
    %v1044 = vpop.xlane.xlu0 %1043
    %v1045 = vmax.f32 %v970, %v971
    %v1046 = vmax.f32 %v1045, %v972
    %v1047 = vmax.f32 %v1046, %v973
    %1048 = vmax.xlane.f32.xlu0 %v1047
    %v1049 = vpop.xlane.xlu0 %1048
    %v1050 = vmax.f32 %v974, %v975
    %v1051 = vmax.f32 %v1050, %v976
    %v1052 = vmax.f32 %v1051, %v977
    %1053 = vmax.xlane.f32.xlu0 %v1052
    %v1054 = vpop.xlane.xlu0 %1053
    %v1055 = vmax.f32 %v978, %v979
    %v1056 = vmax.f32 %v1055, %v980
    %v1057 = vmax.f32 %v1056, %v981
    %1058 = vmax.xlane.f32.xlu0 %v1057
    %v1059 = vpop.xlane.xlu0 %1058
    %v1060 = vmax.f32 %v982, %v983
    %v1061 = vmax.f32 %v1060, %v984
    %v1062 = vmax.f32 %v1061, %v985
    %1063 = vmax.xlane.f32.xlu0 %v1062
    %v1064 = vpop.xlane.xlu0 %1063
    %v1065 = vmax.f32 %v986, %v987
    %v1066 = vmax.f32 %v1065, %v988
    %v1067 = vmax.f32 %v1066, %v989
    %1068 = vmax.xlane.f32.xlu0 %v1067
    %v1069 = vpop.xlane.xlu0 %1068
    %vm1070 = vcmp.gt.f32.partialorder %v94, 0.0
    %vm1071 = vcmp.gt.f32.partialorder %v95, 0.0
    %vm1072 = vcmp.gt.f32.partialorder %v96, 0.0
    %vm1073 = vcmp.gt.f32.partialorder %v97, 0.0
    %vm1074 = vcmp.gt.f32.partialorder %v98, 0.0
    %vm1075 = vcmp.gt.f32.partialorder %v99, 0.0
    %vm1076 = vcmp.gt.f32.partialorder %v100, 0.0
    %vm1077 = vcmp.gt.f32.partialorder %v101, 0.0
    %vm1078 = vcmp.gt.f32.partialorder %v102, 0.0
    %vm1079 = vcmp.gt.f32.partialorder %v103, 0.0
    %vm1080 = vcmp.gt.f32.partialorder %v104, 0.0
    %vm1081 = vcmp.gt.f32.partialorder %v105, 0.0
    %vm1082 = vcmp.gt.f32.partialorder %v106, 0.0
    %vm1083 = vcmp.gt.f32.partialorder %v107, 0.0
    %vm1084 = vcmp.gt.f32.partialorder %v108, 0.0
    %vm1085 = vcmp.gt.f32.partialorder %v109, 0.0
    %v1086 = vsub.f32 %v926, %v994
    %v1087 = vsub.f32 %v927, %v994
    %v1088 = vsub.f32 %v928, %v994
    %v1089 = vsub.f32 %v929, %v994
    %v1090 = vsub.f32 %v930, %v999
    %v1091 = vsub.f32 %v931, %v999
    %v1092 = vsub.f32 %v932, %v999
    %v1093 = vsub.f32 %v933, %v999
    %v1094 = vsub.f32 %v934, %v1004
    %v1095 = vsub.f32 %v935, %v1004
    %v1096 = vsub.f32 %v936, %v1004
    %v1097 = vsub.f32 %v937, %v1004
    %v1098 = vsub.f32 %v938, %v1009
    %v1099 = vsub.f32 %v939, %v1009
    %v1100 = vsub.f32 %v940, %v1009
    %v1101 = vsub.f32 %v941, %v1009
    %v1102 = vsub.f32 %v942, %v1014
    %v1103 = vsub.f32 %v943, %v1014
    %v1104 = vsub.f32 %v944, %v1014
    %v1105 = vsub.f32 %v945, %v1014
    %v1106 = vsub.f32 %v946, %v1019
    %v1107 = vsub.f32 %v947, %v1019
    %v1108 = vsub.f32 %v948, %v1019
    %v1109 = vsub.f32 %v949, %v1019
    %v1110 = vsub.f32 %v950, %v1024
    %v1111 = vsub.f32 %v951, %v1024
    %v1112 = vsub.f32 %v952, %v1024
    %v1113 = vsub.f32 %v953, %v1024
    %v1114 = vsub.f32 %v954, %v1029
    %v1115 = vsub.f32 %v955, %v1029
    %v1116 = vsub.f32 %v956, %v1029
    %v1117 = vsub.f32 %v957, %v1029
    %v1118 = vsub.f32 %v958, %v1034
    %v1119 = vsub.f32 %v959, %v1034
    %v1120 = vsub.f32 %v960, %v1034
    %v1121 = vsub.f32 %v961, %v1034
    %v1122 = vsub.f32 %v962, %v1039
    %v1123 = vsub.f32 %v963, %v1039
    %v1124 = vsub.f32 %v964, %v1039
    %v1125 = vsub.f32 %v965, %v1039
    %v1126 = vsub.f32 %v966, %v1044
    %v1127 = vsub.f32 %v967, %v1044
    %v1128 = vsub.f32 %v968, %v1044
    %v1129 = vsub.f32 %v969, %v1044
    %v1130 = vsub.f32 %v970, %v1049
    %v1131 = vsub.f32 %v971, %v1049
    %v1132 = vsub.f32 %v972, %v1049
    %v1133 = vsub.f32 %v973, %v1049
    %v1134 = vsub.f32 %v974, %v1054
    %v1135 = vsub.f32 %v975, %v1054
    %v1136 = vsub.f32 %v976, %v1054
    %v1137 = vsub.f32 %v977, %v1054
    %v1138 = vsub.f32 %v978, %v1059
    %v1139 = vsub.f32 %v979, %v1059
    %v1140 = vsub.f32 %v980, %v1059
    %v1141 = vsub.f32 %v981, %v1059
    %v1142 = vsub.f32 %v982, %v1064
    %v1143 = vsub.f32 %v983, %v1064
    %v1144 = vsub.f32 %v984, %v1064
    %v1145 = vsub.f32 %v985, %v1064
    %v1146 = vsub.f32 %v986, %v1069
    %v1147 = vsub.f32 %v987, %v1069
    %v1148 = vsub.f32 %v988, %v1069
    %v1149 = vsub.f32 %v989, %v1069
    %v1150 = vmul.f32 %v1086, 1.442695
    %v1151 = vpow.pop %v1150
    %v1152 = vmul.f32 %v1087, 1.442695
    %v1153 = vpow.pop %v1152
    %v1154 = vmul.f32 %v1088, 1.442695
    %v1155 = vpow.pop %v1154
    %v1156 = vmul.f32 %v1089, 1.442695
    %v1157 = vpow.pop %v1156
    %v1158 = vmul.f32 %v1090, 1.442695
    %v1159 = vpow.pop %v1158
    %v1160 = vmul.f32 %v1091, 1.442695
    %v1161 = vpow.pop %v1160
    %v1162 = vmul.f32 %v1092, 1.442695
    %v1163 = vpow.pop %v1162
    %v1164 = vmul.f32 %v1093, 1.442695
    %v1165 = vpow.pop %v1164
    %v1166 = vmul.f32 %v1094, 1.442695
    %v1167 = vpow.pop %v1166
    %v1168 = vmul.f32 %v1095, 1.442695
    %v1169 = vpow.pop %v1168
    %v1170 = vmul.f32 %v1096, 1.442695
    %v1171 = vpow.pop %v1170
    %v1172 = vmul.f32 %v1097, 1.442695
    %v1173 = vpow.pop %v1172
    %v1174 = vmul.f32 %v1098, 1.442695
    %v1175 = vpow.pop %v1174
    %v1176 = vmul.f32 %v1099, 1.442695
    %v1177 = vpow.pop %v1176
    %v1178 = vmul.f32 %v1100, 1.442695
    %v1179 = vpow.pop %v1178
    %v1180 = vmul.f32 %v1101, 1.442695
    %v1181 = vpow.pop %v1180
    %v1182 = vmul.f32 %v1102, 1.442695
    %v1183 = vpow.pop %v1182
    %v1184 = vmul.f32 %v1103, 1.442695
    %v1185 = vpow.pop %v1184
    %v1186 = vmul.f32 %v1104, 1.442695
    %v1187 = vpow.pop %v1186
    %v1188 = vmul.f32 %v1105, 1.442695
    %v1189 = vpow.pop %v1188
    %v1190 = vmul.f32 %v1106, 1.442695
    %v1191 = vpow.pop %v1190
    %v1192 = vmul.f32 %v1107, 1.442695
    %v1193 = vpow.pop %v1192
    %v1194 = vmul.f32 %v1108, 1.442695
    %v1195 = vpow.pop %v1194
    %v1196 = vmul.f32 %v1109, 1.442695
    %v1197 = vpow.pop %v1196
    %v1198 = vmul.f32 %v1110, 1.442695
    %v1199 = vpow.pop %v1198
    %v1200 = vmul.f32 %v1111, 1.442695
    %v1201 = vpow.pop %v1200
    %v1202 = vmul.f32 %v1112, 1.442695
    %v1203 = vpow.pop %v1202
    %v1204 = vmul.f32 %v1113, 1.442695
    %v1205 = vpow.pop %v1204
    %v1206 = vmul.f32 %v1114, 1.442695
    %v1207 = vpow.pop %v1206
    %v1208 = vmul.f32 %v1115, 1.442695
    %v1209 = vpow.pop %v1208
    %v1210 = vmul.f32 %v1116, 1.442695
    %v1211 = vpow.pop %v1210
    %v1212 = vmul.f32 %v1117, 1.442695
    %v1213 = vpow.pop %v1212
    %v1214 = vmul.f32 %v1118, 1.442695
    %v1215 = vpow.pop %v1214
    %v1216 = vmul.f32 %v1119, 1.442695
    %v1217 = vpow.pop %v1216
    %v1218 = vmul.f32 %v1120, 1.442695
    %v1219 = vpow.pop %v1218
    %v1220 = vmul.f32 %v1121, 1.442695
    %v1221 = vpow.pop %v1220
    %v1222 = vmul.f32 %v1122, 1.442695
    %v1223 = vpow.pop %v1222
    %v1224 = vmul.f32 %v1123, 1.442695
    %v1225 = vpow.pop %v1224
    %v1226 = vmul.f32 %v1124, 1.442695
    %v1227 = vpow.pop %v1226
    %v1228 = vmul.f32 %v1125, 1.442695
    %v1229 = vpow.pop %v1228
    %v1230 = vmul.f32 %v1126, 1.442695
    %v1231 = vpow.pop %v1230
    %v1232 = vmul.f32 %v1127, 1.442695
    %v1233 = vpow.pop %v1232
    %v1234 = vmul.f32 %v1128, 1.442695
    %v1235 = vpow.pop %v1234
    %v1236 = vmul.f32 %v1129, 1.442695
    %v1237 = vpow.pop %v1236
    %v1238 = vmul.f32 %v1130, 1.442695
    %v1239 = vpow.pop %v1238
    %v1240 = vmul.f32 %v1131, 1.442695
    %v1241 = vpow.pop %v1240
    %v1242 = vmul.f32 %v1132, 1.442695
    %v1243 = vpow.pop %v1242
    %v1244 = vmul.f32 %v1133, 1.442695
    %v1245 = vpow.pop %v1244
    %v1246 = vmul.f32 %v1134, 1.442695
    %v1247 = vpow.pop %v1246
    %v1248 = vmul.f32 %v1135, 1.442695
    %v1249 = vpow.pop %v1248
    %v1250 = vmul.f32 %v1136, 1.442695
    %v1251 = vpow.pop %v1250
    %v1252 = vmul.f32 %v1137, 1.442695
    %v1253 = vpow.pop %v1252
    %v1254 = vmul.f32 %v1138, 1.442695
    %v1255 = vpow.pop %v1254
    %v1256 = vmul.f32 %v1139, 1.442695
    %v1257 = vpow.pop %v1256
    %v1258 = vmul.f32 %v1140, 1.442695
    %v1259 = vpow.pop %v1258
    %v1260 = vmul.f32 %v1141, 1.442695
    %v1261 = vpow.pop %v1260
    %v1262 = vmul.f32 %v1142, 1.442695
    %v1263 = vpow.pop %v1262
    %v1264 = vmul.f32 %v1143, 1.442695
    %v1265 = vpow.pop %v1264
    %v1266 = vmul.f32 %v1144, 1.442695
    %v1267 = vpow.pop %v1266
    %v1268 = vmul.f32 %v1145, 1.442695
    %v1269 = vpow.pop %v1268
    %v1270 = vmul.f32 %v1146, 1.442695
    %v1271 = vpow.pop %v1270
    %v1272 = vmul.f32 %v1147, 1.442695
    %v1273 = vpow.pop %v1272
    %v1274 = vmul.f32 %v1148, 1.442695
    %v1275 = vpow.pop %v1274
    %v1276 = vmul.f32 %v1149, 1.442695
    %v1277 = vpow.pop %v1276
    %v1278 = vsel %vm1070, %v1151, 0.0
    %v1279 = vsel %vm1070, %v1153, 0.0
    %v1280 = vsel %vm1070, %v1155, 0.0
    %v1281 = vsel %vm1070, %v1157, 0.0
    %v1282 = vsel %vm1071, %v1159, 0.0
    %v1283 = vsel %vm1071, %v1161, 0.0
    %v1284 = vsel %vm1071, %v1163, 0.0
    %v1285 = vsel %vm1071, %v1165, 0.0
    %v1286 = vsel %vm1072, %v1167, 0.0
    %v1287 = vsel %vm1072, %v1169, 0.0
    %v1288 = vsel %vm1072, %v1171, 0.0
    %v1289 = vsel %vm1072, %v1173, 0.0
    %v1290 = vsel %vm1073, %v1175, 0.0
    %v1291 = vsel %vm1073, %v1177, 0.0
    %v1292 = vsel %vm1073, %v1179, 0.0
    %v1293 = vsel %vm1073, %v1181, 0.0
    %v1294 = vsel %vm1074, %v1183, 0.0
    %v1295 = vsel %vm1074, %v1185, 0.0
    %v1296 = vsel %vm1074, %v1187, 0.0
    %v1297 = vsel %vm1074, %v1189, 0.0
    %v1298 = vsel %vm1075, %v1191, 0.0
    %v1299 = vsel %vm1075, %v1193, 0.0
    %v1300 = vsel %vm1075, %v1195, 0.0
    %v1301 = vsel %vm1075, %v1197, 0.0
    %v1302 = vsel %vm1076, %v1199, 0.0
    %v1303 = vsel %vm1076, %v1201, 0.0
    %v1304 = vsel %vm1076, %v1203, 0.0
    %v1305 = vsel %vm1076, %v1205, 0.0
    %v1306 = vsel %vm1077, %v1207, 0.0
    %v1307 = vsel %vm1077, %v1209, 0.0
    %v1308 = vsel %vm1077, %v1211, 0.0
    %v1309 = vsel %vm1077, %v1213, 0.0
    %v1310 = vsel %vm1078, %v1215, 0.0
    %v1311 = vsel %vm1078, %v1217, 0.0
    %v1312 = vsel %vm1078, %v1219, 0.0
    %v1313 = vsel %vm1078, %v1221, 0.0
    %v1314 = vsel %vm1079, %v1223, 0.0
    %v1315 = vsel %vm1079, %v1225, 0.0
    %v1316 = vsel %vm1079, %v1227, 0.0
    %v1317 = vsel %vm1079, %v1229, 0.0
    %v1318 = vsel %vm1080, %v1231, 0.0
    %v1319 = vsel %vm1080, %v1233, 0.0
    %v1320 = vsel %vm1080, %v1235, 0.0
    %v1321 = vsel %vm1080, %v1237, 0.0
    %v1322 = vsel %vm1081, %v1239, 0.0
    %v1323 = vsel %vm1081, %v1241, 0.0
    %v1324 = vsel %vm1081, %v1243, 0.0
    %v1325 = vsel %vm1081, %v1245, 0.0
    %v1326 = vsel %vm1082, %v1247, 0.0
    %v1327 = vsel %vm1082, %v1249, 0.0
    %v1328 = vsel %vm1082, %v1251, 0.0
    %v1329 = vsel %vm1082, %v1253, 0.0
    %v1330 = vsel %vm1083, %v1255, 0.0
    %v1331 = vsel %vm1083, %v1257, 0.0
    %v1332 = vsel %vm1083, %v1259, 0.0
    %v1333 = vsel %vm1083, %v1261, 0.0
    %v1334 = vsel %vm1084, %v1263, 0.0
    %v1335 = vsel %vm1084, %v1265, 0.0
    %v1336 = vsel %vm1084, %v1267, 0.0
    %v1337 = vsel %vm1084, %v1269, 0.0
    %v1338 = vsel %vm1085, %v1271, 0.0
    %v1339 = vsel %vm1085, %v1273, 0.0
    %v1340 = vsel %vm1085, %v1275, 0.0
    %v1341 = vsel %vm1085, %v1277, 0.0
    %1342 = vmatprep.subr.mxu0 0.0
    %1343 = vmatpush1.msra.mxu0 %v125
    %1344 = vmatprep.subr.mxu0 0.0
    %1345 = vmatpush1.msra.mxu0 %v124
    %1346 = vmatprep.subr.mxu0 0.0
    %1347 = vmatpush1.msra.mxu0 %v123
    %1348 = vmatprep.subr.mxu0 0.0
    %1349 = vmatpush1.msra.mxu0 %v122
    %1350 = vmatprep.subr.mxu0 0.0
    %1351 = vmatpush1.msra.mxu0 %v121
    %1352 = vmatprep.subr.mxu0 0.0
    %1353 = vmatpush1.msra.mxu0 %v120
    %1354 = vmatprep.subr.mxu0 0.0
    %1355 = vmatpush1.msra.mxu0 %v119
    %1356 = vmatprep.subr.mxu0 0.0
    %1357 = vmatpush1.msra.mxu0 %v118
    %1358 = vmatprep.subr.mxu0 0.0
    %1359 = vmatpush1.msra.mxu0 %v117
    %1360 = vmatprep.subr.mxu0 0.0
    %1361 = vmatpush1.msra.mxu0 %v116
    %1362 = vmatprep.subr.mxu0 0.0
    %1363 = vmatpush1.msra.mxu0 %v115
    %1364 = vmatprep.subr.mxu0 0.0
    %1365 = vmatpush1.msra.mxu0 %v114
    %1366 = vmatprep.subr.mxu0 0.0
    %1367 = vmatpush1.msra.mxu0 %v113
    %1368 = vmatprep.subr.mxu0 0.0
    %1369 = vmatpush1.msra.mxu0 %v112
    %1370 = vmatprep.subr.mxu0 0.0
    %1371 = vmatpush1.msra.mxu0 %v111
    %1372 = vmatprep.subr.mxu0 0.0
    %1373 = vmatpush1.msra.mxu0 %v110
    %1374 = vmatprep.subr.mxu0 0.0
    %1375 = vmatpush2.msra.mxu0 %v141
    %1376 = vmatprep.subr.mxu0 0.0
    %1377 = vmatpush2.msra.mxu0 %v140
    %1378 = vmatprep.subr.mxu0 0.0
    %1379 = vmatpush2.msra.mxu0 %v139
    %1380 = vmatprep.subr.mxu0 0.0
    %1381 = vmatpush2.msra.mxu0 %v138
    %1382 = vmatprep.subr.mxu0 0.0
    %1383 = vmatpush2.msra.mxu0 %v137
    %1384 = vmatprep.subr.mxu0 0.0
    %1385 = vmatpush2.msra.mxu0 %v136
    %1386 = vmatprep.subr.mxu0 0.0
    %1387 = vmatpush2.msra.mxu0 %v135
    %1388 = vmatprep.subr.mxu0 0.0
    %1389 = vmatpush2.msra.mxu0 %v134
    %1390 = vmatprep.subr.mxu0 0.0
    %1391 = vmatpush2.msra.mxu0 %v133
    %1392 = vmatprep.subr.mxu0 0.0
    %1393 = vmatpush2.msra.mxu0 %v132
    %1394 = vmatprep.subr.mxu0 0.0
    %1395 = vmatpush2.msra.mxu0 %v131
    %1396 = vmatprep.subr.mxu0 0.0
    %1397 = vmatpush2.msra.mxu0 %v130
    %1398 = vmatprep.subr.mxu0 0.0
    %1399 = vmatpush2.msra.mxu0 %v129
    %1400 = vmatprep.subr.mxu0 0.0
    %1401 = vmatpush2.msra.mxu0 %v128
    %1402 = vmatprep.subr.mxu0 0.0
    %1403 = vmatpush2.msra.mxu0 %v127
    %1404 = vmatprep.subr.mxu0 0.0
    %1405 = vmatpush2.msra.mxu0 %v126
    %1406 = vmatprep.mubr.f32.mxu0 %v1279
    %1407 = vmatmul.mubr.f32.gmra.mxu0 %v1278
    %v1408 = vpop.f32.mrf.mxu0
    %v1409 = vadd.f32 0.0, %v1408
    %v1410 = vpop.f32.mrf.mxu0
    %1411 = vmatprep.mubr.f32.mxu0 %v1283
    %1412 = vmatmul.mubr.f32.gmra.mxu0 %v1282
    %v1413 = vpop.f32.mrf.mxu0
    %v1414 = vadd.f32 0.0, %v1413
    %v1415 = vpop.f32.mrf.mxu0
    %1416 = vmatprep.mubr.f32.mxu0 %v1287
    %1417 = vmatmul.mubr.f32.gmra.mxu0 %v1286
    %v1418 = vpop.f32.mrf.mxu0
    %v1419 = vadd.f32 0.0, %v1418
    %v1420 = vpop.f32.mrf.mxu0
    %1421 = vmatprep.mubr.f32.mxu0 %v1291
    %1422 = vmatmul.mubr.f32.gmra.mxu0 %v1290
    %v1423 = vpop.f32.mrf.mxu0
    %v1424 = vadd.f32 0.0, %v1423
    %v1425 = vpop.f32.mrf.mxu0
    %1426 = vmatprep.mubr.f32.mxu0 %v1295
    %1427 = vmatmul.mubr.f32.gmra.mxu0 %v1294
    %v1428 = vpop.f32.mrf.mxu0
    %v1429 = vadd.f32 0.0, %v1428
    %v1430 = vpop.f32.mrf.mxu0
    %1431 = vmatprep.mubr.f32.mxu0 %v1299
    %1432 = vmatmul.mubr.f32.gmra.mxu0 %v1298
    %v1433 = vpop.f32.mrf.mxu0
    %v1434 = vadd.f32 0.0, %v1433
    %v1435 = vpop.f32.mrf.mxu0
    %1436 = vmatprep.mubr.f32.mxu0 %v1303
    %1437 = vmatmul.mubr.f32.gmra.mxu0 %v1302
    %v1438 = vpop.f32.mrf.mxu0
    %v1439 = vadd.f32 0.0, %v1438
    %v1440 = vpop.f32.mrf.mxu0
    %1441 = vmatprep.mubr.f32.mxu0 %v1307
    %1442 = vmatmul.mubr.f32.gmra.mxu0 %v1306
    %v1443 = vpop.f32.mrf.mxu0
    %v1444 = vadd.f32 0.0, %v1443
    %v1445 = vpop.f32.mrf.mxu0
    %1446 = vmatprep.mubr.f32.mxu0 %v1311
    %1447 = vmatmul.mubr.f32.gmra.mxu0 %v1310
    %v1448 = vpop.f32.mrf.mxu0
    %v1449 = vadd.f32 0.0, %v1448
    %v1450 = vpop.f32.mrf.mxu0
    %1451 = vmatprep.mubr.f32.mxu0 %v1315
    %1452 = vmatmul.mubr.f32.gmra.mxu0 %v1314
    %v1453 = vpop.f32.mrf.mxu0
    %v1454 = vadd.f32 0.0, %v1453
    %v1455 = vpop.f32.mrf.mxu0
    %1456 = vmatprep.mubr.f32.mxu0 %v1319
    %1457 = vmatmul.mubr.f32.gmra.mxu0 %v1318
    %v1458 = vpop.f32.mrf.mxu0
    %v1459 = vadd.f32 0.0, %v1458
    %v1460 = vpop.f32.mrf.mxu0
    %1461 = vmatprep.mubr.f32.mxu0 %v1323
    %1462 = vmatmul.mubr.f32.gmra.mxu0 %v1322
    %v1463 = vpop.f32.mrf.mxu0
    %v1464 = vadd.f32 0.0, %v1463
    %v1465 = vpop.f32.mrf.mxu0
    %1466 = vmatprep.mubr.f32.mxu0 %v1327
    %1467 = vmatmul.mubr.f32.gmra.mxu0 %v1326
    %v1468 = vpop.f32.mrf.mxu0
    %v1469 = vadd.f32 0.0, %v1468
    %v1470 = vpop.f32.mrf.mxu0
    %1471 = vmatprep.mubr.f32.mxu0 %v1331
    %1472 = vmatmul.mubr.f32.gmra.mxu0 %v1330
    %v1473 = vpop.f32.mrf.mxu0
    %v1474 = vadd.f32 0.0, %v1473
    %v1475 = vpop.f32.mrf.mxu0
    %1476 = vmatprep.mubr.f32.mxu0 %v1335
    %1477 = vmatmul.mubr.f32.gmra.mxu0 %v1334
    %v1478 = vpop.f32.mrf.mxu0
    %v1479 = vadd.f32 0.0, %v1478
    %v1480 = vpop.f32.mrf.mxu0
    %1481 = vmatprep.mubr.f32.mxu0 %v1339
    %1482 = vmatmul.mubr.f32.gmra.mxu0 %v1338
    %v1483 = vpop.f32.mrf.mxu0
    %v1484 = vadd.f32 0.0, %v1483
    %v1485 = vpop.f32.mrf.mxu0
    %1486 = vdwg.mxu0
    %1487 = vmatprep.subr.mxu0 0.0
    %1488 = vmatpush1.msra.mxu0 %v157
    %1489 = vmatprep.subr.mxu0 0.0
    %1490 = vmatpush1.msra.mxu0 %v156
    %1491 = vmatprep.subr.mxu0 0.0
    %1492 = vmatpush1.msra.mxu0 %v155
    %1493 = vmatprep.subr.mxu0 0.0
    %1494 = vmatpush1.msra.mxu0 %v154
    %1495 = vmatprep.subr.mxu0 0.0
    %1496 = vmatpush1.msra.mxu0 %v153
    %1497 = vmatprep.subr.mxu0 0.0
    %1498 = vmatpush1.msra.mxu0 %v152
    %1499 = vmatprep.subr.mxu0 0.0
    %1500 = vmatpush1.msra.mxu0 %v151
    %1501 = vmatprep.subr.mxu0 0.0
    %1502 = vmatpush1.msra.mxu0 %v150
    %1503 = vmatprep.subr.mxu0 0.0
    %1504 = vmatpush1.msra.mxu0 %v149
    %1505 = vmatprep.subr.mxu0 0.0
    %1506 = vmatpush1.msra.mxu0 %v148
    %1507 = vmatprep.subr.mxu0 0.0
    %1508 = vmatpush1.msra.mxu0 %v147
    %1509 = vmatprep.subr.mxu0 0.0
    %1510 = vmatpush1.msra.mxu0 %v146
    %1511 = vmatprep.subr.mxu0 0.0
    %1512 = vmatpush1.msra.mxu0 %v145
    %1513 = vmatprep.subr.mxu0 0.0
    %1514 = vmatpush1.msra.mxu0 %v144
    %1515 = vmatprep.subr.mxu0 0.0
    %1516 = vmatpush1.msra.mxu0 %v143
    %1517 = vmatprep.subr.mxu0 0.0
    %1518 = vmatpush1.msra.mxu0 %v142
    %1519 = vmatprep.subr.mxu0 0.0
    %1520 = vmatpush2.msra.mxu0 %v173
    %1521 = vmatprep.subr.mxu0 0.0
    %1522 = vmatpush2.msra.mxu0 %v172
    %1523 = vmatprep.subr.mxu0 0.0
    %1524 = vmatpush2.msra.mxu0 %v171
    %1525 = vmatprep.subr.mxu0 0.0
    %1526 = vmatpush2.msra.mxu0 %v170
    %1527 = vmatprep.subr.mxu0 0.0
    %1528 = vmatpush2.msra.mxu0 %v169
    %1529 = vmatprep.subr.mxu0 0.0
    %1530 = vmatpush2.msra.mxu0 %v168
    %1531 = vmatprep.subr.mxu0 0.0
    %1532 = vmatpush2.msra.mxu0 %v167
    %1533 = vmatprep.subr.mxu0 0.0
    %1534 = vmatpush2.msra.mxu0 %v166
    %1535 = vmatprep.subr.mxu0 0.0
    %1536 = vmatpush2.msra.mxu0 %v165
    %1537 = vmatprep.subr.mxu0 0.0
    %1538 = vmatpush2.msra.mxu0 %v164
    %1539 = vmatprep.subr.mxu0 0.0
    %1540 = vmatpush2.msra.mxu0 %v163
    %1541 = vmatprep.subr.mxu0 0.0
    %1542 = vmatpush2.msra.mxu0 %v162
    %1543 = vmatprep.subr.mxu0 0.0
    %1544 = vmatpush2.msra.mxu0 %v161
    %1545 = vmatprep.subr.mxu0 0.0
    %1546 = vmatpush2.msra.mxu0 %v160
    %1547 = vmatprep.subr.mxu0 0.0
    %1548 = vmatpush2.msra.mxu0 %v159
    %1549 = vmatprep.subr.mxu0 0.0
    %1550 = vmatpush2.msra.mxu0 %v158
    %1551 = vmatprep.mubr.f32.mxu0 %v1281
    %1552 = vmatmul.mubr.f32.gmra.mxu0 %v1280
    %v1553 = vpop.f32.mrf.mxu0
    %v1554 = vadd.f32 %v1409, %v1553
    %v1555 = vpop.f32.mrf.mxu0
    %1556 = vmatprep.mubr.f32.mxu0 %v1285
    %1557 = vmatmul.mubr.f32.gmra.mxu0 %v1284
    %v1558 = vpop.f32.mrf.mxu0
    %v1559 = vadd.f32 %v1414, %v1558
    %v1560 = vpop.f32.mrf.mxu0
    %1561 = vmatprep.mubr.f32.mxu0 %v1289
    %1562 = vmatmul.mubr.f32.gmra.mxu0 %v1288
    %v1563 = vpop.f32.mrf.mxu0
    %v1564 = vadd.f32 %v1419, %v1563
    %v1565 = vpop.f32.mrf.mxu0
    %1566 = vmatprep.mubr.f32.mxu0 %v1293
    %1567 = vmatmul.mubr.f32.gmra.mxu0 %v1292
    %v1568 = vpop.f32.mrf.mxu0
    %v1569 = vadd.f32 %v1424, %v1568
    %v1570 = vpop.f32.mrf.mxu0
    %1571 = vmatprep.mubr.f32.mxu0 %v1297
    %1572 = vmatmul.mubr.f32.gmra.mxu0 %v1296
    %v1573 = vpop.f32.mrf.mxu0
    %v1574 = vadd.f32 %v1429, %v1573
    %v1575 = vpop.f32.mrf.mxu0
    %1576 = vmatprep.mubr.f32.mxu0 %v1301
    %1577 = vmatmul.mubr.f32.gmra.mxu0 %v1300
    %v1578 = vpop.f32.mrf.mxu0
    %v1579 = vadd.f32 %v1434, %v1578
    %v1580 = vpop.f32.mrf.mxu0
    %1581 = vmatprep.mubr.f32.mxu0 %v1305
    %1582 = vmatmul.mubr.f32.gmra.mxu0 %v1304
    %v1583 = vpop.f32.mrf.mxu0
    %v1584 = vadd.f32 %v1439, %v1583
    %v1585 = vpop.f32.mrf.mxu0
    %1586 = vmatprep.mubr.f32.mxu0 %v1309
    %1587 = vmatmul.mubr.f32.gmra.mxu0 %v1308
    %v1588 = vpop.f32.mrf.mxu0
    %v1589 = vadd.f32 %v1444, %v1588
    %v1590 = vpop.f32.mrf.mxu0
    %1591 = vmatprep.mubr.f32.mxu0 %v1313
    %1592 = vmatmul.mubr.f32.gmra.mxu0 %v1312
    %v1593 = vpop.f32.mrf.mxu0
    %v1594 = vadd.f32 %v1449, %v1593
    %v1595 = vpop.f32.mrf.mxu0
    %1596 = vmatprep.mubr.f32.mxu0 %v1317
    %1597 = vmatmul.mubr.f32.gmra.mxu0 %v1316
    %v1598 = vpop.f32.mrf.mxu0
    %v1599 = vadd.f32 %v1454, %v1598
    %v1600 = vpop.f32.mrf.mxu0
    %1601 = vmatprep.mubr.f32.mxu0 %v1321
    %1602 = vmatmul.mubr.f32.gmra.mxu0 %v1320
    %v1603 = vpop.f32.mrf.mxu0
    %v1604 = vadd.f32 %v1459, %v1603
    %v1605 = vpop.f32.mrf.mxu0
    %1606 = vmatprep.mubr.f32.mxu0 %v1325
    %1607 = vmatmul.mubr.f32.gmra.mxu0 %v1324
    %v1608 = vpop.f32.mrf.mxu0
    %v1609 = vadd.f32 %v1464, %v1608
    %v1610 = vpop.f32.mrf.mxu0
    %1611 = vmatprep.mubr.f32.mxu0 %v1329
    %1612 = vmatmul.mubr.f32.gmra.mxu0 %v1328
    %v1613 = vpop.f32.mrf.mxu0
    %v1614 = vadd.f32 %v1469, %v1613
    %v1615 = vpop.f32.mrf.mxu0
    %1616 = vmatprep.mubr.f32.mxu0 %v1333
    %1617 = vmatmul.mubr.f32.gmra.mxu0 %v1332
    %v1618 = vpop.f32.mrf.mxu0
    %v1619 = vadd.f32 %v1474, %v1618
    %v1620 = vpop.f32.mrf.mxu0
    %1621 = vmatprep.mubr.f32.mxu0 %v1337
    %1622 = vmatmul.mubr.f32.gmra.mxu0 %v1336
    %v1623 = vpop.f32.mrf.mxu0
    %v1624 = vadd.f32 %v1479, %v1623
    %v1625 = vpop.f32.mrf.mxu0
    %1626 = vmatprep.mubr.f32.mxu0 %v1341
    %1627 = vmatmul.mubr.f32.gmra.mxu0 %v1340
    %v1628 = vpop.f32.mrf.mxu0
    %v1629 = vadd.f32 %v1484, %v1628
    %v1630 = vpop.f32.mrf.mxu0
    %1631 = vdwg.mxu0
    %v1632 = vrcp.pop %v1554
    %v1633 = vrcp.pop %v1559
    %v1634 = vrcp.pop %v1564
    %v1635 = vrcp.pop %v1569
    %v1636 = vrcp.pop %v1574
    %v1637 = vrcp.pop %v1579
    %v1638 = vrcp.pop %v1584
    %v1639 = vrcp.pop %v1589
    %v1640 = vrcp.pop %v1594
    %v1641 = vrcp.pop %v1599
    %v1642 = vrcp.pop %v1604
    %v1643 = vrcp.pop %v1609
    %v1644 = vrcp.pop %v1614
    %v1645 = vrcp.pop %v1619
    %v1646 = vrcp.pop %v1624
    %v1647 = vrcp.pop %v1629
    %vm1648 = vcmask 31744
    %v1650 = vsel %vm1648, %v1632, 0
    %v1653 = vsel %vm1648, %v1633, 0
    %v1656 = vsel %vm1648, %v1634, 0
    %v1659 = vsel %vm1648, %v1635, 0
    %v1662 = vsel %vm1648, %v1636, 0
    %v1665 = vsel %vm1648, %v1637, 0
    %v1668 = vsel %vm1648, %v1638, 0
    %v1671 = vsel %vm1648, %v1639, 0
    %v1674 = vsel %vm1648, %v1640, 0
    %v1677 = vsel %vm1648, %v1641, 0
    %v1680 = vsel %vm1648, %v1642, 0
    %v1683 = vsel %vm1648, %v1643, 0
    %v1686 = vsel %vm1648, %v1644, 0
    %v1689 = vsel %vm1648, %v1645, 0
    %v1692 = vsel %vm1648, %v1646, 0
    %v1695 = vsel %vm1648, %v1647, 0
    %vm1697 = vcmask 1043456
    %v1699 = vsel %vm1697, %v174, 0
    %1701 = vmatprep.subr.mxu0 0.0
    %1702 = vmatpush1.msra.mxu0 0.0
    %1703 = vmatprep.subr.mxu0 0.0
    %1704 = vmatpush1.msra.mxu0 0.0
    %1705 = vmatprep.subr.mxu0 0.0
    %1706 = vmatpush1.msra.mxu0 0.0
    %1707 = vmatprep.subr.mxu0 0.0
    %1708 = vmatpush1.msra.mxu0 0.0
    %1709 = vmatprep.subr.mxu0 0.0
    %1710 = vmatpush1.msra.mxu0 0.0
    %1711 = vmatprep.subr.mxu0 0.0
    %1712 = vmatpush1.msra.mxu0 0.0
    %1713 = vmatprep.subr.mxu0 0.0
    %1714 = vmatpush1.msra.mxu0 0.0
    %1715 = vmatprep.subr.mxu0 0.0
    %1716 = vmatpush1.msra.mxu0 0.0
    %1717 = vmatprep.subr.mxu0 0.0
    %1718 = vmatpush1.msra.mxu0 0.0
    %1719 = vmatprep.subr.mxu0 0.0
    %1720 = vmatpush1.msra.mxu0 0.0
    %1721 = vmatprep.subr.mxu0 0.0
    %1722 = vmatpush1.msra.mxu0 0.0
    %1723 = vmatprep.subr.mxu0 0.0
    %1724 = vmatpush1.msra.mxu0 0.0
    %1725 = vmatprep.subr.mxu0 0.0
    %1726 = vmatpush1.msra.mxu0 0.0
    %1727 = vmatprep.subr.mxu0 0.0
    %1728 = vmatpush1.msra.mxu0 0.0
    %1729 = vmatprep.subr.mxu0 0.0
    %1730 = vmatpush1.msra.mxu0 0.0
    %1731 = vmatprep.subr.mxu0 0.0
    %1732 = vmatpush1.msra.mxu0 %v1699
    %1733 = vmatprep.subr.mxu0 0.0
    %1734 = vmatpush2.msra.mxu0 0.0
    %1735 = vmatprep.subr.mxu0 0.0
    %1736 = vmatpush2.msra.mxu0 0.0
    %1737 = vmatprep.subr.mxu0 0.0
    %1738 = vmatpush2.msra.mxu0 0.0
    %1739 = vmatprep.subr.mxu0 0.0
    %1740 = vmatpush2.msra.mxu0 0.0
    %1741 = vmatprep.subr.mxu0 0.0
    %1742 = vmatpush2.msra.mxu0 0.0
    %1743 = vmatprep.subr.mxu0 0.0
    %1744 = vmatpush2.msra.mxu0 0.0
    %1745 = vmatprep.subr.mxu0 0.0
    %1746 = vmatpush2.msra.mxu0 0.0
    %1747 = vmatprep.subr.mxu0 0.0
    %1748 = vmatpush2.msra.mxu0 0.0
    %1749 = vmatprep.subr.mxu0 0.0
    %1750 = vmatpush2.msra.mxu0 0.0
    %1751 = vmatprep.subr.mxu0 0.0
    %1752 = vmatpush2.msra.mxu0 0.0
    %1753 = vmatprep.subr.mxu0 0.0
    %1754 = vmatpush2.msra.mxu0 0.0
    %1755 = vmatprep.subr.mxu0 0.0
    %1756 = vmatpush2.msra.mxu0 0.0
    %1757 = vmatprep.subr.mxu0 0.0
    %1758 = vmatpush2.msra.mxu0 0.0
    %1759 = vmatprep.subr.mxu0 0.0
    %1760 = vmatpush2.msra.mxu0 0.0
    %1761 = vmatprep.subr.mxu0 0.0
    %1762 = vmatpush2.msra.mxu0 0.0
    %1763 = vmatprep.subr.mxu0 0.0
    %1764 = vmatpush2.msra.mxu0 0.0
    %1765 = vmatprep.mubr.f32.mxu0 0.0
    %1766 = vmatmul.mubr.f32.gmra.mxu0 %v1650
    %v1767 = vpop.f32.mrf.mxu0
    %v1768 = vadd.f32 0.0, %v1767
    %v1769 = vpop.f32.mrf.mxu0
    %1770 = vmatprep.mubr.f32.mxu0 0.0
    %1771 = vmatmul.mubr.f32.gmra.mxu0 %v1653
    %v1772 = vpop.f32.mrf.mxu0
    %v1773 = vadd.f32 0.0, %v1772
    %v1774 = vpop.f32.mrf.mxu0
    %1775 = vmatprep.mubr.f32.mxu0 0.0
    %1776 = vmatmul.mubr.f32.gmra.mxu0 %v1656
    %v1777 = vpop.f32.mrf.mxu0
    %v1778 = vadd.f32 0.0, %v1777
    %v1779 = vpop.f32.mrf.mxu0
    %1780 = vmatprep.mubr.f32.mxu0 0.0
    %1781 = vmatmul.mubr.f32.gmra.mxu0 %v1659
    %v1782 = vpop.f32.mrf.mxu0
    %v1783 = vadd.f32 0.0, %v1782
    %v1784 = vpop.f32.mrf.mxu0
    %1785 = vmatprep.mubr.f32.mxu0 0.0
    %1786 = vmatmul.mubr.f32.gmra.mxu0 %v1662
    %v1787 = vpop.f32.mrf.mxu0
    %v1788 = vadd.f32 0.0, %v1787
    %v1789 = vpop.f32.mrf.mxu0
    %1790 = vmatprep.mubr.f32.mxu0 0.0
    %1791 = vmatmul.mubr.f32.gmra.mxu0 %v1665
    %v1792 = vpop.f32.mrf.mxu0
    %v1793 = vadd.f32 0.0, %v1792
    %v1794 = vpop.f32.mrf.mxu0
    %1795 = vmatprep.mubr.f32.mxu0 0.0
    %1796 = vmatmul.mubr.f32.gmra.mxu0 %v1668
    %v1797 = vpop.f32.mrf.mxu0
    %v1798 = vadd.f32 0.0, %v1797
    %v1799 = vpop.f32.mrf.mxu0
    %1800 = vmatprep.mubr.f32.mxu0 0.0
    %1801 = vmatmul.mubr.f32.gmra.mxu0 %v1671
    %v1802 = vpop.f32.mrf.mxu0
    %v1803 = vadd.f32 0.0, %v1802
    %v1804 = vpop.f32.mrf.mxu0
    %1805 = vmatprep.mubr.f32.mxu0 0.0
    %1806 = vmatmul.mubr.f32.gmra.mxu0 %v1674
    %v1807 = vpop.f32.mrf.mxu0
    %v1808 = vadd.f32 0.0, %v1807
    %v1809 = vpop.f32.mrf.mxu0
    %1810 = vmatprep.mubr.f32.mxu0 0.0
    %1811 = vmatmul.mubr.f32.gmra.mxu0 %v1677
    %v1812 = vpop.f32.mrf.mxu0
    %v1813 = vadd.f32 0.0, %v1812
    %v1814 = vpop.f32.mrf.mxu0
    %1815 = vmatprep.mubr.f32.mxu0 0.0
    %1816 = vmatmul.mubr.f32.gmra.mxu0 %v1680
    %v1817 = vpop.f32.mrf.mxu0
    %v1818 = vadd.f32 0.0, %v1817
    %v1819 = vpop.f32.mrf.mxu0
    %1820 = vmatprep.mubr.f32.mxu0 0.0
    %1821 = vmatmul.mubr.f32.gmra.mxu0 %v1683
    %v1822 = vpop.f32.mrf.mxu0
    %v1823 = vadd.f32 0.0, %v1822
    %v1824 = vpop.f32.mrf.mxu0
    %1825 = vmatprep.mubr.f32.mxu0 0.0
    %1826 = vmatmul.mubr.f32.gmra.mxu0 %v1686
    %v1827 = vpop.f32.mrf.mxu0
    %v1828 = vadd.f32 0.0, %v1827
    %v1829 = vpop.f32.mrf.mxu0
    %1830 = vmatprep.mubr.f32.mxu0 0.0
    %1831 = vmatmul.mubr.f32.gmra.mxu0 %v1689
    %v1832 = vpop.f32.mrf.mxu0
    %v1833 = vadd.f32 0.0, %v1832
    %v1834 = vpop.f32.mrf.mxu0
    %1835 = vmatprep.mubr.f32.mxu0 0.0
    %1836 = vmatmul.mubr.f32.gmra.mxu0 %v1692
    %v1837 = vpop.f32.mrf.mxu0
    %v1838 = vadd.f32 0.0, %v1837
    %v1839 = vpop.f32.mrf.mxu0
    %1840 = vmatprep.mubr.f32.mxu0 0.0
    %1841 = vmatmul.mubr.f32.gmra.mxu0 %v1695
    %v1842 = vpop.f32.mrf.mxu0
    %v1843 = vadd.f32 0.0, %v1842
    %v1844 = vpop.f32.mrf.mxu0
    %1845 = vdwg.mxu0
    %v1846 = vmul.f32 %v331, %v175
    %v1847 = vmul.f32 %v334, %v176
    %v1848 = vmul.f32 %v339, %v177
    %v1849 = vmul.f32 %v342, %v178
    %v1850 = vmul.f32 %v347, %v179
    %v1851 = vmul.f32 %v350, %v180
    %v1852 = vmul.f32 %v355, %v181
    %v1853 = vmul.f32 %v358, %v182
    %v1854 = vmul.f32 %v363, %v183
    %v1855 = vmul.f32 %v366, %v184
    %v1856 = vmul.f32 %v371, %v185
    %v1857 = vmul.f32 %v374, %v186
    %v1858 = vmul.f32 %v379, %v187
    %v1859 = vmul.f32 %v382, %v188
    %v1860 = vmul.f32 %v387, %v189
    %v1861 = vmul.f32 %v390, %v190
    %v1862 = vmul.f32 %v331, %v191
    %v1863 = vmul.f32 %v334, %v192
    %v1864 = vmul.f32 %v339, %v193
    %v1865 = vmul.f32 %v342, %v194
    %v1866 = vmul.f32 %v347, %v195
    %v1867 = vmul.f32 %v350, %v196
    %v1868 = vmul.f32 %v355, %v197
    %v1869 = vmul.f32 %v358, %v198
    %v1870 = vmul.f32 %v363, %v199
    %v1871 = vmul.f32 %v366, %v200
    %v1872 = vmul.f32 %v371, %v201
    %v1873 = vmul.f32 %v374, %v202
    %v1874 = vmul.f32 %v379, %v203
    %v1875 = vmul.f32 %v382, %v204
    %v1876 = vmul.f32 %v387, %v205
    %v1877 = vmul.f32 %v390, %v206
    %v1878 = vmul.f32 %v331, %v207
    %v1879 = vmul.f32 %v334, %v208
    %v1880 = vmul.f32 %v339, %v209
    %v1881 = vmul.f32 %v342, %v210
    %v1882 = vmul.f32 %v347, %v211
    %v1883 = vmul.f32 %v350, %v212
    %v1884 = vmul.f32 %v355, %v213
    %v1885 = vmul.f32 %v358, %v214
    %v1886 = vmul.f32 %v363, %v215
    %v1887 = vmul.f32 %v366, %v216
    %v1888 = vmul.f32 %v371, %v217
    %v1889 = vmul.f32 %v374, %v218
    %v1890 = vmul.f32 %v379, %v219
    %v1891 = vmul.f32 %v382, %v220
    %v1892 = vmul.f32 %v387, %v221
    %v1893 = vmul.f32 %v390, %v222
    %v1894 = vmul.f32 %v331, %v223
    %v1895 = vmul.f32 %v334, %v224
    %v1896 = vmul.f32 %v339, %v225
    %v1897 = vmul.f32 %v342, %v226
    %v1898 = vmul.f32 %v347, %v227
    %v1899 = vmul.f32 %v350, %v228
    %v1900 = vmul.f32 %v355, %v229
    %v1901 = vmul.f32 %v358, %v230
    %v1902 = vmul.f32 %v363, %v231
    %v1903 = vmul.f32 %v366, %v232
    %v1904 = vmul.f32 %v371, %v233
    %v1905 = vmul.f32 %v374, %v234
    %v1906 = vmul.f32 %v379, %v235
    %v1907 = vmul.f32 %v382, %v236
    %v1908 = vmul.f32 %v387, %v237
    %v1909 = vmul.f32 %v390, %v238
    %v1910 = vpack.c.bf16 %v1847, %v1846
    %v1911 = vpack.c.bf16 %v1849, %v1848
    %v1912 = vpack.c.bf16 %v1851, %v1850
    %v1913 = vpack.c.bf16 %v1853, %v1852
    %v1914 = vpack.c.bf16 %v1855, %v1854
    %v1915 = vpack.c.bf16 %v1857, %v1856
    %v1916 = vpack.c.bf16 %v1859, %v1858
    %v1917 = vpack.c.bf16 %v1861, %v1860
    %v1918 = vpack.c.bf16 %v1863, %v1862
    %v1919 = vpack.c.bf16 %v1865, %v1864
    %v1920 = vpack.c.bf16 %v1867, %v1866
    %v1921 = vpack.c.bf16 %v1869, %v1868
    %v1922 = vpack.c.bf16 %v1871, %v1870
    %v1923 = vpack.c.bf16 %v1873, %v1872
    %v1924 = vpack.c.bf16 %v1875, %v1874
    %v1925 = vpack.c.bf16 %v1877, %v1876
    %v1926 = vpack.c.bf16 %v1879, %v1878
    %v1927 = vpack.c.bf16 %v1881, %v1880
    %v1928 = vpack.c.bf16 %v1883, %v1882
    %v1929 = vpack.c.bf16 %v1885, %v1884
    %v1930 = vpack.c.bf16 %v1887, %v1886
    %v1931 = vpack.c.bf16 %v1889, %v1888
    %v1932 = vpack.c.bf16 %v1891, %v1890
    %v1933 = vpack.c.bf16 %v1893, %v1892
    %v1934 = vpack.c.bf16 %v1895, %v1894
    %v1935 = vpack.c.bf16 %v1897, %v1896
    %v1936 = vpack.c.bf16 %v1899, %v1898
    %v1937 = vpack.c.bf16 %v1901, %v1900
    %v1938 = vpack.c.bf16 %v1903, %v1902
    %v1939 = vpack.c.bf16 %v1905, %v1904
    %v1940 = vpack.c.bf16 %v1907, %v1906
    %v1941 = vpack.c.bf16 %v1909, %v1908
    %v1942 = vpack.c.bf16 %v1282, %v1278
    %v1943 = vpack.c.bf16 %v1283, %v1279
    %v1944 = vpack.c.bf16 %v1284, %v1280
    %v1945 = vpack.c.bf16 %v1285, %v1281
    %v1946 = vpack.c.bf16 %v1290, %v1286
    %v1947 = vpack.c.bf16 %v1291, %v1287
    %v1948 = vpack.c.bf16 %v1292, %v1288
    %v1949 = vpack.c.bf16 %v1293, %v1289
    %v1950 = vpack.c.bf16 %v1298, %v1294
    %v1951 = vpack.c.bf16 %v1299, %v1295
    %v1952 = vpack.c.bf16 %v1300, %v1296
    %v1953 = vpack.c.bf16 %v1301, %v1297
    %v1954 = vpack.c.bf16 %v1306, %v1302
    %v1955 = vpack.c.bf16 %v1307, %v1303
    %v1956 = vpack.c.bf16 %v1308, %v1304
    %v1957 = vpack.c.bf16 %v1309, %v1305
    %v1958 = vpack.c.bf16 %v1314, %v1310
    %v1959 = vpack.c.bf16 %v1315, %v1311
    %v1960 = vpack.c.bf16 %v1316, %v1312
    %v1961 = vpack.c.bf16 %v1317, %v1313
    %v1962 = vpack.c.bf16 %v1322, %v1318
    %v1963 = vpack.c.bf16 %v1323, %v1319
    %v1964 = vpack.c.bf16 %v1324, %v1320
    %v1965 = vpack.c.bf16 %v1325, %v1321
    %v1966 = vpack.c.bf16 %v1330, %v1326
    %v1967 = vpack.c.bf16 %v1331, %v1327
    %v1968 = vpack.c.bf16 %v1332, %v1328
    %v1969 = vpack.c.bf16 %v1333, %v1329
    %v1970 = vpack.c.bf16 %v1338, %v1334
    %v1971 = vpack.c.bf16 %v1339, %v1335
    %v1972 = vpack.c.bf16 %v1340, %v1336
    %v1973 = vpack.c.bf16 %v1341, %v1337
    %1974 = vmatprep.subr.bf16.mxu0 0
    %1975 = vmatpush1.bf16.msra.mxu0 %v1917
    %1976 = vmatprep.subr.bf16.mxu0 0
    %1977 = vmatpush1.bf16.msra.mxu0 %v1916
    %1978 = vmatprep.subr.bf16.mxu0 0
    %1979 = vmatpush1.bf16.msra.mxu0 %v1915
    %1980 = vmatprep.subr.bf16.mxu0 0
    %1981 = vmatpush1.bf16.msra.mxu0 %v1914
    %1982 = vmatprep.subr.bf16.mxu0 0
    %1983 = vmatpush1.bf16.msra.mxu0 %v1913
    %1984 = vmatprep.subr.bf16.mxu0 0
    %1985 = vmatpush1.bf16.msra.mxu0 %v1912
    %1986 = vmatprep.subr.bf16.mxu0 0
    %1987 = vmatpush1.bf16.msra.mxu0 %v1911
    %1988 = vmatprep.subr.bf16.mxu0 0
    %1989 = vmatpush1.bf16.msra.mxu0 %v1910
    %1990 = vmatprep.subr.bf16.mxu0 0
    %1991 = vmatpush2.bf16.msra.mxu0 %v1925
    %1992 = vmatprep.subr.bf16.mxu0 0
    %1993 = vmatpush2.bf16.msra.mxu0 %v1924
    %1994 = vmatprep.subr.bf16.mxu0 0
    %1995 = vmatpush2.bf16.msra.mxu0 %v1923
    %1996 = vmatprep.subr.bf16.mxu0 0
    %1997 = vmatpush2.bf16.msra.mxu0 %v1922
    %1998 = vmatprep.subr.bf16.mxu0 0
    %1999 = vmatpush2.bf16.msra.mxu0 %v1921
    %2000 = vmatprep.subr.bf16.mxu0 0
    %2001 = vmatpush2.bf16.msra.mxu0 %v1920
    %2002 = vmatprep.subr.bf16.mxu0 0
    %2003 = vmatpush2.bf16.msra.mxu0 %v1919
    %2004 = vmatprep.subr.bf16.mxu0 0
    %2005 = vmatpush2.bf16.msra.mxu0 %v1918
    %2006 = vmatprep.mubr.bf16.mxu0 %v1943
    %2007 = vmatmul.mubr.bf16.gmra.mxu0 %v1942
    %v2008 = vpop.f32.mrf.mxu0
    %v2009 = vadd.f32 0.0, %v2008
    %v2010 = vpop.f32.mrf.mxu0
    %v2011 = vpop.f32.mrf.mxu0
    %v2012 = vadd.f32 0.0, %v2011
    %v2013 = vpop.f32.mrf.mxu0
    %2014 = vmatprep.mubr.bf16.mxu0 %v1947
    %2015 = vmatmul.mubr.bf16.gmra.mxu0 %v1946
    %v2016 = vpop.f32.mrf.mxu0
    %v2017 = vadd.f32 0.0, %v2016
    %v2018 = vpop.f32.mrf.mxu0
    %v2019 = vpop.f32.mrf.mxu0
    %v2020 = vadd.f32 0.0, %v2019
    %v2021 = vpop.f32.mrf.mxu0
    %2022 = vmatprep.mubr.bf16.mxu0 %v1951
    %2023 = vmatmul.mubr.bf16.gmra.mxu0 %v1950
    %v2024 = vpop.f32.mrf.mxu0
    %v2025 = vadd.f32 0.0, %v2024
    %v2026 = vpop.f32.mrf.mxu0
    %v2027 = vpop.f32.mrf.mxu0
    %v2028 = vadd.f32 0.0, %v2027
    %v2029 = vpop.f32.mrf.mxu0
    %2030 = vmatprep.mubr.bf16.mxu0 %v1955
    %2031 = vmatmul.mubr.bf16.gmra.mxu0 %v1954
    %v2032 = vpop.f32.mrf.mxu0
    %v2033 = vadd.f32 0.0, %v2032
    %v2034 = vpop.f32.mrf.mxu0
    %v2035 = vpop.f32.mrf.mxu0
    %v2036 = vadd.f32 0.0, %v2035
    %v2037 = vpop.f32.mrf.mxu0
    %2038 = vmatprep.mubr.bf16.mxu0 %v1959
    %2039 = vmatmul.mubr.bf16.gmra.mxu0 %v1958
    %v2040 = vpop.f32.mrf.mxu0
    %v2041 = vadd.f32 0.0, %v2040
    %v2042 = vpop.f32.mrf.mxu0
    %v2043 = vpop.f32.mrf.mxu0
    %v2044 = vadd.f32 0.0, %v2043
    %v2045 = vpop.f32.mrf.mxu0
    %2046 = vmatprep.mubr.bf16.mxu0 %v1963
    %2047 = vmatmul.mubr.bf16.gmra.mxu0 %v1962
    %v2048 = vpop.f32.mrf.mxu0
    %v2049 = vadd.f32 0.0, %v2048
    %v2050 = vpop.f32.mrf.mxu0
    %v2051 = vpop.f32.mrf.mxu0
    %v2052 = vadd.f32 0.0, %v2051
    %v2053 = vpop.f32.mrf.mxu0
    %2054 = vmatprep.mubr.bf16.mxu0 %v1967
    %2055 = vmatmul.mubr.bf16.gmra.mxu0 %v1966
    %v2056 = vpop.f32.mrf.mxu0
    %v2057 = vadd.f32 0.0, %v2056
    %v2058 = vpop.f32.mrf.mxu0
    %v2059 = vpop.f32.mrf.mxu0
    %v2060 = vadd.f32 0.0, %v2059
    %v2061 = vpop.f32.mrf.mxu0
    %2062 = vmatprep.mubr.bf16.mxu0 %v1971
    %2063 = vmatmul.mubr.bf16.gmra.mxu0 %v1970
    %v2064 = vpop.f32.mrf.mxu0
    %v2065 = vadd.f32 0.0, %v2064
    %v2066 = vpop.f32.mrf.mxu0
    %v2067 = vpop.f32.mrf.mxu0
    %v2068 = vadd.f32 0.0, %v2067
    %v2069 = vpop.f32.mrf.mxu0
    %2070 = vdwg.mxu0
    %2071 = vmatprep.subr.bf16.mxu0 0
    %2072 = vmatpush1.bf16.msra.mxu0 %v1933
    %2073 = vmatprep.subr.bf16.mxu0 0
    %2074 = vmatpush1.bf16.msra.mxu0 %v1932
    %2075 = vmatprep.subr.bf16.mxu0 0
    %2076 = vmatpush1.bf16.msra.mxu0 %v1931
    %2077 = vmatprep.subr.bf16.mxu0 0
    %2078 = vmatpush1.bf16.msra.mxu0 %v1930
    %2079 = vmatprep.subr.bf16.mxu0 0
    %2080 = vmatpush1.bf16.msra.mxu0 %v1929
    %2081 = vmatprep.subr.bf16.mxu0 0
    %2082 = vmatpush1.bf16.msra.mxu0 %v1928
    %2083 = vmatprep.subr.bf16.mxu0 0
    %2084 = vmatpush1.bf16.msra.mxu0 %v1927
    %2085 = vmatprep.subr.bf16.mxu0 0
    %2086 = vmatpush1.bf16.msra.mxu0 %v1926
    %2087 = vmatprep.subr.bf16.mxu0 0
    %2088 = vmatpush2.bf16.msra.mxu0 %v1941
    %2089 = vmatprep.subr.bf16.mxu0 0
    %2090 = vmatpush2.bf16.msra.mxu0 %v1940
    %2091 = vmatprep.subr.bf16.mxu0 0
    %2092 = vmatpush2.bf16.msra.mxu0 %v1939
    %2093 = vmatprep.subr.bf16.mxu0 0
    %2094 = vmatpush2.bf16.msra.mxu0 %v1938
    %2095 = vmatprep.subr.bf16.mxu0 0
    %2096 = vmatpush2.bf16.msra.mxu0 %v1937
    %2097 = vmatprep.subr.bf16.mxu0 0
    %2098 = vmatpush2.bf16.msra.mxu0 %v1936
    %2099 = vmatprep.subr.bf16.mxu0 0
    %2100 = vmatpush2.bf16.msra.mxu0 %v1935
    %2101 = vmatprep.subr.bf16.mxu0 0
    %2102 = vmatpush2.bf16.msra.mxu0 %v1934
    %2103 = vmatprep.mubr.bf16.mxu0 %v1945
    %2104 = vmatmul.mubr.bf16.gmra.mxu0 %v1944
    %v2105 = vpop.f32.mrf.mxu0
    %v2106 = vadd.f32 %v2009, %v2105
    %v2107 = vpop.f32.mrf.mxu0
    %v2108 = vpop.f32.mrf.mxu0
    %v2109 = vadd.f32 %v2012, %v2108
    %v2110 = vpop.f32.mrf.mxu0
    %2111 = vmatprep.mubr.bf16.mxu0 %v1949
    %2112 = vmatmul.mubr.bf16.gmra.mxu0 %v1948
    %v2113 = vpop.f32.mrf.mxu0
    %v2114 = vadd.f32 %v2017, %v2113
    %v2115 = vpop.f32.mrf.mxu0
    %v2116 = vpop.f32.mrf.mxu0
    %v2117 = vadd.f32 %v2020, %v2116
    %v2118 = vpop.f32.mrf.mxu0
    %2119 = vmatprep.mubr.bf16.mxu0 %v1953
    %2120 = vmatmul.mubr.bf16.gmra.mxu0 %v1952
    %v2121 = vpop.f32.mrf.mxu0
    %v2122 = vadd.f32 %v2025, %v2121
    %v2123 = vpop.f32.mrf.mxu0
    %v2124 = vpop.f32.mrf.mxu0
    %v2125 = vadd.f32 %v2028, %v2124
    %v2126 = vpop.f32.mrf.mxu0
    %2127 = vmatprep.mubr.bf16.mxu0 %v1957
    %2128 = vmatmul.mubr.bf16.gmra.mxu0 %v1956
    %v2129 = vpop.f32.mrf.mxu0
    %v2130 = vadd.f32 %v2033, %v2129
    %v2131 = vpop.f32.mrf.mxu0
    %v2132 = vpop.f32.mrf.mxu0
    %v2133 = vadd.f32 %v2036, %v2132
    %v2134 = vpop.f32.mrf.mxu0
    %2135 = vmatprep.mubr.bf16.mxu0 %v1961
    %2136 = vmatmul.mubr.bf16.gmra.mxu0 %v1960
    %v2137 = vpop.f32.mrf.mxu0
    %v2138 = vadd.f32 %v2041, %v2137
    %v2139 = vpop.f32.mrf.mxu0
    %v2140 = vpop.f32.mrf.mxu0
    %v2141 = vadd.f32 %v2044, %v2140
    %v2142 = vpop.f32.mrf.mxu0
    %2143 = vmatprep.mubr.bf16.mxu0 %v1965
    %2144 = vmatmul.mubr.bf16.gmra.mxu0 %v1964
    %v2145 = vpop.f32.mrf.mxu0
    %v2146 = vadd.f32 %v2049, %v2145
    %v2147 = vpop.f32.mrf.mxu0
    %v2148 = vpop.f32.mrf.mxu0
    %v2149 = vadd.f32 %v2052, %v2148
    %v2150 = vpop.f32.mrf.mxu0
    %2151 = vmatprep.mubr.bf16.mxu0 %v1969
    %2152 = vmatmul.mubr.bf16.gmra.mxu0 %v1968
    %v2153 = vpop.f32.mrf.mxu0
    %v2154 = vadd.f32 %v2057, %v2153
    %v2155 = vpop.f32.mrf.mxu0
    %v2156 = vpop.f32.mrf.mxu0
    %v2157 = vadd.f32 %v2060, %v2156
    %v2158 = vpop.f32.mrf.mxu0
    %2159 = vmatprep.mubr.bf16.mxu0 %v1973
    %2160 = vmatmul.mubr.bf16.gmra.mxu0 %v1972
    %v2161 = vpop.f32.mrf.mxu0
    %v2162 = vadd.f32 %v2065, %v2161
    %v2163 = vpop.f32.mrf.mxu0
    %v2164 = vpop.f32.mrf.mxu0
    %v2165 = vadd.f32 %v2068, %v2164
    %v2166 = vpop.f32.mrf.mxu0
    %2167 = vdwg.mxu0
    %v2168 = vmul.f32 %v2106, %v1768
    %v2169 = vmul.f32 %v2109, %v1773
    %v2170 = vmul.f32 %v2114, %v1778
    %v2171 = vmul.f32 %v2117, %v1783
    %v2172 = vmul.f32 %v2122, %v1788
    %v2173 = vmul.f32 %v2125, %v1793
    %v2174 = vmul.f32 %v2130, %v1798
    %v2175 = vmul.f32 %v2133, %v1803
    %v2176 = vmul.f32 %v2138, %v1808
    %v2177 = vmul.f32 %v2141, %v1813
    %v2178 = vmul.f32 %v2146, %v1818
    %v2179 = vmul.f32 %v2149, %v1823
    %v2180 = vmul.f32 %v2154, %v1828
    %v2181 = vmul.f32 %v2157, %v1833
    %v2182 = vmul.f32 %v2162, %v1838
    %v2183 = vmul.f32 %v2165, %v1843
    %v2184 = vld [vmem:[%s9] sm:$0x1]
    %v2186 = vlaneseq
    %v2187 = vshrl.u32 %v2186, 7
    %v2188 = vsub.s32 0, %v2187
    %v2189 = vrot.slane %v2184, %v2188
    %v2191 = vadd.f32 %v2168, %v2189
    %v2192 = vadd.f32 %v2169, %v2189
    %v2193 = vadd.f32 %v2170, %v2189
    %v2194 = vadd.f32 %v2171, %v2189
    %v2195 = vadd.f32 %v2172, %v2189
    %v2196 = vadd.f32 %v2173, %v2189
    %v2197 = vadd.f32 %v2174, %v2189
    %v2198 = vadd.f32 %v2175, %v2189
    %v2199 = vadd.f32 %v2176, %v2189
    %v2200 = vadd.f32 %v2177, %v2189
    %v2201 = vadd.f32 %v2178, %v2189
    %v2202 = vadd.f32 %v2179, %v2189
    %v2203 = vadd.f32 %v2180, %v2189
    %v2204 = vadd.f32 %v2181, %v2189
    %v2205 = vadd.f32 %v2182, %v2189
    %v2206 = vadd.f32 %v2183, %v2189
    %v2207 = vmax.f32 %v2191, 0.0
    %v2208 = vmax.f32 %v2192, 0.0
    %v2209 = vmax.f32 %v2193, 0.0
    %v2210 = vmax.f32 %v2194, 0.0
    %v2211 = vmax.f32 %v2195, 0.0
    %v2212 = vmax.f32 %v2196, 0.0
    %v2213 = vmax.f32 %v2197, 0.0
    %v2214 = vmax.f32 %v2198, 0.0
    %v2215 = vmax.f32 %v2199, 0.0
    %v2216 = vmax.f32 %v2200, 0.0
    %v2217 = vmax.f32 %v2201, 0.0
    %v2218 = vmax.f32 %v2202, 0.0
    %v2219 = vmax.f32 %v2203, 0.0
    %v2220 = vmax.f32 %v2204, 0.0
    %v2221 = vmax.f32 %v2205, 0.0
    %v2222 = vmax.f32 %v2206, 0.0
    %v2223 = vpack.c.bf16 %v2208, %v2207
    %v2224 = vpack.c.bf16 %v2210, %v2209
    %v2225 = vpack.c.bf16 %v2212, %v2211
    %v2226 = vpack.c.bf16 %v2214, %v2213
    %v2227 = vpack.c.bf16 %v2216, %v2215
    %v2228 = vpack.c.bf16 %v2218, %v2217
    %v2229 = vpack.c.bf16 %v2220, %v2219
    %v2230 = vpack.c.bf16 %v2222, %v2221
    %v2231 = vld [vmem:[%s10] sm:$0xf]
    %v2232 = vld [vmem:[%s10 + $0x4] sm:$0xf]
    %v2233 = vld [vmem:[%s10 + $0x8] sm:$0xf]
    %v2234 = vld [vmem:[%s10 + $0xc] sm:$0xf]
    %v2239 = vunpack.c.l.b16 %v2231
    %v2240 = vunpack.c.l.b16 %v2232
    %v2241 = vunpack.c.l.b16 %v2233
    %v2242 = vunpack.c.l.b16 %v2234
    %v2243 = vpack.c.b16 %v2240, %v2239
    %v2244 = vpack.c.b16 %v2242, %v2241
    %v2248 = vsel %vm441, %v2223, 0
    %v2251 = vsel %vm441, %v2224, 0
    %v2254 = vsel %vm441, %v2225, 0
    %v2257 = vsel %vm441, %v2226, 0
    %v2260 = vsel %vm441, %v2227, 0
    %v2263 = vsel %vm441, %v2228, 0
    %v2266 = vsel %vm441, %v2229, 0
    %v2269 = vsel %vm441, %v2230, 0
    %2271 = vmatprep.subr.bf16.mxu0 0
    %2272 = vmatpush1.bf16.msra.mxu0 0
    %2273 = vmatprep.subr.bf16.mxu0 0
    %2274 = vmatpush1.bf16.msra.mxu0 0
    %2275 = vmatprep.subr.bf16.mxu0 0
    %2276 = vmatpush1.bf16.msra.mxu0 0
    %2277 = vmatprep.subr.bf16.mxu0 0
    %2278 = vmatpush1.bf16.msra.mxu0 0
    %2279 = vmatprep.subr.bf16.mxu0 0
    %2280 = vmatpush1.bf16.msra.mxu0 0
    %2281 = vmatprep.subr.bf16.mxu0 0
    %2282 = vmatpush1.bf16.msra.mxu0 0
    %2283 = vmatprep.subr.bf16.mxu0 0
    %2284 = vmatpush1.bf16.msra.mxu0 %v2244
    %2285 = vmatprep.subr.bf16.mxu0 0
    %2286 = vmatpush1.bf16.msra.mxu0 %v2243
    %2287 = vmatprep.subr.bf16.mxu0 0
    %2288 = vmatpush2.bf16.msra.mxu0 0
    %2289 = vmatprep.subr.bf16.mxu0 0
    %2290 = vmatpush2.bf16.msra.mxu0 0
    %2291 = vmatprep.subr.bf16.mxu0 0
    %2292 = vmatpush2.bf16.msra.mxu0 0
    %2293 = vmatprep.subr.bf16.mxu0 0
    %2294 = vmatpush2.bf16.msra.mxu0 0
    %2295 = vmatprep.subr.bf16.mxu0 0
    %2296 = vmatpush2.bf16.msra.mxu0 0
    %2297 = vmatprep.subr.bf16.mxu0 0
    %2298 = vmatpush2.bf16.msra.mxu0 0
    %2299 = vmatprep.subr.bf16.mxu0 0
    %2300 = vmatpush2.bf16.msra.mxu0 0
    %2301 = vmatprep.subr.bf16.mxu0 0
    %2302 = vmatpush2.bf16.msra.mxu0 0
    %2303 = vmatprep.mubr.bf16.mxu0 0
    %2304 = vmatmul.mubr.bf16.gmra.mxu0 %v2248
    %v2305 = vpop.f32.mrf.mxu0
    %v2306 = vadd.f32 0.0, %v2305
    %v2307 = vpop.f32.mrf.mxu0
    %v2308 = vpop.f32.mrf.mxu0
    %v2309 = vadd.f32 0.0, %v2308
    %v2310 = vpop.f32.mrf.mxu0
    %2311 = vmatprep.mubr.bf16.mxu0 0
    %2312 = vmatmul.mubr.bf16.gmra.mxu0 %v2251
    %v2313 = vpop.f32.mrf.mxu0
    %v2314 = vadd.f32 0.0, %v2313
    %v2315 = vpop.f32.mrf.mxu0
    %v2316 = vpop.f32.mrf.mxu0
    %v2317 = vadd.f32 0.0, %v2316
    %v2318 = vpop.f32.mrf.mxu0
    %2319 = vmatprep.mubr.bf16.mxu0 0
    %2320 = vmatmul.mubr.bf16.gmra.mxu0 %v2254
    %v2321 = vpop.f32.mrf.mxu0
    %v2322 = vadd.f32 0.0, %v2321
    %v2323 = vpop.f32.mrf.mxu0
    %v2324 = vpop.f32.mrf.mxu0
    %v2325 = vadd.f32 0.0, %v2324
    %v2326 = vpop.f32.mrf.mxu0
    %2327 = vmatprep.mubr.bf16.mxu0 0
    %2328 = vmatmul.mubr.bf16.gmra.mxu0 %v2257
    %v2329 = vpop.f32.mrf.mxu0
    %v2330 = vadd.f32 0.0, %v2329
    %v2331 = vpop.f32.mrf.mxu0
    %v2332 = vpop.f32.mrf.mxu0
    %v2333 = vadd.f32 0.0, %v2332
    %v2334 = vpop.f32.mrf.mxu0
    %2335 = vmatprep.mubr.bf16.mxu0 0
    %2336 = vmatmul.mubr.bf16.gmra.mxu0 %v2260
    %v2337 = vpop.f32.mrf.mxu0
    %v2338 = vadd.f32 0.0, %v2337
    %v2339 = vpop.f32.mrf.mxu0
    %v2340 = vpop.f32.mrf.mxu0
    %v2341 = vadd.f32 0.0, %v2340
    %v2342 = vpop.f32.mrf.mxu0
    %2343 = vmatprep.mubr.bf16.mxu0 0
    %2344 = vmatmul.mubr.bf16.gmra.mxu0 %v2263
    %v2345 = vpop.f32.mrf.mxu0
    %v2346 = vadd.f32 0.0, %v2345
    %v2347 = vpop.f32.mrf.mxu0
    %v2348 = vpop.f32.mrf.mxu0
    %v2349 = vadd.f32 0.0, %v2348
    %v2350 = vpop.f32.mrf.mxu0
    %2351 = vmatprep.mubr.bf16.mxu0 0
    %2352 = vmatmul.mubr.bf16.gmra.mxu0 %v2266
    %v2353 = vpop.f32.mrf.mxu0
    %v2354 = vadd.f32 0.0, %v2353
    %v2355 = vpop.f32.mrf.mxu0
    %v2356 = vpop.f32.mrf.mxu0
    %v2357 = vadd.f32 0.0, %v2356
    %v2358 = vpop.f32.mrf.mxu0
    %2359 = vmatprep.mubr.bf16.mxu0 0
    %2360 = vmatmul.mubr.bf16.gmra.mxu0 %v2269
    %v2361 = vpop.f32.mrf.mxu0
    %v2362 = vadd.f32 0.0, %v2361
    %v2363 = vpop.f32.mrf.mxu0
    %v2364 = vpop.f32.mrf.mxu0
    %v2365 = vadd.f32 0.0, %v2364
    %v2366 = vpop.f32.mrf.mxu0
    %2367 = vdwg.mxu0
    %v2368 = vpack.c.bf16 %v2309, %v2306
    %v2369 = vpack.c.bf16 %v2317, %v2314
    %v2370 = vpack.c.bf16 %v2325, %v2322
    %v2371 = vpack.c.bf16 %v2333, %v2330
    %v2372 = vpack.c.bf16 %v2341, %v2338
    %v2373 = vpack.c.bf16 %v2349, %v2346
    %v2374 = vpack.c.bf16 %v2357, %v2354
    %v2375 = vpack.c.bf16 %v2365, %v2362
    %v2376 = vld [vmem:[%s11] sm:$0xff]
    %v2377 = vld [vmem:[%s11 + $0x8] sm:$0xff]
    %v2378 = vld [vmem:[%s11 + $0x10] sm:$0xff]
    %v2379 = vld [vmem:[%s11 + $0x18] sm:$0xff]
    %v2380 = vld [vmem:[%s11 + $0x20] sm:$0xff]
    %v2381 = vld [vmem:[%s11 + $0x28] sm:$0xff]
    %v2382 = vld [vmem:[%s11 + $0x30] sm:$0xff]
    %v2383 = vld [vmem:[%s11 + $0x38] sm:$0xff]
    %v2384 = vld [vmem:[%s12] sm:$0xf]
    %v2385 = vld [vmem:[%s12 + $0x4] sm:$0xf]
    %v2386 = vld [vmem:[%s12 + $0x8] sm:$0xf]
    %v2387 = vld [vmem:[%s12 + $0xc] sm:$0xf]
    %v2392 = vunpack.c.l.b16 %v2384
    %v2393 = vunpack.c.l.b16 %v2385
    %v2394 = vunpack.c.l.b16 %v2386
    %v2395 = vunpack.c.l.b16 %v2387
    %v2396 = vpack.c.b16 %v2393, %v2392
    %v2397 = vpack.c.b16 %v2395, %v2394
    %2400 = vxpose.xlu0.c.b16.start [1/8] %v2396, 128
    %2401 = vxpose.xlu0.c.b16.cont [2/8] %v2397, 128
    %2402 = vxpose.xlu0.c.b16.cont [3/8] 0, 128
    %2403 = vxpose.xlu0.c.b16.cont [4/8] 0, 128
    %2404 = vxpose.xlu0.c.b16.cont [5/8] 0, 128
    %2405 = vxpose.xlu0.c.b16.cont [6/8] 0, 128
    %2406 = vxpose.xlu0.c.b16.cont [7/8] 0, 128
    %2407 = vxpose.xlu0.c.b16.end [8/8] 0, 128
    %v2408 = vpop.trf.xlu0
    %v2409 = vpop.trf.xlu0
    %v2410 = vpop.trf.xlu0
    %v2411 = vpop.trf.xlu0
    %v2412 = vpop.trf.xlu0
    %v2413 = vpop.trf.xlu0
    %v2414 = vpop.trf.xlu0
    %v2415 = vpop.trf.xlu0
    %v2417 = vsel %vm441, %v2408, 0
    %v2420 = vsel %vm441, %v2368, 0
    %v2423 = vsel %vm441, %v2369, 0
    %v2426 = vsel %vm441, %v2370, 0
    %v2429 = vsel %vm441, %v2371, 0
    %v2432 = vsel %vm441, %v2372, 0
    %v2435 = vsel %vm441, %v2373, 0
    %v2438 = vsel %vm441, %v2374, 0
    %v2441 = vsel %vm441, %v2375, 0
    %2443 = vmatprep.subr.bf16.mxu0 0
    %2444 = vmatpush1.bf16.xpose.msra.mxu0 %v2441
    %2445 = vmatprep.subr.bf16.mxu0 0
    %2446 = vmatpush1.bf16.xpose.msra.mxu0 %v2438
    %2447 = vmatprep.subr.bf16.mxu0 0
    %2448 = vmatpush1.bf16.xpose.msra.mxu0 %v2435
    %2449 = vmatprep.subr.bf16.mxu0 0
    %2450 = vmatpush1.bf16.xpose.msra.mxu0 %v2432
    %2451 = vmatprep.subr.bf16.mxu0 0
    %2452 = vmatpush1.bf16.xpose.msra.mxu0 %v2429
    %2453 = vmatprep.subr.bf16.mxu0 0
    %2454 = vmatpush1.bf16.xpose.msra.mxu0 %v2426
    %2455 = vmatprep.subr.bf16.mxu0 0
    %2456 = vmatpush1.bf16.xpose.msra.mxu0 %v2423
    %2457 = vmatprep.subr.bf16.mxu0 0
    %2458 = vmatpush1.bf16.xpose.msra.mxu0 %v2420
    %2459 = vmatprep.subr.bf16.mxu0 0
    %2460 = vmatpush2.bf16.xpose.msra.mxu0 0
    %2461 = vmatprep.subr.bf16.mxu0 0
    %2462 = vmatpush2.bf16.xpose.msra.mxu0 0
    %2463 = vmatprep.subr.bf16.mxu0 0
    %2464 = vmatpush2.bf16.xpose.msra.mxu0 0
    %2465 = vmatprep.subr.bf16.mxu0 0
    %2466 = vmatpush2.bf16.xpose.msra.mxu0 0
    %2467 = vmatprep.subr.bf16.mxu0 0
    %2468 = vmatpush2.bf16.xpose.msra.mxu0 0
    %2469 = vmatprep.subr.bf16.mxu0 0
    %2470 = vmatpush2.bf16.xpose.msra.mxu0 0
    %2471 = vmatprep.subr.bf16.mxu0 0
    %2472 = vmatpush2.bf16.xpose.msra.mxu0 0
    %2473 = vmatprep.subr.bf16.mxu0 0
    %2474 = vmatpush2.bf16.xpose.msra.mxu0 0
    %2475 = vmatprep.mubr.bf16.mxu0 0
    %2476 = vmatmul.mubr.bf16.gmra.mxu0 %v2417
    %v2477 = vpop.f32.mrf.mxu0
    %v2478 = vadd.f32 0.0, %v2477
    %v2479 = vpop.f32.mrf.mxu0
    %v2480 = vpop.f32.mrf.mxu0
    %v2481 = vpop.f32.mrf.mxu0
    %2482 = vdwg.mxu0
    %v2484 = vrot.slane %v2478, 1
    %v2486 = vrot.slane %v2478, 2
    %v2488 = vrot.slane %v2478, 3
    %v2490 = vlaneseq
    %v2491 = vshrl.u32 %v2490, 7
    %v2492 = vsub.s32 0, %v2491
    %v2493 = vrot.slane %v2478, %v2492
    %v2494 = vlaneseq
    %v2495 = vshrl.u32 %v2494, 7
    %v2496 = vsub.s32 0, %v2495
    %v2497 = vrot.slane %v2484, %v2496
    %v2498 = vlaneseq
    %v2499 = vshrl.u32 %v2498, 7
    %v2500 = vsub.s32 0, %v2499
    %v2501 = vrot.slane %v2486, %v2500
    %v2502 = vlaneseq
    %v2503 = vshrl.u32 %v2502, 7
    %v2504 = vsub.s32 0, %v2503
    %v2505 = vrot.slane %v2488, %v2504
    %v2514 = vunpack.c.l.b16 %v2376
    %v2515 = vunpack.c.h.b16 %v2376
    %v2516 = vunpack.c.l.b16 %v2377
    %v2517 = vunpack.c.h.b16 %v2377
    %v2518 = vunpack.c.l.b16 %v2378
    %v2519 = vunpack.c.h.b16 %v2378
    %v2520 = vunpack.c.l.b16 %v2379
    %v2521 = vunpack.c.h.b16 %v2379
    %v2522 = vunpack.c.l.b16 %v2380
    %v2523 = vunpack.c.h.b16 %v2380
    %v2524 = vunpack.c.l.b16 %v2381
    %v2525 = vunpack.c.h.b16 %v2381
    %v2526 = vunpack.c.l.b16 %v2382
    %v2527 = vunpack.c.h.b16 %v2382
    %v2528 = vunpack.c.l.b16 %v2383
    %v2529 = vunpack.c.h.b16 %v2383
    %v2530 = vpack.c.b16 %v2518, %v2514
    %v2531 = vpack.c.b16 %v2519, %v2515
    %v2532 = vpack.c.b16 %v2520, %v2516
    %v2533 = vpack.c.b16 %v2521, %v2517
    %v2534 = vpack.c.b16 %v2526, %v2522
    %v2535 = vpack.c.b16 %v2527, %v2523
    %v2536 = vpack.c.b16 %v2528, %v2524
    %v2537 = vpack.c.b16 %v2529, %v2525
    %2546 = vmatprep.subr.bf16.mxu0 0
    %2547 = vmatpush1.bf16.msra.mxu0 0
    %2548 = vmatprep.subr.bf16.mxu0 0
    %2549 = vmatpush1.bf16.msra.mxu0 0
    %2550 = vmatprep.subr.bf16.mxu0 0
    %2551 = vmatpush1.bf16.msra.mxu0 0
    %2552 = vmatprep.subr.bf16.mxu0 0
    %2553 = vmatpush1.bf16.msra.mxu0 0
    %2554 = vmatprep.subr.bf16.mxu0 0
    %2555 = vmatpush1.bf16.msra.mxu0 0
    %2556 = vmatprep.subr.bf16.mxu0 0
    %2557 = vmatpush1.bf16.msra.mxu0 0
    %2558 = vmatprep.subr.bf16.mxu0 %v2535
    %2559 = vmatpush1.bf16.msra.mxu0 %v2534
    %2560 = vmatprep.subr.bf16.mxu0 %v2531
    %2561 = vmatpush1.bf16.msra.mxu0 %v2530
    %2562 = vmatprep.subr.bf16.mxu0 0
    %2563 = vmatpush2.bf16.msra.mxu0 0
    %2564 = vmatprep.subr.bf16.mxu0 0
    %2565 = vmatpush2.bf16.msra.mxu0 0
    %2566 = vmatprep.subr.bf16.mxu0 0
    %2567 = vmatpush2.bf16.msra.mxu0 0
    %2568 = vmatprep.subr.bf16.mxu0 0
    %2569 = vmatpush2.bf16.msra.mxu0 0
    %2570 = vmatprep.subr.bf16.mxu0 0
    %2571 = vmatpush2.bf16.msra.mxu0 0
    %2572 = vmatprep.subr.bf16.mxu0 0
    %2573 = vmatpush2.bf16.msra.mxu0 0
    %2574 = vmatprep.subr.bf16.mxu0 0
    %2575 = vmatpush2.bf16.msra.mxu0 0
    %2576 = vmatprep.subr.bf16.mxu0 0
    %2577 = vmatpush2.bf16.msra.mxu0 0
    %2578 = vmatprep.mubr.bf16.mxu0 0
    %2579 = vmatmul.mubr.bf16.gmra.mxu0 %v2420
    %v2580 = vpop.f32.mrf.mxu0
    %v2581 = vadd.f32 %v2493, %v2580
    %v2582 = vpop.f32.mrf.mxu0
    %v2583 = vadd.f32 %v2497, %v2582
    %v2584 = vpop.f32.mrf.mxu0
    %v2585 = vadd.f32 %v2493, %v2584
    %v2586 = vpop.f32.mrf.mxu0
    %v2587 = vadd.f32 %v2497, %v2586
    %2588 = vmatprep.mubr.bf16.mxu0 0
    %2589 = vmatmul.mubr.bf16.gmra.mxu0 %v2423
    %v2590 = vpop.f32.mrf.mxu0
    %v2591 = vadd.f32 %v2493, %v2590
    %v2592 = vpop.f32.mrf.mxu0
    %v2593 = vadd.f32 %v2497, %v2592
    %v2594 = vpop.f32.mrf.mxu0
    %v2595 = vadd.f32 %v2493, %v2594
    %v2596 = vpop.f32.mrf.mxu0
    %v2597 = vadd.f32 %v2497, %v2596
    %2598 = vmatprep.mubr.bf16.mxu0 0
    %2599 = vmatmul.mubr.bf16.gmra.mxu0 %v2426
    %v2600 = vpop.f32.mrf.mxu0
    %v2601 = vadd.f32 %v2493, %v2600
    %v2602 = vpop.f32.mrf.mxu0
    %v2603 = vadd.f32 %v2497, %v2602
    %v2604 = vpop.f32.mrf.mxu0
    %v2605 = vadd.f32 %v2493, %v2604
    %v2606 = vpop.f32.mrf.mxu0
    %v2607 = vadd.f32 %v2497, %v2606
    %2608 = vmatprep.mubr.bf16.mxu0 0
    %2609 = vmatmul.mubr.bf16.gmra.mxu0 %v2429
    %v2610 = vpop.f32.mrf.mxu0
    %v2611 = vadd.f32 %v2493, %v2610
    %v2612 = vpop.f32.mrf.mxu0
    %v2613 = vadd.f32 %v2497, %v2612
    %v2614 = vpop.f32.mrf.mxu0
    %v2615 = vadd.f32 %v2493, %v2614
    %v2616 = vpop.f32.mrf.mxu0
    %v2617 = vadd.f32 %v2497, %v2616
    %2618 = vmatprep.mubr.bf16.mxu0 0
    %2619 = vmatmul.mubr.bf16.gmra.mxu0 %v2432
    %v2620 = vpop.f32.mrf.mxu0
    %v2621 = vadd.f32 %v2493, %v2620
    %v2622 = vpop.f32.mrf.mxu0
    %v2623 = vadd.f32 %v2497, %v2622
    %v2624 = vpop.f32.mrf.mxu0
    %v2625 = vadd.f32 %v2493, %v2624
    %v2626 = vpop.f32.mrf.mxu0
    %v2627 = vadd.f32 %v2497, %v2626
    %2628 = vmatprep.mubr.bf16.mxu0 0
    %2629 = vmatmul.mubr.bf16.gmra.mxu0 %v2435
    %v2630 = vpop.f32.mrf.mxu0
    %v2631 = vadd.f32 %v2493, %v2630
    %v2632 = vpop.f32.mrf.mxu0
    %v2633 = vadd.f32 %v2497, %v2632
    %v2634 = vpop.f32.mrf.mxu0
    %v2635 = vadd.f32 %v2493, %v2634
    %v2636 = vpop.f32.mrf.mxu0
    %v2637 = vadd.f32 %v2497, %v2636
    %2638 = vmatprep.mubr.bf16.mxu0 0
    %2639 = vmatmul.mubr.bf16.gmra.mxu0 %v2438
    %v2640 = vpop.f32.mrf.mxu0
    %v2641 = vadd.f32 %v2493, %v2640
    %v2642 = vpop.f32.mrf.mxu0
    %v2643 = vadd.f32 %v2497, %v2642
    %v2644 = vpop.f32.mrf.mxu0
    %v2645 = vadd.f32 %v2493, %v2644
    %v2646 = vpop.f32.mrf.mxu0
    %v2647 = vadd.f32 %v2497, %v2646
    %2648 = vmatprep.mubr.bf16.mxu0 0
    %2649 = vmatmul.mubr.bf16.gmra.mxu0 %v2441
    %v2650 = vpop.f32.mrf.mxu0
    %v2651 = vadd.f32 %v2493, %v2650
    %v2652 = vpop.f32.mrf.mxu0
    %v2653 = vadd.f32 %v2497, %v2652
    %v2654 = vpop.f32.mrf.mxu0
    %v2655 = vadd.f32 %v2493, %v2654
    %v2656 = vpop.f32.mrf.mxu0
    %v2657 = vadd.f32 %v2497, %v2656
    %2658 = vdwg.mxu0
    %2659 = vmatprep.subr.bf16.mxu0 0
    %2660 = vmatpush1.bf16.msra.mxu0 0
    %2661 = vmatprep.subr.bf16.mxu0 0
    %2662 = vmatpush1.bf16.msra.mxu0 0
    %2663 = vmatprep.subr.bf16.mxu0 0
    %2664 = vmatpush1.bf16.msra.mxu0 0
    %2665 = vmatprep.subr.bf16.mxu0 0
    %2666 = vmatpush1.bf16.msra.mxu0 0
    %2667 = vmatprep.subr.bf16.mxu0 0
    %2668 = vmatpush1.bf16.msra.mxu0 0
    %2669 = vmatprep.subr.bf16.mxu0 0
    %2670 = vmatpush1.bf16.msra.mxu0 0
    %2671 = vmatprep.subr.bf16.mxu0 %v2537
    %2672 = vmatpush1.bf16.msra.mxu0 %v2536
    %2673 = vmatprep.subr.bf16.mxu0 %v2533
    %2674 = vmatpush1.bf16.msra.mxu0 %v2532
    %2675 = vmatprep.subr.bf16.mxu0 0
    %2676 = vmatpush2.bf16.msra.mxu0 0
    %2677 = vmatprep.subr.bf16.mxu0 0
    %2678 = vmatpush2.bf16.msra.mxu0 0
    %2679 = vmatprep.subr.bf16.mxu0 0
    %2680 = vmatpush2.bf16.msra.mxu0 0
    %2681 = vmatprep.subr.bf16.mxu0 0
    %2682 = vmatpush2.bf16.msra.mxu0 0
    %2683 = vmatprep.subr.bf16.mxu0 0
    %2684 = vmatpush2.bf16.msra.mxu0 0
    %2685 = vmatprep.subr.bf16.mxu0 0
    %2686 = vmatpush2.bf16.msra.mxu0 0
    %2687 = vmatprep.subr.bf16.mxu0 0
    %2688 = vmatpush2.bf16.msra.mxu0 0
    %2689 = vmatprep.subr.bf16.mxu0 0
    %2690 = vmatpush2.bf16.msra.mxu0 0
    %2691 = vmatprep.mubr.bf16.mxu0 0
    %2692 = vmatmul.mubr.bf16.gmra.mxu0 %v2420
    %v2693 = vpop.f32.mrf.mxu0
    %v2694 = vadd.f32 %v2501, %v2693
    %v2695 = vpop.f32.mrf.mxu0
    %v2696 = vadd.f32 %v2505, %v2695
    %v2697 = vpop.f32.mrf.mxu0
    %v2698 = vadd.f32 %v2501, %v2697
    %v2699 = vpop.f32.mrf.mxu0
    %v2700 = vadd.f32 %v2505, %v2699
    %2701 = vmatprep.mubr.bf16.mxu0 0
    %2702 = vmatmul.mubr.bf16.gmra.mxu0 %v2423
    %v2703 = vpop.f32.mrf.mxu0
    %v2704 = vadd.f32 %v2501, %v2703
    %v2705 = vpop.f32.mrf.mxu0
    %v2706 = vadd.f32 %v2505, %v2705
    %v2707 = vpop.f32.mrf.mxu0
    %v2708 = vadd.f32 %v2501, %v2707
    %v2709 = vpop.f32.mrf.mxu0
    %v2710 = vadd.f32 %v2505, %v2709
    %2711 = vmatprep.mubr.bf16.mxu0 0
    %2712 = vmatmul.mubr.bf16.gmra.mxu0 %v2426
    %v2713 = vpop.f32.mrf.mxu0
    %v2714 = vadd.f32 %v2501, %v2713
    %v2715 = vpop.f32.mrf.mxu0
    %v2716 = vadd.f32 %v2505, %v2715
    %v2717 = vpop.f32.mrf.mxu0
    %v2718 = vadd.f32 %v2501, %v2717
    %v2719 = vpop.f32.mrf.mxu0
    %v2720 = vadd.f32 %v2505, %v2719
    %2721 = vmatprep.mubr.bf16.mxu0 0
    %2722 = vmatmul.mubr.bf16.gmra.mxu0 %v2429
    %v2723 = vpop.f32.mrf.mxu0
    %v2724 = vadd.f32 %v2501, %v2723
    %v2725 = vpop.f32.mrf.mxu0
    %v2726 = vadd.f32 %v2505, %v2725
    %v2727 = vpop.f32.mrf.mxu0
    %v2728 = vadd.f32 %v2501, %v2727
    %v2729 = vpop.f32.mrf.mxu0
    %v2730 = vadd.f32 %v2505, %v2729
    %2731 = vmatprep.mubr.bf16.mxu0 0
    %2732 = vmatmul.mubr.bf16.gmra.mxu0 %v2432
    %v2733 = vpop.f32.mrf.mxu0
    %v2734 = vadd.f32 %v2501, %v2733
    %v2735 = vpop.f32.mrf.mxu0
    %v2736 = vadd.f32 %v2505, %v2735
    %v2737 = vpop.f32.mrf.mxu0
    %v2738 = vadd.f32 %v2501, %v2737
    %v2739 = vpop.f32.mrf.mxu0
    %v2740 = vadd.f32 %v2505, %v2739
    %2741 = vmatprep.mubr.bf16.mxu0 0
    %2742 = vmatmul.mubr.bf16.gmra.mxu0 %v2435
    %v2743 = vpop.f32.mrf.mxu0
    %v2744 = vadd.f32 %v2501, %v2743
    %v2745 = vpop.f32.mrf.mxu0
    %v2746 = vadd.f32 %v2505, %v2745
    %v2747 = vpop.f32.mrf.mxu0
    %v2748 = vadd.f32 %v2501, %v2747
    %v2749 = vpop.f32.mrf.mxu0
    %v2750 = vadd.f32 %v2505, %v2749
    %2751 = vmatprep.mubr.bf16.mxu0 0
    %2752 = vmatmul.mubr.bf16.gmra.mxu0 %v2438
    %v2753 = vpop.f32.mrf.mxu0
    %v2754 = vadd.f32 %v2501, %v2753
    %v2755 = vpop.f32.mrf.mxu0
    %v2756 = vadd.f32 %v2505, %v2755
    %v2757 = vpop.f32.mrf.mxu0
    %v2758 = vadd.f32 %v2501, %v2757
    %v2759 = vpop.f32.mrf.mxu0
    %v2760 = vadd.f32 %v2505, %v2759
    %2761 = vmatprep.mubr.bf16.mxu0 0
    %2762 = vmatmul.mubr.bf16.gmra.mxu0 %v2441
    %v2763 = vpop.f32.mrf.mxu0
    %v2764 = vadd.f32 %v2501, %v2763
    %v2765 = vpop.f32.mrf.mxu0
    %v2766 = vadd.f32 %v2505, %v2765
    %v2767 = vpop.f32.mrf.mxu0
    %v2768 = vadd.f32 %v2501, %v2767
    %v2769 = vpop.f32.mrf.mxu0
    %v2770 = vadd.f32 %v2505, %v2769
    %2771 = vdwg.mxu0
    %vm2772 = vcmp.gt.f32.partialorder %v2581, 0.0
    %vm2773 = vcmp.gt.f32.partialorder %v2583, 0.0
    %vm2774 = vcmp.gt.f32.partialorder %v2694, 0.0
    %vm2775 = vcmp.gt.f32.partialorder %v2696, 0.0
    %vm2776 = vcmp.gt.f32.partialorder %v2585, 0.0
    %vm2777 = vcmp.gt.f32.partialorder %v2587, 0.0
    %vm2778 = vcmp.gt.f32.partialorder %v2698, 0.0
    %vm2779 = vcmp.gt.f32.partialorder %v2700, 0.0
    %vm2780 = vcmp.gt.f32.partialorder %v2591, 0.0
    %vm2781 = vcmp.gt.f32.partialorder %v2593, 0.0
    %vm2782 = vcmp.gt.f32.partialorder %v2704, 0.0
    %vm2783 = vcmp.gt.f32.partialorder %v2706, 0.0
    %vm2784 = vcmp.gt.f32.partialorder %v2595, 0.0
    %vm2785 = vcmp.gt.f32.partialorder %v2597, 0.0
    %vm2786 = vcmp.gt.f32.partialorder %v2708, 0.0
    %vm2787 = vcmp.gt.f32.partialorder %v2710, 0.0
    %vm2788 = vcmp.gt.f32.partialorder %v2601, 0.0
    %vm2789 = vcmp.gt.f32.partialorder %v2603, 0.0
    %vm2790 = vcmp.gt.f32.partialorder %v2714, 0.0
    %vm2791 = vcmp.gt.f32.partialorder %v2716, 0.0
    %vm2792 = vcmp.gt.f32.partialorder %v2605, 0.0
    %vm2793 = vcmp.gt.f32.partialorder %v2607, 0.0
    %vm2794 = vcmp.gt.f32.partialorder %v2718, 0.0
    %vm2795 = vcmp.gt.f32.partialorder %v2720, 0.0
    %vm2796 = vcmp.gt.f32.partialorder %v2611, 0.0
    %vm2797 = vcmp.gt.f32.partialorder %v2613, 0.0
    %vm2798 = vcmp.gt.f32.partialorder %v2724, 0.0
    %vm2799 = vcmp.gt.f32.partialorder %v2726, 0.0
    %vm2800 = vcmp.gt.f32.partialorder %v2615, 0.0
    %vm2801 = vcmp.gt.f32.partialorder %v2617, 0.0
    %vm2802 = vcmp.gt.f32.partialorder %v2728, 0.0
    %vm2803 = vcmp.gt.f32.partialorder %v2730, 0.0
    %vm2804 = vcmp.gt.f32.partialorder %v2621, 0.0
    %vm2805 = vcmp.gt.f32.partialorder %v2623, 0.0
    %vm2806 = vcmp.gt.f32.partialorder %v2734, 0.0
    %vm2807 = vcmp.gt.f32.partialorder %v2736, 0.0
    %vm2808 = vcmp.gt.f32.partialorder %v2625, 0.0
    %vm2809 = vcmp.gt.f32.partialorder %v2627, 0.0
    %vm2810 = vcmp.gt.f32.partialorder %v2738, 0.0
    %vm2811 = vcmp.gt.f32.partialorder %v2740, 0.0
    %vm2812 = vcmp.gt.f32.partialorder %v2631, 0.0
    %vm2813 = vcmp.gt.f32.partialorder %v2633, 0.0
    %vm2814 = vcmp.gt.f32.partialorder %v2744, 0.0
    %vm2815 = vcmp.gt.f32.partialorder %v2746, 0.0
    %vm2816 = vcmp.gt.f32.partialorder %v2635, 0.0
    %vm2817 = vcmp.gt.f32.partialorder %v2637, 0.0
    %vm2818 = vcmp.gt.f32.partialorder %v2748, 0.0
    %vm2819 = vcmp.gt.f32.partialorder %v2750, 0.0
    %vm2820 = vcmp.gt.f32.partialorder %v2641, 0.0
    %vm2821 = vcmp.gt.f32.partialorder %v2643, 0.0
    %vm2822 = vcmp.gt.f32.partialorder %v2754, 0.0
    %vm2823 = vcmp.gt.f32.partialorder %v2756, 0.0
    %vm2824 = vcmp.gt.f32.partialorder %v2645, 0.0
    %vm2825 = vcmp.gt.f32.partialorder %v2647, 0.0
    %vm2826 = vcmp.gt.f32.partialorder %v2758, 0.0
    %vm2827 = vcmp.gt.f32.partialorder %v2760, 0.0
    %vm2828 = vcmp.gt.f32.partialorder %v2651, 0.0
    %vm2829 = vcmp.gt.f32.partialorder %v2653, 0.0
    %vm2830 = vcmp.gt.f32.partialorder %v2764, 0.0
    %vm2831 = vcmp.gt.f32.partialorder %v2766, 0.0
    %vm2832 = vcmp.gt.f32.partialorder %v2655, 0.0
    %vm2833 = vcmp.gt.f32.partialorder %v2657, 0.0
    %vm2834 = vcmp.gt.f32.partialorder %v2768, 0.0
    %vm2835 = vcmp.gt.f32.partialorder %v2770, 0.0
    %v2836 = vmul.f32 %v2581, 0.2
    %v2837 = vmul.f32 %v2583, 0.2
    %v2838 = vmul.f32 %v2694, 0.2
    %v2839 = vmul.f32 %v2696, 0.2
    %v2840 = vmul.f32 %v2585, 0.2
    %v2841 = vmul.f32 %v2587, 0.2
    %v2842 = vmul.f32 %v2698, 0.2
    %v2843 = vmul.f32 %v2700, 0.2
    %v2844 = vmul.f32 %v2591, 0.2
    %v2845 = vmul.f32 %v2593, 0.2
    %v2846 = vmul.f32 %v2704, 0.2
    %v2847 = vmul.f32 %v2706, 0.2
    %v2848 = vmul.f32 %v2595, 0.2
    %v2849 = vmul.f32 %v2597, 0.2
    %v2850 = vmul.f32 %v2708, 0.2
    %v2851 = vmul.f32 %v2710, 0.2
    %v2852 = vmul.f32 %v2601, 0.2
    %v2853 = vmul.f32 %v2603, 0.2
    %v2854 = vmul.f32 %v2714, 0.2
    %v2855 = vmul.f32 %v2716, 0.2
    %v2856 = vmul.f32 %v2605, 0.2
    %v2857 = vmul.f32 %v2607, 0.2
    %v2858 = vmul.f32 %v2718, 0.2
    %v2859 = vmul.f32 %v2720, 0.2
    %v2860 = vmul.f32 %v2611, 0.2
    %v2861 = vmul.f32 %v2613, 0.2
    %v2862 = vmul.f32 %v2724, 0.2
    %v2863 = vmul.f32 %v2726, 0.2
    %v2864 = vmul.f32 %v2615, 0.2
    %v2865 = vmul.f32 %v2617, 0.2
    %v2866 = vmul.f32 %v2728, 0.2
    %v2867 = vmul.f32 %v2730, 0.2
    %v2868 = vmul.f32 %v2621, 0.2
    %v2869 = vmul.f32 %v2623, 0.2
    %v2870 = vmul.f32 %v2734, 0.2
    %v2871 = vmul.f32 %v2736, 0.2
    %v2872 = vmul.f32 %v2625, 0.2
    %v2873 = vmul.f32 %v2627, 0.2
    %v2874 = vmul.f32 %v2738, 0.2
    %v2875 = vmul.f32 %v2740, 0.2
    %v2876 = vmul.f32 %v2631, 0.2
    %v2877 = vmul.f32 %v2633, 0.2
    %v2878 = vmul.f32 %v2744, 0.2
    %v2879 = vmul.f32 %v2746, 0.2
    %v2880 = vmul.f32 %v2635, 0.2
    %v2881 = vmul.f32 %v2637, 0.2
    %v2882 = vmul.f32 %v2748, 0.2
    %v2883 = vmul.f32 %v2750, 0.2
    %v2884 = vmul.f32 %v2641, 0.2
    %v2885 = vmul.f32 %v2643, 0.2
    %v2886 = vmul.f32 %v2754, 0.2
    %v2887 = vmul.f32 %v2756, 0.2
    %v2888 = vmul.f32 %v2645, 0.2
    %v2889 = vmul.f32 %v2647, 0.2
    %v2890 = vmul.f32 %v2758, 0.2
    %v2891 = vmul.f32 %v2760, 0.2
    %v2892 = vmul.f32 %v2651, 0.2
    %v2893 = vmul.f32 %v2653, 0.2
    %v2894 = vmul.f32 %v2764, 0.2
    %v2895 = vmul.f32 %v2766, 0.2
    %v2896 = vmul.f32 %v2655, 0.2
    %v2897 = vmul.f32 %v2657, 0.2
    %v2898 = vmul.f32 %v2768, 0.2
    %v2899 = vmul.f32 %v2770, 0.2
    %v2900 = vsel %vm2772, %v2581, %v2836
    %v2901 = vsel %vm2773, %v2583, %v2837
    %v2902 = vsel %vm2774, %v2694, %v2838
    %v2903 = vsel %vm2775, %v2696, %v2839
    %v2904 = vsel %vm2776, %v2585, %v2840
    %v2905 = vsel %vm2777, %v2587, %v2841
    %v2906 = vsel %vm2778, %v2698, %v2842
    %v2907 = vsel %vm2779, %v2700, %v2843
    %v2908 = vsel %vm2780, %v2591, %v2844
    %v2909 = vsel %vm2781, %v2593, %v2845
    %v2910 = vsel %vm2782, %v2704, %v2846
    %v2911 = vsel %vm2783, %v2706, %v2847
    %v2912 = vsel %vm2784, %v2595, %v2848
    %v2913 = vsel %vm2785, %v2597, %v2849
    %v2914 = vsel %vm2786, %v2708, %v2850
    %v2915 = vsel %vm2787, %v2710, %v2851
    %v2916 = vsel %vm2788, %v2601, %v2852
    %v2917 = vsel %vm2789, %v2603, %v2853
    %v2918 = vsel %vm2790, %v2714, %v2854
    %v2919 = vsel %vm2791, %v2716, %v2855
    %v2920 = vsel %vm2792, %v2605, %v2856
    %v2921 = vsel %vm2793, %v2607, %v2857
    %v2922 = vsel %vm2794, %v2718, %v2858
    %v2923 = vsel %vm2795, %v2720, %v2859
    %v2924 = vsel %vm2796, %v2611, %v2860
    %v2925 = vsel %vm2797, %v2613, %v2861
    %v2926 = vsel %vm2798, %v2724, %v2862
    %v2927 = vsel %vm2799, %v2726, %v2863
    %v2928 = vsel %vm2800, %v2615, %v2864
    %v2929 = vsel %vm2801, %v2617, %v2865
    %v2930 = vsel %vm2802, %v2728, %v2866
    %v2931 = vsel %vm2803, %v2730, %v2867
    %v2932 = vsel %vm2804, %v2621, %v2868
    %v2933 = vsel %vm2805, %v2623, %v2869
    %v2934 = vsel %vm2806, %v2734, %v2870
    %v2935 = vsel %vm2807, %v2736, %v2871
    %v2936 = vsel %vm2808, %v2625, %v2872
    %v2937 = vsel %vm2809, %v2627, %v2873
    %v2938 = vsel %vm2810, %v2738, %v2874
    %v2939 = vsel %vm2811, %v2740, %v2875
    %v2940 = vsel %vm2812, %v2631, %v2876
    %v2941 = vsel %vm2813, %v2633, %v2877
    %v2942 = vsel %vm2814, %v2744, %v2878
    %v2943 = vsel %vm2815, %v2746, %v2879
    %v2944 = vsel %vm2816, %v2635, %v2880
    %v2945 = vsel %vm2817, %v2637, %v2881
    %v2946 = vsel %vm2818, %v2748, %v2882
    %v2947 = vsel %vm2819, %v2750, %v2883
    %v2948 = vsel %vm2820, %v2641, %v2884
    %v2949 = vsel %vm2821, %v2643, %v2885
    %v2950 = vsel %vm2822, %v2754, %v2886
    %v2951 = vsel %vm2823, %v2756, %v2887
    %v2952 = vsel %vm2824, %v2645, %v2888
    %v2953 = vsel %vm2825, %v2647, %v2889
    %v2954 = vsel %vm2826, %v2758, %v2890
    %v2955 = vsel %vm2827, %v2760, %v2891
    %v2956 = vsel %vm2828, %v2651, %v2892
    %v2957 = vsel %vm2829, %v2653, %v2893
    %v2958 = vsel %vm2830, %v2764, %v2894
    %v2959 = vsel %vm2831, %v2766, %v2895
    %v2960 = vsel %vm2832, %v2655, %v2896
    %v2961 = vsel %vm2833, %v2657, %v2897
    %v2962 = vsel %vm2834, %v2768, %v2898
    %v2963 = vsel %vm2835, %v2770, %v2899
    %v2964 = vmax.f32 %v2900, %v2901
    %v2965 = vmax.f32 %v2964, %v2902
    %v2966 = vmax.f32 %v2965, %v2903
    %2967 = vmax.xlane.f32.xlu0 %v2966
    %v2968 = vpop.xlane.xlu0 %2967
    %v2969 = vmax.f32 %v2904, %v2905
    %v2970 = vmax.f32 %v2969, %v2906
    %v2971 = vmax.f32 %v2970, %v2907
    %2972 = vmax.xlane.f32.xlu0 %v2971
    %v2973 = vpop.xlane.xlu0 %2972
    %v2974 = vmax.f32 %v2908, %v2909
    %v2975 = vmax.f32 %v2974, %v2910
    %v2976 = vmax.f32 %v2975, %v2911
    %2977 = vmax.xlane.f32.xlu0 %v2976
    %v2978 = vpop.xlane.xlu0 %2977
    %v2979 = vmax.f32 %v2912, %v2913
    %v2980 = vmax.f32 %v2979, %v2914
    %v2981 = vmax.f32 %v2980, %v2915
    %2982 = vmax.xlane.f32.xlu0 %v2981
    %v2983 = vpop.xlane.xlu0 %2982
    %v2984 = vmax.f32 %v2916, %v2917
    %v2985 = vmax.f32 %v2984, %v2918
    %v2986 = vmax.f32 %v2985, %v2919
    %2987 = vmax.xlane.f32.xlu0 %v2986
    %v2988 = vpop.xlane.xlu0 %2987
    %v2989 = vmax.f32 %v2920, %v2921
    %v2990 = vmax.f32 %v2989, %v2922
    %v2991 = vmax.f32 %v2990, %v2923
    %2992 = vmax.xlane.f32.xlu0 %v2991
    %v2993 = vpop.xlane.xlu0 %2992
    %v2994 = vmax.f32 %v2924, %v2925
    %v2995 = vmax.f32 %v2994, %v2926
    %v2996 = vmax.f32 %v2995, %v2927
    %2997 = vmax.xlane.f32.xlu0 %v2996
    %v2998 = vpop.xlane.xlu0 %2997
    %v2999 = vmax.f32 %v2928, %v2929
    %v3000 = vmax.f32 %v2999, %v2930
    %v3001 = vmax.f32 %v3000, %v2931
    %3002 = vmax.xlane.f32.xlu0 %v3001
    %v3003 = vpop.xlane.xlu0 %3002
    %v3004 = vmax.f32 %v2932, %v2933
    %v3005 = vmax.f32 %v3004, %v2934
    %v3006 = vmax.f32 %v3005, %v2935
    %3007 = vmax.xlane.f32.xlu0 %v3006
    %v3008 = vpop.xlane.xlu0 %3007
    %v3009 = vmax.f32 %v2936, %v2937
    %v3010 = vmax.f32 %v3009, %v2938
    %v3011 = vmax.f32 %v3010, %v2939
    %3012 = vmax.xlane.f32.xlu0 %v3011
    %v3013 = vpop.xlane.xlu0 %3012
    %v3014 = vmax.f32 %v2940, %v2941
    %v3015 = vmax.f32 %v3014, %v2942
    %v3016 = vmax.f32 %v3015, %v2943
    %3017 = vmax.xlane.f32.xlu0 %v3016
    %v3018 = vpop.xlane.xlu0 %3017
    %v3019 = vmax.f32 %v2944, %v2945
    %v3020 = vmax.f32 %v3019, %v2946
    %v3021 = vmax.f32 %v3020, %v2947
    %3022 = vmax.xlane.f32.xlu0 %v3021
    %v3023 = vpop.xlane.xlu0 %3022
    %v3024 = vmax.f32 %v2948, %v2949
    %v3025 = vmax.f32 %v3024, %v2950
    %v3026 = vmax.f32 %v3025, %v2951
    %3027 = vmax.xlane.f32.xlu0 %v3026
    %v3028 = vpop.xlane.xlu0 %3027
    %v3029 = vmax.f32 %v2952, %v2953
    %v3030 = vmax.f32 %v3029, %v2954
    %v3031 = vmax.f32 %v3030, %v2955
    %3032 = vmax.xlane.f32.xlu0 %v3031
    %v3033 = vpop.xlane.xlu0 %3032
    %v3034 = vmax.f32 %v2956, %v2957
    %v3035 = vmax.f32 %v3034, %v2958
    %v3036 = vmax.f32 %v3035, %v2959
    %3037 = vmax.xlane.f32.xlu0 %v3036
    %v3038 = vpop.xlane.xlu0 %3037
    %v3039 = vmax.f32 %v2960, %v2961
    %v3040 = vmax.f32 %v3039, %v2962
    %v3041 = vmax.f32 %v3040, %v2963
    %3042 = vmax.xlane.f32.xlu0 %v3041
    %v3043 = vpop.xlane.xlu0 %3042
    %v3044 = vsub.f32 %v2900, %v2968
    %v3045 = vsub.f32 %v2901, %v2968
    %v3046 = vsub.f32 %v2902, %v2968
    %v3047 = vsub.f32 %v2903, %v2968
    %v3048 = vsub.f32 %v2904, %v2973
    %v3049 = vsub.f32 %v2905, %v2973
    %v3050 = vsub.f32 %v2906, %v2973
    %v3051 = vsub.f32 %v2907, %v2973
    %v3052 = vsub.f32 %v2908, %v2978
    %v3053 = vsub.f32 %v2909, %v2978
    %v3054 = vsub.f32 %v2910, %v2978
    %v3055 = vsub.f32 %v2911, %v2978
    %v3056 = vsub.f32 %v2912, %v2983
    %v3057 = vsub.f32 %v2913, %v2983
    %v3058 = vsub.f32 %v2914, %v2983
    %v3059 = vsub.f32 %v2915, %v2983
    %v3060 = vsub.f32 %v2916, %v2988
    %v3061 = vsub.f32 %v2917, %v2988
    %v3062 = vsub.f32 %v2918, %v2988
    %v3063 = vsub.f32 %v2919, %v2988
    %v3064 = vsub.f32 %v2920, %v2993
    %v3065 = vsub.f32 %v2921, %v2993
    %v3066 = vsub.f32 %v2922, %v2993
    %v3067 = vsub.f32 %v2923, %v2993
    %v3068 = vsub.f32 %v2924, %v2998
    %v3069 = vsub.f32 %v2925, %v2998
    %v3070 = vsub.f32 %v2926, %v2998
    %v3071 = vsub.f32 %v2927, %v2998
    %v3072 = vsub.f32 %v2928, %v3003
    %v3073 = vsub.f32 %v2929, %v3003
    %v3074 = vsub.f32 %v2930, %v3003
    %v3075 = vsub.f32 %v2931, %v3003
    %v3076 = vsub.f32 %v2932, %v3008
    %v3077 = vsub.f32 %v2933, %v3008
    %v3078 = vsub.f32 %v2934, %v3008
    %v3079 = vsub.f32 %v2935, %v3008
    %v3080 = vsub.f32 %v2936, %v3013
    %v3081 = vsub.f32 %v2937, %v3013
    %v3082 = vsub.f32 %v2938, %v3013
    %v3083 = vsub.f32 %v2939, %v3013
    %v3084 = vsub.f32 %v2940, %v3018
    %v3085 = vsub.f32 %v2941, %v3018
    %v3086 = vsub.f32 %v2942, %v3018
    %v3087 = vsub.f32 %v2943, %v3018
    %v3088 = vsub.f32 %v2944, %v3023
    %v3089 = vsub.f32 %v2945, %v3023
    %v3090 = vsub.f32 %v2946, %v3023
    %v3091 = vsub.f32 %v2947, %v3023
    %v3092 = vsub.f32 %v2948, %v3028
    %v3093 = vsub.f32 %v2949, %v3028
    %v3094 = vsub.f32 %v2950, %v3028
    %v3095 = vsub.f32 %v2951, %v3028
    %v3096 = vsub.f32 %v2952, %v3033
    %v3097 = vsub.f32 %v2953, %v3033
    %v3098 = vsub.f32 %v2954, %v3033
    %v3099 = vsub.f32 %v2955, %v3033
    %v3100 = vsub.f32 %v2956, %v3038
    %v3101 = vsub.f32 %v2957, %v3038
    %v3102 = vsub.f32 %v2958, %v3038
    %v3103 = vsub.f32 %v2959, %v3038
    %v3104 = vsub.f32 %v2960, %v3043
    %v3105 = vsub.f32 %v2961, %v3043
    %v3106 = vsub.f32 %v2962, %v3043
    %v3107 = vsub.f32 %v2963, %v3043
    %v3108 = vmul.f32 %v3044, 1.442695
    %v3109 = vpow.pop %v3108
    %v3110 = vmul.f32 %v3045, 1.442695
    %v3111 = vpow.pop %v3110
    %v3112 = vmul.f32 %v3046, 1.442695
    %v3113 = vpow.pop %v3112
    %v3114 = vmul.f32 %v3047, 1.442695
    %v3115 = vpow.pop %v3114
    %v3116 = vmul.f32 %v3048, 1.442695
    %v3117 = vpow.pop %v3116
    %v3118 = vmul.f32 %v3049, 1.442695
    %v3119 = vpow.pop %v3118
    %v3120 = vmul.f32 %v3050, 1.442695
    %v3121 = vpow.pop %v3120
    %v3122 = vmul.f32 %v3051, 1.442695
    %v3123 = vpow.pop %v3122
    %v3124 = vmul.f32 %v3052, 1.442695
    %v3125 = vpow.pop %v3124
    %v3126 = vmul.f32 %v3053, 1.442695
    %v3127 = vpow.pop %v3126
    %v3128 = vmul.f32 %v3054, 1.442695
    %v3129 = vpow.pop %v3128
    %v3130 = vmul.f32 %v3055, 1.442695
    %v3131 = vpow.pop %v3130
    %v3132 = vmul.f32 %v3056, 1.442695
    %v3133 = vpow.pop %v3132
    %v3134 = vmul.f32 %v3057, 1.442695
    %v3135 = vpow.pop %v3134
    %v3136 = vmul.f32 %v3058, 1.442695
    %v3137 = vpow.pop %v3136
    %v3138 = vmul.f32 %v3059, 1.442695
    %v3139 = vpow.pop %v3138
    %v3140 = vmul.f32 %v3060, 1.442695
    %v3141 = vpow.pop %v3140
    %v3142 = vmul.f32 %v3061, 1.442695
    %v3143 = vpow.pop %v3142
    %v3144 = vmul.f32 %v3062, 1.442695
    %v3145 = vpow.pop %v3144
    %v3146 = vmul.f32 %v3063, 1.442695
    %v3147 = vpow.pop %v3146
    %v3148 = vmul.f32 %v3064, 1.442695
    %v3149 = vpow.pop %v3148
    %v3150 = vmul.f32 %v3065, 1.442695
    %v3151 = vpow.pop %v3150
    %v3152 = vmul.f32 %v3066, 1.442695
    %v3153 = vpow.pop %v3152
    %v3154 = vmul.f32 %v3067, 1.442695
    %v3155 = vpow.pop %v3154
    %v3156 = vmul.f32 %v3068, 1.442695
    %v3157 = vpow.pop %v3156
    %v3158 = vmul.f32 %v3069, 1.442695
    %v3159 = vpow.pop %v3158
    %v3160 = vmul.f32 %v3070, 1.442695
    %v3161 = vpow.pop %v3160
    %v3162 = vmul.f32 %v3071, 1.442695
    %v3163 = vpow.pop %v3162
    %v3164 = vmul.f32 %v3072, 1.442695
    %v3165 = vpow.pop %v3164
    %v3166 = vmul.f32 %v3073, 1.442695
    %v3167 = vpow.pop %v3166
    %v3168 = vmul.f32 %v3074, 1.442695
    %v3169 = vpow.pop %v3168
    %v3170 = vmul.f32 %v3075, 1.442695
    %v3171 = vpow.pop %v3170
    %v3172 = vmul.f32 %v3076, 1.442695
    %v3173 = vpow.pop %v3172
    %v3174 = vmul.f32 %v3077, 1.442695
    %v3175 = vpow.pop %v3174
    %v3176 = vmul.f32 %v3078, 1.442695
    %v3177 = vpow.pop %v3176
    %v3178 = vmul.f32 %v3079, 1.442695
    %v3179 = vpow.pop %v3178
    %v3180 = vmul.f32 %v3080, 1.442695
    %v3181 = vpow.pop %v3180
    %v3182 = vmul.f32 %v3081, 1.442695
    %v3183 = vpow.pop %v3182
    %v3184 = vmul.f32 %v3082, 1.442695
    %v3185 = vpow.pop %v3184
    %v3186 = vmul.f32 %v3083, 1.442695
    %v3187 = vpow.pop %v3186
    %v3188 = vmul.f32 %v3084, 1.442695
    %v3189 = vpow.pop %v3188
    %v3190 = vmul.f32 %v3085, 1.442695
    %v3191 = vpow.pop %v3190
    %v3192 = vmul.f32 %v3086, 1.442695
    %v3193 = vpow.pop %v3192
    %v3194 = vmul.f32 %v3087, 1.442695
    %v3195 = vpow.pop %v3194
    %v3196 = vmul.f32 %v3088, 1.442695
    %v3197 = vpow.pop %v3196
    %v3198 = vmul.f32 %v3089, 1.442695
    %v3199 = vpow.pop %v3198
    %v3200 = vmul.f32 %v3090, 1.442695
    %v3201 = vpow.pop %v3200
    %v3202 = vmul.f32 %v3091, 1.442695
    %v3203 = vpow.pop %v3202
    %v3204 = vmul.f32 %v3092, 1.442695
    %v3205 = vpow.pop %v3204
    %v3206 = vmul.f32 %v3093, 1.442695
    %v3207 = vpow.pop %v3206
    %v3208 = vmul.f32 %v3094, 1.442695
    %v3209 = vpow.pop %v3208
    %v3210 = vmul.f32 %v3095, 1.442695
    %v3211 = vpow.pop %v3210
    %v3212 = vmul.f32 %v3096, 1.442695
    %v3213 = vpow.pop %v3212
    %v3214 = vmul.f32 %v3097, 1.442695
    %v3215 = vpow.pop %v3214
    %v3216 = vmul.f32 %v3098, 1.442695
    %v3217 = vpow.pop %v3216
    %v3218 = vmul.f32 %v3099, 1.442695
    %v3219 = vpow.pop %v3218
    %v3220 = vmul.f32 %v3100, 1.442695
    %v3221 = vpow.pop %v3220
    %v3222 = vmul.f32 %v3101, 1.442695
    %v3223 = vpow.pop %v3222
    %v3224 = vmul.f32 %v3102, 1.442695
    %v3225 = vpow.pop %v3224
    %v3226 = vmul.f32 %v3103, 1.442695
    %v3227 = vpow.pop %v3226
    %v3228 = vmul.f32 %v3104, 1.442695
    %v3229 = vpow.pop %v3228
    %v3230 = vmul.f32 %v3105, 1.442695
    %v3231 = vpow.pop %v3230
    %v3232 = vmul.f32 %v3106, 1.442695
    %v3233 = vpow.pop %v3232
    %v3234 = vmul.f32 %v3107, 1.442695
    %v3235 = vpow.pop %v3234
    %v3236 = vsel %vm1070, %v3109, 0.0
    %v3237 = vsel %vm1070, %v3111, 0.0
    %v3238 = vsel %vm1070, %v3113, 0.0
    %v3239 = vsel %vm1070, %v3115, 0.0
    %v3240 = vsel %vm1071, %v3117, 0.0
    %v3241 = vsel %vm1071, %v3119, 0.0
    %v3242 = vsel %vm1071, %v3121, 0.0
    %v3243 = vsel %vm1071, %v3123, 0.0
    %v3244 = vsel %vm1072, %v3125, 0.0
    %v3245 = vsel %vm1072, %v3127, 0.0
    %v3246 = vsel %vm1072, %v3129, 0.0
    %v3247 = vsel %vm1072, %v3131, 0.0
    %v3248 = vsel %vm1073, %v3133, 0.0
    %v3249 = vsel %vm1073, %v3135, 0.0
    %v3250 = vsel %vm1073, %v3137, 0.0
    %v3251 = vsel %vm1073, %v3139, 0.0
    %v3252 = vsel %vm1074, %v3141, 0.0
    %v3253 = vsel %vm1074, %v3143, 0.0
    %v3254 = vsel %vm1074, %v3145, 0.0
    %v3255 = vsel %vm1074, %v3147, 0.0
    %v3256 = vsel %vm1075, %v3149, 0.0
    %v3257 = vsel %vm1075, %v3151, 0.0
    %v3258 = vsel %vm1075, %v3153, 0.0
    %v3259 = vsel %vm1075, %v3155, 0.0
    %v3260 = vsel %vm1076, %v3157, 0.0
    %v3261 = vsel %vm1076, %v3159, 0.0
    %v3262 = vsel %vm1076, %v3161, 0.0
    %v3263 = vsel %vm1076, %v3163, 0.0
    %v3264 = vsel %vm1077, %v3165, 0.0
    %v3265 = vsel %vm1077, %v3167, 0.0
    %v3266 = vsel %vm1077, %v3169, 0.0
    %v3267 = vsel %vm1077, %v3171, 0.0
    %v3268 = vsel %vm1078, %v3173, 0.0
    %v3269 = vsel %vm1078, %v3175, 0.0
    %v3270 = vsel %vm1078, %v3177, 0.0
    %v3271 = vsel %vm1078, %v3179, 0.0
    %v3272 = vsel %vm1079, %v3181, 0.0
    %v3273 = vsel %vm1079, %v3183, 0.0
    %v3274 = vsel %vm1079, %v3185, 0.0
    %v3275 = vsel %vm1079, %v3187, 0.0
    %v3276 = vsel %vm1080, %v3189, 0.0
    %v3277 = vsel %vm1080, %v3191, 0.0
    %v3278 = vsel %vm1080, %v3193, 0.0
    %v3279 = vsel %vm1080, %v3195, 0.0
    %v3280 = vsel %vm1081, %v3197, 0.0
    %v3281 = vsel %vm1081, %v3199, 0.0
    %v3282 = vsel %vm1081, %v3201, 0.0
    %v3283 = vsel %vm1081, %v3203, 0.0
    %v3284 = vsel %vm1082, %v3205, 0.0
    %v3285 = vsel %vm1082, %v3207, 0.0
    %v3286 = vsel %vm1082, %v3209, 0.0
    %v3287 = vsel %vm1082, %v3211, 0.0
    %v3288 = vsel %vm1083, %v3213, 0.0
    %v3289 = vsel %vm1083, %v3215, 0.0
    %v3290 = vsel %vm1083, %v3217, 0.0
    %v3291 = vsel %vm1083, %v3219, 0.0
    %v3292 = vsel %vm1084, %v3221, 0.0
    %v3293 = vsel %vm1084, %v3223, 0.0
    %v3294 = vsel %vm1084, %v3225, 0.0
    %v3295 = vsel %vm1084, %v3227, 0.0
    %v3296 = vsel %vm1085, %v3229, 0.0
    %v3297 = vsel %vm1085, %v3231, 0.0
    %v3298 = vsel %vm1085, %v3233, 0.0
    %v3299 = vsel %vm1085, %v3235, 0.0
    %3300 = vmatprep.subr.mxu0 0.0
    %3301 = vmatpush1.msra.mxu0 %v125
    %3302 = vmatprep.subr.mxu0 0.0
    %3303 = vmatpush1.msra.mxu0 %v124
    %3304 = vmatprep.subr.mxu0 0.0
    %3305 = vmatpush1.msra.mxu0 %v123
    %3306 = vmatprep.subr.mxu0 0.0
    %3307 = vmatpush1.msra.mxu0 %v122
    %3308 = vmatprep.subr.mxu0 0.0
    %3309 = vmatpush1.msra.mxu0 %v121
    %3310 = vmatprep.subr.mxu0 0.0
    %3311 = vmatpush1.msra.mxu0 %v120
    %3312 = vmatprep.subr.mxu0 0.0
    %3313 = vmatpush1.msra.mxu0 %v119
    %3314 = vmatprep.subr.mxu0 0.0
    %3315 = vmatpush1.msra.mxu0 %v118
    %3316 = vmatprep.subr.mxu0 0.0
    %3317 = vmatpush1.msra.mxu0 %v117
    %3318 = vmatprep.subr.mxu0 0.0
    %3319 = vmatpush1.msra.mxu0 %v116
    %3320 = vmatprep.subr.mxu0 0.0
    %3321 = vmatpush1.msra.mxu0 %v115
    %3322 = vmatprep.subr.mxu0 0.0
    %3323 = vmatpush1.msra.mxu0 %v114
    %3324 = vmatprep.subr.mxu0 0.0
    %3325 = vmatpush1.msra.mxu0 %v113
    %3326 = vmatprep.subr.mxu0 0.0
    %3327 = vmatpush1.msra.mxu0 %v112
    %3328 = vmatprep.subr.mxu0 0.0
    %3329 = vmatpush1.msra.mxu0 %v111
    %3330 = vmatprep.subr.mxu0 0.0
    %3331 = vmatpush1.msra.mxu0 %v110
    %3332 = vmatprep.subr.mxu0 0.0
    %3333 = vmatpush2.msra.mxu0 %v141
    %3334 = vmatprep.subr.mxu0 0.0
    %3335 = vmatpush2.msra.mxu0 %v140
    %3336 = vmatprep.subr.mxu0 0.0
    %3337 = vmatpush2.msra.mxu0 %v139
    %3338 = vmatprep.subr.mxu0 0.0
    %3339 = vmatpush2.msra.mxu0 %v138
    %3340 = vmatprep.subr.mxu0 0.0
    %3341 = vmatpush2.msra.mxu0 %v137
    %3342 = vmatprep.subr.mxu0 0.0
    %3343 = vmatpush2.msra.mxu0 %v136
    %3344 = vmatprep.subr.mxu0 0.0
    %3345 = vmatpush2.msra.mxu0 %v135
    %3346 = vmatprep.subr.mxu0 0.0
    %3347 = vmatpush2.msra.mxu0 %v134
    %3348 = vmatprep.subr.mxu0 0.0
    %3349 = vmatpush2.msra.mxu0 %v133
    %3350 = vmatprep.subr.mxu0 0.0
    %3351 = vmatpush2.msra.mxu0 %v132
    %3352 = vmatprep.subr.mxu0 0.0
    %3353 = vmatpush2.msra.mxu0 %v131
    %3354 = vmatprep.subr.mxu0 0.0
    %3355 = vmatpush2.msra.mxu0 %v130
    %3356 = vmatprep.subr.mxu0 0.0
    %3357 = vmatpush2.msra.mxu0 %v129
    %3358 = vmatprep.subr.mxu0 0.0
    %3359 = vmatpush2.msra.mxu0 %v128
    %3360 = vmatprep.subr.mxu0 0.0
    %3361 = vmatpush2.msra.mxu0 %v127
    %3362 = vmatprep.subr.mxu0 0.0
    %3363 = vmatpush2.msra.mxu0 %v126
    %3364 = vmatprep.mubr.f32.mxu0 %v3237
    %3365 = vmatmul.mubr.f32.gmra.mxu0 %v3236
    %v3366 = vpop.f32.mrf.mxu0
    %v3367 = vadd.f32 0.0, %v3366
    %v3368 = vpop.f32.mrf.mxu0
    %3369 = vmatprep.mubr.f32.mxu0 %v3241
    %3370 = vmatmul.mubr.f32.gmra.mxu0 %v3240
    %v3371 = vpop.f32.mrf.mxu0
    %v3372 = vadd.f32 0.0, %v3371
    %v3373 = vpop.f32.mrf.mxu0
    %3374 = vmatprep.mubr.f32.mxu0 %v3245
    %3375 = vmatmul.mubr.f32.gmra.mxu0 %v3244
    %v3376 = vpop.f32.mrf.mxu0
    %v3377 = vadd.f32 0.0, %v3376
    %v3378 = vpop.f32.mrf.mxu0
    %3379 = vmatprep.mubr.f32.mxu0 %v3249
    %3380 = vmatmul.mubr.f32.gmra.mxu0 %v3248
    %v3381 = vpop.f32.mrf.mxu0
    %v3382 = vadd.f32 0.0, %v3381
    %v3383 = vpop.f32.mrf.mxu0
    %3384 = vmatprep.mubr.f32.mxu0 %v3253
    %3385 = vmatmul.mubr.f32.gmra.mxu0 %v3252
    %v3386 = vpop.f32.mrf.mxu0
    %v3387 = vadd.f32 0.0, %v3386
    %v3388 = vpop.f32.mrf.mxu0
    %3389 = vmatprep.mubr.f32.mxu0 %v3257
    %3390 = vmatmul.mubr.f32.gmra.mxu0 %v3256
    %v3391 = vpop.f32.mrf.mxu0
    %v3392 = vadd.f32 0.0, %v3391
    %v3393 = vpop.f32.mrf.mxu0
    %3394 = vmatprep.mubr.f32.mxu0 %v3261
    %3395 = vmatmul.mubr.f32.gmra.mxu0 %v3260
    %v3396 = vpop.f32.mrf.mxu0
    %v3397 = vadd.f32 0.0, %v3396
    %v3398 = vpop.f32.mrf.mxu0
    %3399 = vmatprep.mubr.f32.mxu0 %v3265
    %3400 = vmatmul.mubr.f32.gmra.mxu0 %v3264
    %v3401 = vpop.f32.mrf.mxu0
    %v3402 = vadd.f32 0.0, %v3401
    %v3403 = vpop.f32.mrf.mxu0
    %3404 = vmatprep.mubr.f32.mxu0 %v3269
    %3405 = vmatmul.mubr.f32.gmra.mxu0 %v3268
    %v3406 = vpop.f32.mrf.mxu0
    %v3407 = vadd.f32 0.0, %v3406
    %v3408 = vpop.f32.mrf.mxu0
    %3409 = vmatprep.mubr.f32.mxu0 %v3273
    %3410 = vmatmul.mubr.f32.gmra.mxu0 %v3272
    %v3411 = vpop.f32.mrf.mxu0
    %v3412 = vadd.f32 0.0, %v3411
    %v3413 = vpop.f32.mrf.mxu0
    %3414 = vmatprep.mubr.f32.mxu0 %v3277
    %3415 = vmatmul.mubr.f32.gmra.mxu0 %v3276
    %v3416 = vpop.f32.mrf.mxu0
    %v3417 = vadd.f32 0.0, %v3416
    %v3418 = vpop.f32.mrf.mxu0
    %3419 = vmatprep.mubr.f32.mxu0 %v3281
    %3420 = vmatmul.mubr.f32.gmra.mxu0 %v3280
    %v3421 = vpop.f32.mrf.mxu0
    %v3422 = vadd.f32 0.0, %v3421
    %v3423 = vpop.f32.mrf.mxu0
    %3424 = vmatprep.mubr.f32.mxu0 %v3285
    %3425 = vmatmul.mubr.f32.gmra.mxu0 %v3284
    %v3426 = vpop.f32.mrf.mxu0
    %v3427 = vadd.f32 0.0, %v3426
    %v3428 = vpop.f32.mrf.mxu0
    %3429 = vmatprep.mubr.f32.mxu0 %v3289
    %3430 = vmatmul.mubr.f32.gmra.mxu0 %v3288
    %v3431 = vpop.f32.mrf.mxu0
    %v3432 = vadd.f32 0.0, %v3431
    %v3433 = vpop.f32.mrf.mxu0
    %3434 = vmatprep.mubr.f32.mxu0 %v3293
    %3435 = vmatmul.mubr.f32.gmra.mxu0 %v3292
    %v3436 = vpop.f32.mrf.mxu0
    %v3437 = vadd.f32 0.0, %v3436
    %v3438 = vpop.f32.mrf.mxu0
    %3439 = vmatprep.mubr.f32.mxu0 %v3297
    %3440 = vmatmul.mubr.f32.gmra.mxu0 %v3296
    %v3441 = vpop.f32.mrf.mxu0
    %v3442 = vadd.f32 0.0, %v3441
    %v3443 = vpop.f32.mrf.mxu0
    %3444 = vdwg.mxu0
    %3445 = vmatprep.subr.mxu0 0.0
    %3446 = vmatpush1.msra.mxu0 %v157
    %3447 = vmatprep.subr.mxu0 0.0
    %3448 = vmatpush1.msra.mxu0 %v156
    %3449 = vmatprep.subr.mxu0 0.0
    %3450 = vmatpush1.msra.mxu0 %v155
    %3451 = vmatprep.subr.mxu0 0.0
    %3452 = vmatpush1.msra.mxu0 %v154
    %3453 = vmatprep.subr.mxu0 0.0
    %3454 = vmatpush1.msra.mxu0 %v153
    %3455 = vmatprep.subr.mxu0 0.0
    %3456 = vmatpush1.msra.mxu0 %v152
    %3457 = vmatprep.subr.mxu0 0.0
    %3458 = vmatpush1.msra.mxu0 %v151
    %3459 = vmatprep.subr.mxu0 0.0
    %3460 = vmatpush1.msra.mxu0 %v150
    %3461 = vmatprep.subr.mxu0 0.0
    %3462 = vmatpush1.msra.mxu0 %v149
    %3463 = vmatprep.subr.mxu0 0.0
    %3464 = vmatpush1.msra.mxu0 %v148
    %3465 = vmatprep.subr.mxu0 0.0
    %3466 = vmatpush1.msra.mxu0 %v147
    %3467 = vmatprep.subr.mxu0 0.0
    %3468 = vmatpush1.msra.mxu0 %v146
    %3469 = vmatprep.subr.mxu0 0.0
    %3470 = vmatpush1.msra.mxu0 %v145
    %3471 = vmatprep.subr.mxu0 0.0
    %3472 = vmatpush1.msra.mxu0 %v144
    %3473 = vmatprep.subr.mxu0 0.0
    %3474 = vmatpush1.msra.mxu0 %v143
    %3475 = vmatprep.subr.mxu0 0.0
    %3476 = vmatpush1.msra.mxu0 %v142
    %3477 = vmatprep.subr.mxu0 0.0
    %3478 = vmatpush2.msra.mxu0 %v173
    %3479 = vmatprep.subr.mxu0 0.0
    %3480 = vmatpush2.msra.mxu0 %v172
    %3481 = vmatprep.subr.mxu0 0.0
    %3482 = vmatpush2.msra.mxu0 %v171
    %3483 = vmatprep.subr.mxu0 0.0
    %3484 = vmatpush2.msra.mxu0 %v170
    %3485 = vmatprep.subr.mxu0 0.0
    %3486 = vmatpush2.msra.mxu0 %v169
    %3487 = vmatprep.subr.mxu0 0.0
    %3488 = vmatpush2.msra.mxu0 %v168
    %3489 = vmatprep.subr.mxu0 0.0
    %3490 = vmatpush2.msra.mxu0 %v167
    %3491 = vmatprep.subr.mxu0 0.0
    %3492 = vmatpush2.msra.mxu0 %v166
    %3493 = vmatprep.subr.mxu0 0.0
    %3494 = vmatpush2.msra.mxu0 %v165
    %3495 = vmatprep.subr.mxu0 0.0
    %3496 = vmatpush2.msra.mxu0 %v164
    %3497 = vmatprep.subr.mxu0 0.0
    %3498 = vmatpush2.msra.mxu0 %v163
    %3499 = vmatprep.subr.mxu0 0.0
    %3500 = vmatpush2.msra.mxu0 %v162
    %3501 = vmatprep.subr.mxu0 0.0
    %3502 = vmatpush2.msra.mxu0 %v161
    %3503 = vmatprep.subr.mxu0 0.0
    %3504 = vmatpush2.msra.mxu0 %v160
    %3505 = vmatprep.subr.mxu0 0.0
    %3506 = vmatpush2.msra.mxu0 %v159
    %3507 = vmatprep.subr.mxu0 0.0
    %3508 = vmatpush2.msra.mxu0 %v158
    %3509 = vmatprep.mubr.f32.mxu0 %v3239
    %3510 = vmatmul.mubr.f32.gmra.mxu0 %v3238
    %v3511 = vpop.f32.mrf.mxu0
    %v3512 = vadd.f32 %v3367, %v3511
    %v3513 = vpop.f32.mrf.mxu0
    %3514 = vmatprep.mubr.f32.mxu0 %v3243
    %3515 = vmatmul.mubr.f32.gmra.mxu0 %v3242
    %v3516 = vpop.f32.mrf.mxu0
    %v3517 = vadd.f32 %v3372, %v3516
    %v3518 = vpop.f32.mrf.mxu0
    %3519 = vmatprep.mubr.f32.mxu0 %v3247
    %3520 = vmatmul.mubr.f32.gmra.mxu0 %v3246
    %v3521 = vpop.f32.mrf.mxu0
    %v3522 = vadd.f32 %v3377, %v3521
    %v3523 = vpop.f32.mrf.mxu0
    %3524 = vmatprep.mubr.f32.mxu0 %v3251
    %3525 = vmatmul.mubr.f32.gmra.mxu0 %v3250
    %v3526 = vpop.f32.mrf.mxu0
    %v3527 = vadd.f32 %v3382, %v3526
    %v3528 = vpop.f32.mrf.mxu0
    %3529 = vmatprep.mubr.f32.mxu0 %v3255
    %3530 = vmatmul.mubr.f32.gmra.mxu0 %v3254
    %v3531 = vpop.f32.mrf.mxu0
    %v3532 = vadd.f32 %v3387, %v3531
    %v3533 = vpop.f32.mrf.mxu0
    %3534 = vmatprep.mubr.f32.mxu0 %v3259
    %3535 = vmatmul.mubr.f32.gmra.mxu0 %v3258
    %v3536 = vpop.f32.mrf.mxu0
    %v3537 = vadd.f32 %v3392, %v3536
    %v3538 = vpop.f32.mrf.mxu0
    %3539 = vmatprep.mubr.f32.mxu0 %v3263
    %3540 = vmatmul.mubr.f32.gmra.mxu0 %v3262
    %v3541 = vpop.f32.mrf.mxu0
    %v3542 = vadd.f32 %v3397, %v3541
    %v3543 = vpop.f32.mrf.mxu0
    %3544 = vmatprep.mubr.f32.mxu0 %v3267
    %3545 = vmatmul.mubr.f32.gmra.mxu0 %v3266
    %v3546 = vpop.f32.mrf.mxu0
    %v3547 = vadd.f32 %v3402, %v3546
    %v3548 = vpop.f32.mrf.mxu0
    %3549 = vmatprep.mubr.f32.mxu0 %v3271
    %3550 = vmatmul.mubr.f32.gmra.mxu0 %v3270
    %v3551 = vpop.f32.mrf.mxu0
    %v3552 = vadd.f32 %v3407, %v3551
    %v3553 = vpop.f32.mrf.mxu0
    %3554 = vmatprep.mubr.f32.mxu0 %v3275
    %3555 = vmatmul.mubr.f32.gmra.mxu0 %v3274
    %v3556 = vpop.f32.mrf.mxu0
    %v3557 = vadd.f32 %v3412, %v3556
    %v3558 = vpop.f32.mrf.mxu0
    %3559 = vmatprep.mubr.f32.mxu0 %v3279
    %3560 = vmatmul.mubr.f32.gmra.mxu0 %v3278
    %v3561 = vpop.f32.mrf.mxu0
    %v3562 = vadd.f32 %v3417, %v3561
    %v3563 = vpop.f32.mrf.mxu0
    %3564 = vmatprep.mubr.f32.mxu0 %v3283
    %3565 = vmatmul.mubr.f32.gmra.mxu0 %v3282
    %v3566 = vpop.f32.mrf.mxu0
    %v3567 = vadd.f32 %v3422, %v3566
    %v3568 = vpop.f32.mrf.mxu0
    %3569 = vmatprep.mubr.f32.mxu0 %v3287
    %3570 = vmatmul.mubr.f32.gmra.mxu0 %v3286
    %v3571 = vpop.f32.mrf.mxu0
    %v3572 = vadd.f32 %v3427, %v3571
    %v3573 = vpop.f32.mrf.mxu0
    %3574 = vmatprep.mubr.f32.mxu0 %v3291
    %3575 = vmatmul.mubr.f32.gmra.mxu0 %v3290
    %v3576 = vpop.f32.mrf.mxu0
    %v3577 = vadd.f32 %v3432, %v3576
    %v3578 = vpop.f32.mrf.mxu0
    %3579 = vmatprep.mubr.f32.mxu0 %v3295
    %3580 = vmatmul.mubr.f32.gmra.mxu0 %v3294
    %v3581 = vpop.f32.mrf.mxu0
    %v3582 = vadd.f32 %v3437, %v3581
    %v3583 = vpop.f32.mrf.mxu0
    %3584 = vmatprep.mubr.f32.mxu0 %v3299
    %3585 = vmatmul.mubr.f32.gmra.mxu0 %v3298
    %v3586 = vpop.f32.mrf.mxu0
    %v3587 = vadd.f32 %v3442, %v3586
    %v3588 = vpop.f32.mrf.mxu0
    %3589 = vdwg.mxu0
    %v3590 = vrcp.pop %v3512
    %v3591 = vrcp.pop %v3517
    %v3592 = vrcp.pop %v3522
    %v3593 = vrcp.pop %v3527
    %v3594 = vrcp.pop %v3532
    %v3595 = vrcp.pop %v3537
    %v3596 = vrcp.pop %v3542
    %v3597 = vrcp.pop %v3547
    %v3598 = vrcp.pop %v3552
    %v3599 = vrcp.pop %v3557
    %v3600 = vrcp.pop %v3562
    %v3601 = vrcp.pop %v3567
    %v3602 = vrcp.pop %v3572
    %v3603 = vrcp.pop %v3577
    %v3604 = vrcp.pop %v3582
    %v3605 = vrcp.pop %v3587
    %v3607 = vsel %vm1648, %v3590, 0
    %v3610 = vsel %vm1648, %v3591, 0
    %v3613 = vsel %vm1648, %v3592, 0
    %v3616 = vsel %vm1648, %v3593, 0
    %v3619 = vsel %vm1648, %v3594, 0
    %v3622 = vsel %vm1648, %v3595, 0
    %v3625 = vsel %vm1648, %v3596, 0
    %v3628 = vsel %vm1648, %v3597, 0
    %v3631 = vsel %vm1648, %v3598, 0
    %v3634 = vsel %vm1648, %v3599, 0
    %v3637 = vsel %vm1648, %v3600, 0
    %v3640 = vsel %vm1648, %v3601, 0
    %v3643 = vsel %vm1648, %v3602, 0
    %v3646 = vsel %vm1648, %v3603, 0
    %v3649 = vsel %vm1648, %v3604, 0
    %v3652 = vsel %vm1648, %v3605, 0
    %3654 = vmatprep.subr.mxu0 0.0
    %3655 = vmatpush1.msra.mxu0 0.0
    %3656 = vmatprep.subr.mxu0 0.0
    %3657 = vmatpush1.msra.mxu0 0.0
    %3658 = vmatprep.subr.mxu0 0.0
    %3659 = vmatpush1.msra.mxu0 0.0
    %3660 = vmatprep.subr.mxu0 0.0
    %3661 = vmatpush1.msra.mxu0 0.0
    %3662 = vmatprep.subr.mxu0 0.0
    %3663 = vmatpush1.msra.mxu0 0.0
    %3664 = vmatprep.subr.mxu0 0.0
    %3665 = vmatpush1.msra.mxu0 0.0
    %3666 = vmatprep.subr.mxu0 0.0
    %3667 = vmatpush1.msra.mxu0 0.0
    %3668 = vmatprep.subr.mxu0 0.0
    %3669 = vmatpush1.msra.mxu0 0.0
    %3670 = vmatprep.subr.mxu0 0.0
    %3671 = vmatpush1.msra.mxu0 0.0
    %3672 = vmatprep.subr.mxu0 0.0
    %3673 = vmatpush1.msra.mxu0 0.0
    %3674 = vmatprep.subr.mxu0 0.0
    %3675 = vmatpush1.msra.mxu0 0.0
    %3676 = vmatprep.subr.mxu0 0.0
    %3677 = vmatpush1.msra.mxu0 0.0
    %3678 = vmatprep.subr.mxu0 0.0
    %3679 = vmatpush1.msra.mxu0 0.0
    %3680 = vmatprep.subr.mxu0 0.0
    %3681 = vmatpush1.msra.mxu0 0.0
    %3682 = vmatprep.subr.mxu0 0.0
    %3683 = vmatpush1.msra.mxu0 0.0
    %3684 = vmatprep.subr.mxu0 0.0
    %3685 = vmatpush1.msra.mxu0 %v1699
    %3686 = vmatprep.subr.mxu0 0.0
    %3687 = vmatpush2.msra.mxu0 0.0
    %3688 = vmatprep.subr.mxu0 0.0
    %3689 = vmatpush2.msra.mxu0 0.0
    %3690 = vmatprep.subr.mxu0 0.0
    %3691 = vmatpush2.msra.mxu0 0.0
    %3692 = vmatprep.subr.mxu0 0.0
    %3693 = vmatpush2.msra.mxu0 0.0
    %3694 = vmatprep.subr.mxu0 0.0
    %3695 = vmatpush2.msra.mxu0 0.0
    %3696 = vmatprep.subr.mxu0 0.0
    %3697 = vmatpush2.msra.mxu0 0.0
    %3698 = vmatprep.subr.mxu0 0.0
    %3699 = vmatpush2.msra.mxu0 0.0
    %3700 = vmatprep.subr.mxu0 0.0
    %3701 = vmatpush2.msra.mxu0 0.0
    %3702 = vmatprep.subr.mxu0 0.0
    %3703 = vmatpush2.msra.mxu0 0.0
    %3704 = vmatprep.subr.mxu0 0.0
    %3705 = vmatpush2.msra.mxu0 0.0
    %3706 = vmatprep.subr.mxu0 0.0
    %3707 = vmatpush2.msra.mxu0 0.0
    %3708 = vmatprep.subr.mxu0 0.0
    %3709 = vmatpush2.msra.mxu0 0.0
    %3710 = vmatprep.subr.mxu0 0.0
    %3711 = vmatpush2.msra.mxu0 0.0
    %3712 = vmatprep.subr.mxu0 0.0
    %3713 = vmatpush2.msra.mxu0 0.0
    %3714 = vmatprep.subr.mxu0 0.0
    %3715 = vmatpush2.msra.mxu0 0.0
    %3716 = vmatprep.subr.mxu0 0.0
    %3717 = vmatpush2.msra.mxu0 0.0
    %3718 = vmatprep.mubr.f32.mxu0 0.0
    %3719 = vmatmul.mubr.f32.gmra.mxu0 %v3607
    %v3720 = vpop.f32.mrf.mxu0
    %v3721 = vadd.f32 0.0, %v3720
    %v3722 = vpop.f32.mrf.mxu0
    %3723 = vmatprep.mubr.f32.mxu0 0.0
    %3724 = vmatmul.mubr.f32.gmra.mxu0 %v3610
    %v3725 = vpop.f32.mrf.mxu0
    %v3726 = vadd.f32 0.0, %v3725
    %v3727 = vpop.f32.mrf.mxu0
    %3728 = vmatprep.mubr.f32.mxu0 0.0
    %3729 = vmatmul.mubr.f32.gmra.mxu0 %v3613
    %v3730 = vpop.f32.mrf.mxu0
    %v3731 = vadd.f32 0.0, %v3730
    %v3732 = vpop.f32.mrf.mxu0
    %3733 = vmatprep.mubr.f32.mxu0 0.0
    %3734 = vmatmul.mubr.f32.gmra.mxu0 %v3616
    %v3735 = vpop.f32.mrf.mxu0
    %v3736 = vadd.f32 0.0, %v3735
    %v3737 = vpop.f32.mrf.mxu0
    %3738 = vmatprep.mubr.f32.mxu0 0.0
    %3739 = vmatmul.mubr.f32.gmra.mxu0 %v3619
    %v3740 = vpop.f32.mrf.mxu0
    %v3741 = vadd.f32 0.0, %v3740
    %v3742 = vpop.f32.mrf.mxu0
    %3743 = vmatprep.mubr.f32.mxu0 0.0
    %3744 = vmatmul.mubr.f32.gmra.mxu0 %v3622
    %v3745 = vpop.f32.mrf.mxu0
    %v3746 = vadd.f32 0.0, %v3745
    %v3747 = vpop.f32.mrf.mxu0
    %3748 = vmatprep.mubr.f32.mxu0 0.0
    %3749 = vmatmul.mubr.f32.gmra.mxu0 %v3625
    %v3750 = vpop.f32.mrf.mxu0
    %v3751 = vadd.f32 0.0, %v3750
    %v3752 = vpop.f32.mrf.mxu0
    %3753 = vmatprep.mubr.f32.mxu0 0.0
    %3754 = vmatmul.mubr.f32.gmra.mxu0 %v3628
    %v3755 = vpop.f32.mrf.mxu0
    %v3756 = vadd.f32 0.0, %v3755
    %v3757 = vpop.f32.mrf.mxu0
    %3758 = vmatprep.mubr.f32.mxu0 0.0
    %3759 = vmatmul.mubr.f32.gmra.mxu0 %v3631
    %v3760 = vpop.f32.mrf.mxu0
    %v3761 = vadd.f32 0.0, %v3760
    %v3762 = vpop.f32.mrf.mxu0
    %3763 = vmatprep.mubr.f32.mxu0 0.0
    %3764 = vmatmul.mubr.f32.gmra.mxu0 %v3634
    %v3765 = vpop.f32.mrf.mxu0
    %v3766 = vadd.f32 0.0, %v3765
    %v3767 = vpop.f32.mrf.mxu0
    %3768 = vmatprep.mubr.f32.mxu0 0.0
    %3769 = vmatmul.mubr.f32.gmra.mxu0 %v3637
    %v3770 = vpop.f32.mrf.mxu0
    %v3771 = vadd.f32 0.0, %v3770
    %v3772 = vpop.f32.mrf.mxu0
    %3773 = vmatprep.mubr.f32.mxu0 0.0
    %3774 = vmatmul.mubr.f32.gmra.mxu0 %v3640
    %v3775 = vpop.f32.mrf.mxu0
    %v3776 = vadd.f32 0.0, %v3775
    %v3777 = vpop.f32.mrf.mxu0
    %3778 = vmatprep.mubr.f32.mxu0 0.0
    %3779 = vmatmul.mubr.f32.gmra.mxu0 %v3643
    %v3780 = vpop.f32.mrf.mxu0
    %v3781 = vadd.f32 0.0, %v3780
    %v3782 = vpop.f32.mrf.mxu0
    %3783 = vmatprep.mubr.f32.mxu0 0.0
    %3784 = vmatmul.mubr.f32.gmra.mxu0 %v3646
    %v3785 = vpop.f32.mrf.mxu0
    %v3786 = vadd.f32 0.0, %v3785
    %v3787 = vpop.f32.mrf.mxu0
    %3788 = vmatprep.mubr.f32.mxu0 0.0
    %3789 = vmatmul.mubr.f32.gmra.mxu0 %v3649
    %v3790 = vpop.f32.mrf.mxu0
    %v3791 = vadd.f32 0.0, %v3790
    %v3792 = vpop.f32.mrf.mxu0
    %3793 = vmatprep.mubr.f32.mxu0 0.0
    %3794 = vmatmul.mubr.f32.gmra.mxu0 %v3652
    %v3795 = vpop.f32.mrf.mxu0
    %v3796 = vadd.f32 0.0, %v3795
    %v3797 = vpop.f32.mrf.mxu0
    %3798 = vdwg.mxu0
    %v3799 = vmul.f32 %v2306, %v175
    %v3800 = vmul.f32 %v2309, %v176
    %v3801 = vmul.f32 %v2314, %v177
    %v3802 = vmul.f32 %v2317, %v178
    %v3803 = vmul.f32 %v2322, %v179
    %v3804 = vmul.f32 %v2325, %v180
    %v3805 = vmul.f32 %v2330, %v181
    %v3806 = vmul.f32 %v2333, %v182
    %v3807 = vmul.f32 %v2338, %v183
    %v3808 = vmul.f32 %v2341, %v184
    %v3809 = vmul.f32 %v2346, %v185
    %v3810 = vmul.f32 %v2349, %v186
    %v3811 = vmul.f32 %v2354, %v187
    %v3812 = vmul.f32 %v2357, %v188
    %v3813 = vmul.f32 %v2362, %v189
    %v3814 = vmul.f32 %v2365, %v190
    %v3815 = vmul.f32 %v2306, %v191
    %v3816 = vmul.f32 %v2309, %v192
    %v3817 = vmul.f32 %v2314, %v193
    %v3818 = vmul.f32 %v2317, %v194
    %v3819 = vmul.f32 %v2322, %v195
    %v3820 = vmul.f32 %v2325, %v196
    %v3821 = vmul.f32 %v2330, %v197
    %v3822 = vmul.f32 %v2333, %v198
    %v3823 = vmul.f32 %v2338, %v199
    %v3824 = vmul.f32 %v2341, %v200
    %v3825 = vmul.f32 %v2346, %v201
    %v3826 = vmul.f32 %v2349, %v202
    %v3827 = vmul.f32 %v2354, %v203
    %v3828 = vmul.f32 %v2357, %v204
    %v3829 = vmul.f32 %v2362, %v205
    %v3830 = vmul.f32 %v2365, %v206
    %v3831 = vmul.f32 %v2306, %v207
    %v3832 = vmul.f32 %v2309, %v208
    %v3833 = vmul.f32 %v2314, %v209
    %v3834 = vmul.f32 %v2317, %v210
    %v3835 = vmul.f32 %v2322, %v211
    %v3836 = vmul.f32 %v2325, %v212
    %v3837 = vmul.f32 %v2330, %v213
    %v3838 = vmul.f32 %v2333, %v214
    %v3839 = vmul.f32 %v2338, %v215
    %v3840 = vmul.f32 %v2341, %v216
    %v3841 = vmul.f32 %v2346, %v217
    %v3842 = vmul.f32 %v2349, %v218
    %v3843 = vmul.f32 %v2354, %v219
    %v3844 = vmul.f32 %v2357, %v220
    %v3845 = vmul.f32 %v2362, %v221
    %v3846 = vmul.f32 %v2365, %v222
    %v3847 = vmul.f32 %v2306, %v223
    %v3848 = vmul.f32 %v2309, %v224
    %v3849 = vmul.f32 %v2314, %v225
    %v3850 = vmul.f32 %v2317, %v226
    %v3851 = vmul.f32 %v2322, %v227
    %v3852 = vmul.f32 %v2325, %v228
    %v3853 = vmul.f32 %v2330, %v229
    %v3854 = vmul.f32 %v2333, %v230
    %v3855 = vmul.f32 %v2338, %v231
    %v3856 = vmul.f32 %v2341, %v232
    %v3857 = vmul.f32 %v2346, %v233
    %v3858 = vmul.f32 %v2349, %v234
    %v3859 = vmul.f32 %v2354, %v235
    %v3860 = vmul.f32 %v2357, %v236
    %v3861 = vmul.f32 %v2362, %v237
    %v3862 = vmul.f32 %v2365, %v238
    %v3863 = vpack.c.bf16 %v3800, %v3799
    %v3864 = vpack.c.bf16 %v3802, %v3801
    %v3865 = vpack.c.bf16 %v3804, %v3803
    %v3866 = vpack.c.bf16 %v3806, %v3805
    %v3867 = vpack.c.bf16 %v3808, %v3807
    %v3868 = vpack.c.bf16 %v3810, %v3809
    %v3869 = vpack.c.bf16 %v3812, %v3811
    %v3870 = vpack.c.bf16 %v3814, %v3813
    %v3871 = vpack.c.bf16 %v3816, %v3815
    %v3872 = vpack.c.bf16 %v3818, %v3817
    %v3873 = vpack.c.bf16 %v3820, %v3819
    %v3874 = vpack.c.bf16 %v3822, %v3821
    %v3875 = vpack.c.bf16 %v3824, %v3823
    %v3876 = vpack.c.bf16 %v3826, %v3825
    %v3877 = vpack.c.bf16 %v3828, %v3827
    %v3878 = vpack.c.bf16 %v3830, %v3829
    %v3879 = vpack.c.bf16 %v3832, %v3831
    %v3880 = vpack.c.bf16 %v3834, %v3833
    %v3881 = vpack.c.bf16 %v3836, %v3835
    %v3882 = vpack.c.bf16 %v3838, %v3837
    %v3883 = vpack.c.bf16 %v3840, %v3839
    %v3884 = vpack.c.bf16 %v3842, %v3841
    %v3885 = vpack.c.bf16 %v3844, %v3843
    %v3886 = vpack.c.bf16 %v3846, %v3845
    %v3887 = vpack.c.bf16 %v3848, %v3847
    %v3888 = vpack.c.bf16 %v3850, %v3849
    %v3889 = vpack.c.bf16 %v3852, %v3851
    %v3890 = vpack.c.bf16 %v3854, %v3853
    %v3891 = vpack.c.bf16 %v3856, %v3855
    %v3892 = vpack.c.bf16 %v3858, %v3857
    %v3893 = vpack.c.bf16 %v3860, %v3859
    %v3894 = vpack.c.bf16 %v3862, %v3861
    %v3895 = vpack.c.bf16 %v3240, %v3236
    %v3896 = vpack.c.bf16 %v3241, %v3237
    %v3897 = vpack.c.bf16 %v3242, %v3238
    %v3898 = vpack.c.bf16 %v3243, %v3239
    %v3899 = vpack.c.bf16 %v3248, %v3244
    %v3900 = vpack.c.bf16 %v3249, %v3245
    %v3901 = vpack.c.bf16 %v3250, %v3246
    %v3902 = vpack.c.bf16 %v3251, %v3247
    %v3903 = vpack.c.bf16 %v3256, %v3252
    %v3904 = vpack.c.bf16 %v3257, %v3253
    %v3905 = vpack.c.bf16 %v3258, %v3254
    %v3906 = vpack.c.bf16 %v3259, %v3255
    %v3907 = vpack.c.bf16 %v3264, %v3260
    %v3908 = vpack.c.bf16 %v3265, %v3261
    %v3909 = vpack.c.bf16 %v3266, %v3262
    %v3910 = vpack.c.bf16 %v3267, %v3263
    %v3911 = vpack.c.bf16 %v3272, %v3268
    %v3912 = vpack.c.bf16 %v3273, %v3269
    %v3913 = vpack.c.bf16 %v3274, %v3270
    %v3914 = vpack.c.bf16 %v3275, %v3271
    %v3915 = vpack.c.bf16 %v3280, %v3276
    %v3916 = vpack.c.bf16 %v3281, %v3277
    %v3917 = vpack.c.bf16 %v3282, %v3278
    %v3918 = vpack.c.bf16 %v3283, %v3279
    %v3919 = vpack.c.bf16 %v3288, %v3284
    %v3920 = vpack.c.bf16 %v3289, %v3285
    %v3921 = vpack.c.bf16 %v3290, %v3286
    %v3922 = vpack.c.bf16 %v3291, %v3287
    %v3923 = vpack.c.bf16 %v3296, %v3292
    %v3924 = vpack.c.bf16 %v3297, %v3293
    %v3925 = vpack.c.bf16 %v3298, %v3294
    %v3926 = vpack.c.bf16 %v3299, %v3295
    %3927 = vmatprep.subr.bf16.mxu0 0
    %3928 = vmatpush1.bf16.msra.mxu0 %v3870
    %3929 = vmatprep.subr.bf16.mxu0 0
    %3930 = vmatpush1.bf16.msra.mxu0 %v3869
    %3931 = vmatprep.subr.bf16.mxu0 0
    %3932 = vmatpush1.bf16.msra.mxu0 %v3868
    %3933 = vmatprep.subr.bf16.mxu0 0
    %3934 = vmatpush1.bf16.msra.mxu0 %v3867
    %3935 = vmatprep.subr.bf16.mxu0 0
    %3936 = vmatpush1.bf16.msra.mxu0 %v3866
    %3937 = vmatprep.subr.bf16.mxu0 0
    %3938 = vmatpush1.bf16.msra.mxu0 %v3865
    %3939 = vmatprep.subr.bf16.mxu0 0
    %3940 = vmatpush1.bf16.msra.mxu0 %v3864
    %3941 = vmatprep.subr.bf16.mxu0 0
    %3942 = vmatpush1.bf16.msra.mxu0 %v3863
    %3943 = vmatprep.subr.bf16.mxu0 0
    %3944 = vmatpush2.bf16.msra.mxu0 %v3878
    %3945 = vmatprep.subr.bf16.mxu0 0
    %3946 = vmatpush2.bf16.msra.mxu0 %v3877
    %3947 = vmatprep.subr.bf16.mxu0 0
    %3948 = vmatpush2.bf16.msra.mxu0 %v3876
    %3949 = vmatprep.subr.bf16.mxu0 0
    %3950 = vmatpush2.bf16.msra.mxu0 %v3875
    %3951 = vmatprep.subr.bf16.mxu0 0
    %3952 = vmatpush2.bf16.msra.mxu0 %v3874
    %3953 = vmatprep.subr.bf16.mxu0 0
    %3954 = vmatpush2.bf16.msra.mxu0 %v3873
    %3955 = vmatprep.subr.bf16.mxu0 0
    %3956 = vmatpush2.bf16.msra.mxu0 %v3872
    %3957 = vmatprep.subr.bf16.mxu0 0
    %3958 = vmatpush2.bf16.msra.mxu0 %v3871
    %3959 = vmatprep.mubr.bf16.mxu0 %v3896
    %3960 = vmatmul.mubr.bf16.gmra.mxu0 %v3895
    %v3961 = vpop.f32.mrf.mxu0
    %v3962 = vadd.f32 0.0, %v3961
    %v3963 = vpop.f32.mrf.mxu0
    %v3964 = vpop.f32.mrf.mxu0
    %v3965 = vadd.f32 0.0, %v3964
    %v3966 = vpop.f32.mrf.mxu0
    %3967 = vmatprep.mubr.bf16.mxu0 %v3900
    %3968 = vmatmul.mubr.bf16.gmra.mxu0 %v3899
    %v3969 = vpop.f32.mrf.mxu0
    %v3970 = vadd.f32 0.0, %v3969
    %v3971 = vpop.f32.mrf.mxu0
    %v3972 = vpop.f32.mrf.mxu0
    %v3973 = vadd.f32 0.0, %v3972
    %v3974 = vpop.f32.mrf.mxu0
    %3975 = vmatprep.mubr.bf16.mxu0 %v3904
    %3976 = vmatmul.mubr.bf16.gmra.mxu0 %v3903
    %v3977 = vpop.f32.mrf.mxu0
    %v3978 = vadd.f32 0.0, %v3977
    %v3979 = vpop.f32.mrf.mxu0
    %v3980 = vpop.f32.mrf.mxu0
    %v3981 = vadd.f32 0.0, %v3980
    %v3982 = vpop.f32.mrf.mxu0
    %3983 = vmatprep.mubr.bf16.mxu0 %v3908
    %3984 = vmatmul.mubr.bf16.gmra.mxu0 %v3907
    %v3985 = vpop.f32.mrf.mxu0
    %v3986 = vadd.f32 0.0, %v3985
    %v3987 = vpop.f32.mrf.mxu0
    %v3988 = vpop.f32.mrf.mxu0
    %v3989 = vadd.f32 0.0, %v3988
    %v3990 = vpop.f32.mrf.mxu0
    %3991 = vmatprep.mubr.bf16.mxu0 %v3912
    %3992 = vmatmul.mubr.bf16.gmra.mxu0 %v3911
    %v3993 = vpop.f32.mrf.mxu0
    %v3994 = vadd.f32 0.0, %v3993
    %v3995 = vpop.f32.mrf.mxu0
    %v3996 = vpop.f32.mrf.mxu0
    %v3997 = vadd.f32 0.0, %v3996
    %v3998 = vpop.f32.mrf.mxu0
    %3999 = vmatprep.mubr.bf16.mxu0 %v3916
    %4000 = vmatmul.mubr.bf16.gmra.mxu0 %v3915
    %v4001 = vpop.f32.mrf.mxu0
    %v4002 = vadd.f32 0.0, %v4001
    %v4003 = vpop.f32.mrf.mxu0
    %v4004 = vpop.f32.mrf.mxu0
    %v4005 = vadd.f32 0.0, %v4004
    %v4006 = vpop.f32.mrf.mxu0
    %4007 = vmatprep.mubr.bf16.mxu0 %v3920
    %4008 = vmatmul.mubr.bf16.gmra.mxu0 %v3919
    %v4009 = vpop.f32.mrf.mxu0
    %v4010 = vadd.f32 0.0, %v4009
    %v4011 = vpop.f32.mrf.mxu0
    %v4012 = vpop.f32.mrf.mxu0
    %v4013 = vadd.f32 0.0, %v4012
    %v4014 = vpop.f32.mrf.mxu0
    %4015 = vmatprep.mubr.bf16.mxu0 %v3924
    %4016 = vmatmul.mubr.bf16.gmra.mxu0 %v3923
    %v4017 = vpop.f32.mrf.mxu0
    %v4018 = vadd.f32 0.0, %v4017
    %v4019 = vpop.f32.mrf.mxu0
    %v4020 = vpop.f32.mrf.mxu0
    %v4021 = vadd.f32 0.0, %v4020
    %v4022 = vpop.f32.mrf.mxu0
    %4023 = vdwg.mxu0
    %4024 = vmatprep.subr.bf16.mxu0 0
    %4025 = vmatpush1.bf16.msra.mxu0 %v3886
    %4026 = vmatprep.subr.bf16.mxu0 0
    %4027 = vmatpush1.bf16.msra.mxu0 %v3885
    %4028 = vmatprep.subr.bf16.mxu0 0
    %4029 = vmatpush1.bf16.msra.mxu0 %v3884
    %4030 = vmatprep.subr.bf16.mxu0 0
    %4031 = vmatpush1.bf16.msra.mxu0 %v3883
    %4032 = vmatprep.subr.bf16.mxu0 0
    %4033 = vmatpush1.bf16.msra.mxu0 %v3882
    %4034 = vmatprep.subr.bf16.mxu0 0
    %4035 = vmatpush1.bf16.msra.mxu0 %v3881
    %4036 = vmatprep.subr.bf16.mxu0 0
    %4037 = vmatpush1.bf16.msra.mxu0 %v3880
    %4038 = vmatprep.subr.bf16.mxu0 0
    %4039 = vmatpush1.bf16.msra.mxu0 %v3879
    %4040 = vmatprep.subr.bf16.mxu0 0
    %4041 = vmatpush2.bf16.msra.mxu0 %v3894
    %4042 = vmatprep.subr.bf16.mxu0 0
    %4043 = vmatpush2.bf16.msra.mxu0 %v3893
    %4044 = vmatprep.subr.bf16.mxu0 0
    %4045 = vmatpush2.bf16.msra.mxu0 %v3892
    %4046 = vmatprep.subr.bf16.mxu0 0
    %4047 = vmatpush2.bf16.msra.mxu0 %v3891
    %4048 = vmatprep.subr.bf16.mxu0 0
    %4049 = vmatpush2.bf16.msra.mxu0 %v3890
    %4050 = vmatprep.subr.bf16.mxu0 0
    %4051 = vmatpush2.bf16.msra.mxu0 %v3889
    %4052 = vmatprep.subr.bf16.mxu0 0
    %4053 = vmatpush2.bf16.msra.mxu0 %v3888
    %4054 = vmatprep.subr.bf16.mxu0 0
    %4055 = vmatpush2.bf16.msra.mxu0 %v3887
    %4056 = vmatprep.mubr.bf16.mxu0 %v3898
    %4057 = vmatmul.mubr.bf16.gmra.mxu0 %v3897
    %v4058 = vpop.f32.mrf.mxu0
    %v4059 = vadd.f32 %v3962, %v4058
    %v4060 = vpop.f32.mrf.mxu0
    %v4061 = vpop.f32.mrf.mxu0
    %v4062 = vadd.f32 %v3965, %v4061
    %v4063 = vpop.f32.mrf.mxu0
    %4064 = vmatprep.mubr.bf16.mxu0 %v3902
    %4065 = vmatmul.mubr.bf16.gmra.mxu0 %v3901
    %v4066 = vpop.f32.mrf.mxu0
    %v4067 = vadd.f32 %v3970, %v4066
    %v4068 = vpop.f32.mrf.mxu0
    %v4069 = vpop.f32.mrf.mxu0
    %v4070 = vadd.f32 %v3973, %v4069
    %v4071 = vpop.f32.mrf.mxu0
    %4072 = vmatprep.mubr.bf16.mxu0 %v3906
    %4073 = vmatmul.mubr.bf16.gmra.mxu0 %v3905
    %v4074 = vpop.f32.mrf.mxu0
    %v4075 = vadd.f32 %v3978, %v4074
    %v4076 = vpop.f32.mrf.mxu0
    %v4077 = vpop.f32.mrf.mxu0
    %v4078 = vadd.f32 %v3981, %v4077
    %v4079 = vpop.f32.mrf.mxu0
    %4080 = vmatprep.mubr.bf16.mxu0 %v3910
    %4081 = vmatmul.mubr.bf16.gmra.mxu0 %v3909
    %v4082 = vpop.f32.mrf.mxu0
    %v4083 = vadd.f32 %v3986, %v4082
    %v4084 = vpop.f32.mrf.mxu0
    %v4085 = vpop.f32.mrf.mxu0
    %v4086 = vadd.f32 %v3989, %v4085
    %v4087 = vpop.f32.mrf.mxu0
    %4088 = vmatprep.mubr.bf16.mxu0 %v3914
    %4089 = vmatmul.mubr.bf16.gmra.mxu0 %v3913
    %v4090 = vpop.f32.mrf.mxu0
    %v4091 = vadd.f32 %v3994, %v4090
    %v4092 = vpop.f32.mrf.mxu0
    %v4093 = vpop.f32.mrf.mxu0
    %v4094 = vadd.f32 %v3997, %v4093
    %v4095 = vpop.f32.mrf.mxu0
    %4096 = vmatprep.mubr.bf16.mxu0 %v3918
    %4097 = vmatmul.mubr.bf16.gmra.mxu0 %v3917
    %v4098 = vpop.f32.mrf.mxu0
    %v4099 = vadd.f32 %v4002, %v4098
    %v4100 = vpop.f32.mrf.mxu0
    %v4101 = vpop.f32.mrf.mxu0
    %v4102 = vadd.f32 %v4005, %v4101
    %v4103 = vpop.f32.mrf.mxu0
    %4104 = vmatprep.mubr.bf16.mxu0 %v3922
    %4105 = vmatmul.mubr.bf16.gmra.mxu0 %v3921
    %v4106 = vpop.f32.mrf.mxu0
    %v4107 = vadd.f32 %v4010, %v4106
    %v4108 = vpop.f32.mrf.mxu0
    %v4109 = vpop.f32.mrf.mxu0
    %v4110 = vadd.f32 %v4013, %v4109
    %v4111 = vpop.f32.mrf.mxu0
    %4112 = vmatprep.mubr.bf16.mxu0 %v3926
    %4113 = vmatmul.mubr.bf16.gmra.mxu0 %v3925
    %v4114 = vpop.f32.mrf.mxu0
    %v4115 = vadd.f32 %v4018, %v4114
    %v4116 = vpop.f32.mrf.mxu0
    %v4117 = vpop.f32.mrf.mxu0
    %v4118 = vadd.f32 %v4021, %v4117
    %v4119 = vpop.f32.mrf.mxu0
    %4120 = vdwg.mxu0
    %v4121 = vmul.f32 %v4059, %v3721
    %v4122 = vmul.f32 %v4062, %v3726
    %v4123 = vmul.f32 %v4067, %v3731
    %v4124 = vmul.f32 %v4070, %v3736
    %v4125 = vmul.f32 %v4075, %v3741
    %v4126 = vmul.f32 %v4078, %v3746
    %v4127 = vmul.f32 %v4083, %v3751
    %v4128 = vmul.f32 %v4086, %v3756
    %v4129 = vmul.f32 %v4091, %v3761
    %v4130 = vmul.f32 %v4094, %v3766
    %v4131 = vmul.f32 %v4099, %v3771
    %v4132 = vmul.f32 %v4102, %v3776
    %v4133 = vmul.f32 %v4107, %v3781
    %v4134 = vmul.f32 %v4110, %v3786
    %v4135 = vmul.f32 %v4115, %v3791
    %v4136 = vmul.f32 %v4118, %v3796
    %v4137 = vld [vmem:[%s13] sm:$0x1]
    %v4139 = vlaneseq
    %v4140 = vshrl.u32 %v4139, 7
    %v4141 = vsub.s32 0, %v4140
    %v4142 = vrot.slane %v4137, %v4141
    %v4144 = vadd.f32 %v4121, %v4142
    %v4145 = vadd.f32 %v4122, %v4142
    %v4146 = vadd.f32 %v4123, %v4142
    %v4147 = vadd.f32 %v4124, %v4142
    %v4148 = vadd.f32 %v4125, %v4142
    %v4149 = vadd.f32 %v4126, %v4142
    %v4150 = vadd.f32 %v4127, %v4142
    %v4151 = vadd.f32 %v4128, %v4142
    %v4152 = vadd.f32 %v4129, %v4142
    %v4153 = vadd.f32 %v4130, %v4142
    %v4154 = vadd.f32 %v4131, %v4142
    %v4155 = vadd.f32 %v4132, %v4142
    %v4156 = vadd.f32 %v4133, %v4142
    %v4157 = vadd.f32 %v4134, %v4142
    %v4158 = vadd.f32 %v4135, %v4142
    %v4159 = vadd.f32 %v4136, %v4142
    %v4160 = vmax.f32 %v4144, 0.0
    %v4161 = vmax.f32 %v4145, 0.0
    %v4162 = vmax.f32 %v4146, 0.0
    %v4163 = vmax.f32 %v4147, 0.0
    %v4164 = vmax.f32 %v4148, 0.0
    %v4165 = vmax.f32 %v4149, 0.0
    %v4166 = vmax.f32 %v4150, 0.0
    %v4167 = vmax.f32 %v4151, 0.0
    %v4168 = vmax.f32 %v4152, 0.0
    %v4169 = vmax.f32 %v4153, 0.0
    %v4170 = vmax.f32 %v4154, 0.0
    %v4171 = vmax.f32 %v4155, 0.0
    %v4172 = vmax.f32 %v4156, 0.0
    %v4173 = vmax.f32 %v4157, 0.0
    %v4174 = vmax.f32 %v4158, 0.0
    %v4175 = vmax.f32 %v4159, 0.0
    %v4176 = vld [vmem:[%s2] sm:$0xf]
    %v4177 = vld [vmem:[%s2 + $0x4] sm:$0xf]
    %v4178 = vpack.c.bf16 %v4161, %v4160
    %v4179 = vpack.c.bf16 %v4163, %v4162
    %v4180 = vpack.c.bf16 %v4165, %v4164
    %v4181 = vpack.c.bf16 %v4167, %v4166
    %v4182 = vpack.c.bf16 %v4169, %v4168
    %v4183 = vpack.c.bf16 %v4171, %v4170
    %v4184 = vpack.c.bf16 %v4173, %v4172
    %v4185 = vpack.c.bf16 %v4175, %v4174
    %v4188 = vunpack.c.l.b16 %v4176
    %v4189 = vunpack.c.l.b16 %v4177
    %v4190 = vpack.c.b16 %v4189, %v4188
    %4192 = vmatprep.subr.bf16.mxu0 0
    %4193 = vmatpush1.bf16.msra.mxu0 %v4185
    %4194 = vmatprep.subr.bf16.mxu0 0
    %4195 = vmatpush1.bf16.msra.mxu0 %v4184
    %4196 = vmatprep.subr.bf16.mxu0 0
    %4197 = vmatpush1.bf16.msra.mxu0 %v4183
    %4198 = vmatprep.subr.bf16.mxu0 0
    %4199 = vmatpush1.bf16.msra.mxu0 %v4182
    %4200 = vmatprep.subr.bf16.mxu0 0
    %4201 = vmatpush1.bf16.msra.mxu0 %v4181
    %4202 = vmatprep.subr.bf16.mxu0 0
    %4203 = vmatpush1.bf16.msra.mxu0 %v4180
    %4204 = vmatprep.subr.bf16.mxu0 0
    %4205 = vmatpush1.bf16.msra.mxu0 %v4179
    %4206 = vmatprep.subr.bf16.mxu0 0
    %4207 = vmatpush1.bf16.msra.mxu0 %v4178
    %4208 = vmatprep.subr.bf16.mxu0 0
    %4209 = vmatpush2.bf16.msra.mxu0 0
    %4210 = vmatprep.subr.bf16.mxu0 0
    %4211 = vmatpush2.bf16.msra.mxu0 0
    %4212 = vmatprep.subr.bf16.mxu0 0
    %4213 = vmatpush2.bf16.msra.mxu0 0
    %4214 = vmatprep.subr.bf16.mxu0 0
    %4215 = vmatpush2.bf16.msra.mxu0 0
    %4216 = vmatprep.subr.bf16.mxu0 0
    %4217 = vmatpush2.bf16.msra.mxu0 0
    %4218 = vmatprep.subr.bf16.mxu0 0
    %4219 = vmatpush2.bf16.msra.mxu0 0
    %4220 = vmatprep.subr.bf16.mxu0 0
    %4221 = vmatpush2.bf16.msra.mxu0 0
    %4222 = vmatprep.subr.bf16.mxu0 0
    %4223 = vmatpush2.bf16.msra.mxu0 0
    %4224 = vmatprep.mubr.bf16.mxu0 0
    %4225 = vmatmul.mubr.bf16.gmra.mxu0 %v4190
    %v4226 = vpop.f32.mrf.mxu0
    %v4227 = vadd.f32 0.0, %v4226
    %v4228 = vpop.f32.mrf.mxu0
    %v4229 = vpop.f32.mrf.mxu0
    %v4230 = vadd.f32 0.0, %v4229
    %v4231 = vpop.f32.mrf.mxu0
    %4232 = vdwg.mxu0
    %v4233 = vpack.c.bf16 %v4230, %v4227
    %v4234 = vld [vmem:[%s14] sm:$0xf]
    %v4235 = vld [vmem:[%s14 + $0x4] sm:$0xf]
    %v4236 = vld [vmem:[%s14 + $0x8] sm:$0xf]
    %v4237 = vld [vmem:[%s14 + $0xc] sm:$0xf]
    %v4238 = vld [vmem:[%s15] sm:$0x1]
    %v4240 = vlaneseq
    %v4241 = vshrl.u32 %v4240, 7
    %v4242 = vsub.s32 0, %v4241
    %v4243 = vrot.slane %v4238, %v4242
    %v4249 = vunpack.c.l.b16 %v4234
    %v4250 = vunpack.c.l.b16 %v4235
    %v4251 = vunpack.c.l.b16 %v4236
    %v4252 = vunpack.c.l.b16 %v4237
    %v4253 = vpack.c.b16 %v4250, %v4249
    %v4254 = vpack.c.b16 %v4252, %v4251
    %v4258 = vsel %vm441, %v4233, 0
    %4260 = vmatprep.subr.bf16.mxu0 0
    %4261 = vmatpush1.bf16.msra.mxu0 0
    %4262 = vmatprep.subr.bf16.mxu0 0
    %4263 = vmatpush1.bf16.msra.mxu0 0
    %4264 = vmatprep.subr.bf16.mxu0 0
    %4265 = vmatpush1.bf16.msra.mxu0 0
    %4266 = vmatprep.subr.bf16.mxu0 0
    %4267 = vmatpush1.bf16.msra.mxu0 0
    %4268 = vmatprep.subr.bf16.mxu0 0
    %4269 = vmatpush1.bf16.msra.mxu0 0
    %4270 = vmatprep.subr.bf16.mxu0 0
    %4271 = vmatpush1.bf16.msra.mxu0 0
    %4272 = vmatprep.subr.bf16.mxu0 0
    %4273 = vmatpush1.bf16.msra.mxu0 %v4254
    %4274 = vmatprep.subr.bf16.mxu0 0
    %4275 = vmatpush1.bf16.msra.mxu0 %v4253
    %4276 = vmatprep.subr.bf16.mxu0 0
    %4277 = vmatpush2.bf16.msra.mxu0 0
    %4278 = vmatprep.subr.bf16.mxu0 0
    %4279 = vmatpush2.bf16.msra.mxu0 0
    %4280 = vmatprep.subr.bf16.mxu0 0
    %4281 = vmatpush2.bf16.msra.mxu0 0
    %4282 = vmatprep.subr.bf16.mxu0 0
    %4283 = vmatpush2.bf16.msra.mxu0 0
    %4284 = vmatprep.subr.bf16.mxu0 0
    %4285 = vmatpush2.bf16.msra.mxu0 0
    %4286 = vmatprep.subr.bf16.mxu0 0
    %4287 = vmatpush2.bf16.msra.mxu0 0
    %4288 = vmatprep.subr.bf16.mxu0 0
    %4289 = vmatpush2.bf16.msra.mxu0 0
    %4290 = vmatprep.subr.bf16.mxu0 0
    %4291 = vmatpush2.bf16.msra.mxu0 0
    %4292 = vmatprep.mubr.bf16.mxu0 0
    %4293 = vmatmul.mubr.bf16.gmra.mxu0 %v4258
    %v4294 = vpop.f32.mrf.mxu0
    %v4295 = vadd.f32 %v4243, %v4294
    %v4296 = vpop.f32.mrf.mxu0
    %v4297 = vpop.f32.mrf.mxu0
    %v4298 = vadd.f32 %v4243, %v4297
    %v4299 = vpop.f32.mrf.mxu0
    %4300 = vdwg.mxu0
    %v4301 = vmax.f32 %v4295, 0.0
    %v4302 = vmax.f32 %v4298, 0.0
    %v4303 = vpack.c.bf16 %v4302, %v4301
    %v4304 = vld [vmem:[%s16] sm:$0xf]
    %v4305 = vld [vmem:[%s16 + $0x4] sm:$0xf]
    %v4306 = vld [vmem:[%s16 + $0x8] sm:$0xf]
    %v4307 = vld [vmem:[%s16 + $0xc] sm:$0xf]
    %v4308 = vld [vmem:[%s16 + $0x10] sm:$0xf]
    %v4309 = vld [vmem:[%s16 + $0x14] sm:$0xf]
    %v4310 = vld [vmem:[%s16 + $0x18] sm:$0xf]
    %v4311 = vld [vmem:[%s16 + $0x1c] sm:$0xf]
    %v4312 = vld [vmem:[%s16 + $0x20] sm:$0xf]
    %v4313 = vld [vmem:[%s16 + $0x24] sm:$0xf]
    %v4314 = vld [vmem:[%s16 + $0x28] sm:$0xf]
    %v4315 = vld [vmem:[%s16 + $0x2c] sm:$0xf]
    %v4316 = vld [vmem:[%s16 + $0x30] sm:$0xf]
    %v4317 = vld [vmem:[%s16 + $0x34] sm:$0xf]
    %v4318 = vld [vmem:[%s16 + $0x38] sm:$0xf]
    %v4319 = vld [vmem:[%s16 + $0x3c] sm:$0xf]
    %v4320 = vld [vmem:[%s17] sm:$0x1]
    %v4322 = vlaneseq
    %v4323 = vshrl.u32 %v4322, 7
    %v4324 = vsub.s32 0, %v4323
    %v4325 = vrot.slane %v4320, %v4324
    %v4343 = vunpack.c.l.b16 %v4304
    %v4344 = vunpack.c.l.b16 %v4305
    %v4345 = vunpack.c.l.b16 %v4306
    %v4346 = vunpack.c.l.b16 %v4307
    %v4347 = vunpack.c.l.b16 %v4308
    %v4348 = vunpack.c.l.b16 %v4309
    %v4349 = vunpack.c.l.b16 %v4310
    %v4350 = vunpack.c.l.b16 %v4311
    %v4351 = vunpack.c.l.b16 %v4312
    %v4352 = vunpack.c.l.b16 %v4313
    %v4353 = vunpack.c.l.b16 %v4314
    %v4354 = vunpack.c.l.b16 %v4315
    %v4355 = vunpack.c.l.b16 %v4316
    %v4356 = vunpack.c.l.b16 %v4317
    %v4357 = vunpack.c.l.b16 %v4318
    %v4358 = vunpack.c.l.b16 %v4319
    %v4359 = vpack.c.b16 %v4344, %v4343
    %v4360 = vpack.c.b16 %v4346, %v4345
    %v4361 = vpack.c.b16 %v4348, %v4347
    %v4362 = vpack.c.b16 %v4350, %v4349
    %v4363 = vpack.c.b16 %v4352, %v4351
    %v4364 = vpack.c.b16 %v4354, %v4353
    %v4365 = vpack.c.b16 %v4356, %v4355
    %v4366 = vpack.c.b16 %v4358, %v4357
    %4375 = vmatprep.subr.bf16.mxu0 0
    %4376 = vmatpush1.bf16.msra.mxu0 %v4366
    %4377 = vmatprep.subr.bf16.mxu0 0
    %4378 = vmatpush1.bf16.msra.mxu0 %v4365
    %4379 = vmatprep.subr.bf16.mxu0 0
    %4380 = vmatpush1.bf16.msra.mxu0 %v4364
    %4381 = vmatprep.subr.bf16.mxu0 0
    %4382 = vmatpush1.bf16.msra.mxu0 %v4363
    %4383 = vmatprep.subr.bf16.mxu0 0
    %4384 = vmatpush1.bf16.msra.mxu0 %v4362
    %4385 = vmatprep.subr.bf16.mxu0 0
    %4386 = vmatpush1.bf16.msra.mxu0 %v4361
    %4387 = vmatprep.subr.bf16.mxu0 0
    %4388 = vmatpush1.bf16.msra.mxu0 %v4360
    %4389 = vmatprep.subr.bf16.mxu0 0
    %4390 = vmatpush1.bf16.msra.mxu0 %v4359
    %4391 = vmatprep.subr.bf16.mxu0 0
    %4392 = vmatpush2.bf16.msra.mxu0 0
    %4393 = vmatprep.subr.bf16.mxu0 0
    %4394 = vmatpush2.bf16.msra.mxu0 0
    %4395 = vmatprep.subr.bf16.mxu0 0
    %4396 = vmatpush2.bf16.msra.mxu0 0
    %4397 = vmatprep.subr.bf16.mxu0 0
    %4398 = vmatpush2.bf16.msra.mxu0 0
    %4399 = vmatprep.subr.bf16.mxu0 0
    %4400 = vmatpush2.bf16.msra.mxu0 0
    %4401 = vmatprep.subr.bf16.mxu0 0
    %4402 = vmatpush2.bf16.msra.mxu0 0
    %4403 = vmatprep.subr.bf16.mxu0 0
    %4404 = vmatpush2.bf16.msra.mxu0 0
    %4405 = vmatprep.subr.bf16.mxu0 0
    %4406 = vmatpush2.bf16.msra.mxu0 0
    %4407 = vmatprep.mubr.bf16.mxu0 0
    %4408 = vmatmul.mubr.bf16.gmra.mxu0 %v4303
    %v4409 = vpop.f32.mrf.mxu0
    %v4410 = vadd.f32 %v4325, %v4409
    %v4411 = vpop.f32.mrf.mxu0
    %v4412 = vpop.f32.mrf.mxu0
    %v4413 = vadd.f32 %v4325, %v4412
    %v4414 = vpop.f32.mrf.mxu0
    %4415 = vdwg.mxu0
    %4416 = vst [vmem:[%s18] sm:$0xff] %v4410
    %4417 = vst [vmem:[%s18 + $0x8] sm:$0xff] %v4413
    // Predicated region
    $region78: #{gat_classifier_forward.1} parent=1 // pred_check
      _
    $region79: #{gat_classifier_forward.1} parent=1 // pred_check_branch
      %4419 = sbr.rel (0) target = $region81
    $region80: #{gat_classifier_forward.1} parent=1 // pred_region
      _
    $region81: #{gat_classifier_forward.1} parent=1 // pred_fallthru
      _
    // Predicated region
    $region82: #{gat_classifier_forward.1} parent=1 // pred_check
      _
    $region83: #{gat_classifier_forward.1} parent=1 // pred_check_branch
      %4421 = sbr.rel (0) target = $region85
    $region84: #{gat_classifier_forward.1} parent=1 // pred_region
      _
    $region85: #{gat_classifier_forward.1} parent=1 // pred_fallthru
      _
    %4422 = vsyncpa [#allocation3], 1

</llo_original>
